<compile_context>
chip_gen: v7x
topology: tpu7x:2x2x1
jax: 0.10.0
libtpu: 0.0.40
codegen_flags: <defaults>
</compile_context>

<pallas_src>
import functools

import jax
import jax.numpy as jnp
import numpy as np
from jax.experimental import pallas as pl
from jax.experimental.pallas import tpu as pltpu

# Flip to jnp.bfloat16 to halve weight HBM->VMEM traffic (relax the test
# tolerance to ~5e-2 if you do; activations are cast to this dtype at the
# MXU inputs, accumulation stays f32).
WEIGHT_DTYPE = jnp.float32


# ------------------------------ Pallas kernel -------------------------------

def stgcn_fused_kernel(x_ref, w1_ref, b1_ref, ga_ref, th_ref, w2_ref, b2_ref,
                       gl_ref, bl_ref, sel_ref, o_ref, t2_s, t3_s, *, co):
    """Fully fused STGCN block: TimeBlock1 -> A_hat -> Theta -> TimeBlock2 -> BN.

    Layout: rows = time, lanes = (node, channel), channel zero-padded so the
    lane width L = N*Co_p is a multiple of 128.
      x_ref : (B, T,  N*Cin)
      w1_ref: (3, N*Cin, 3*L)   taps on axis 0, the 3 conv branches concat on lanes
      b1_ref: (1, 3*L)
      ga_ref: (L, L)            kron(A_hat^T, I_Co_p)  -- graph conv as lane operator
      th_ref: (L, N*Cs)         kron(I_N, Theta1_padded)
      w2_ref: (3, N*Cs, 3*L)
      b2_ref: (1, 3*L)
      gl_ref/bl_ref: (1, L)     BN gamma/beta repeated per channel lane
      sel_ref: (L, L)           kron(I_N, mask) selector: per-node sums, pads excluded
      o_ref : (B, T2, L)
      t2_s  : VMEM (T1, N*Cs)   scratch for the Theta output
      t3_s  : VMEM (B, T2, L)   scratch for the pre-BN activations
    """
    B, T, _ = x_ref.shape
    L = o_ref.shape[-1]
    T1, T2 = T - 2, T - 4
    wdt = w1_ref.dtype

    def gated(y):
        # branch slices sit at lane offsets 0 / L / 2L (128-aligned).
        return jnp.maximum(
            y[:, :L] + jax.nn.sigmoid(y[:, L:2 * L]) + y[:, 2 * L:], 0.0)

    for b in range(B):                       # B is tiny and static -> unrolled
        # --- TimeBlock 1: taps read straight from the ref at row offsets 0/1/2 ---
        y = b1_ref[...]
        for k in range(3):
            y = y + jnp.dot(x_ref[b, pl.ds(k, T1), :].astype(wdt), w1_ref[k],
                            preferred_element_type=jnp.float32)
        t = gated(y)                                               # (T1, L)

        # --- graph conv over nodes + Theta, as lane-space matmuls ---
        lfs = jnp.dot(t.astype(wdt), ga_ref[...],
                      preferred_element_type=jnp.float32)          # (T1, L)
        t2_s[...] = jnp.maximum(
            jnp.dot(lfs.astype(wdt), th_ref[...],
                    preferred_element_type=jnp.float32), 0.0)      # (T1, N*Cs)

        # --- TimeBlock 2: taps sliced from the VMEM scratch ref ---
        z = b2_ref[...]
        for k in range(3):
            z = z + jnp.dot(t2_s[pl.ds(k, T2), :].astype(wdt), w2_ref[k],
                            preferred_element_type=jnp.float32)
        t3_s[b] = gated(z)                                         # (T2, L)

    # --- BatchNorm2d(num_nodes), training-mode batch statistics (fused) ---
    # TODO(synk): running_mean/running_var momentum buffer updates of
    # nn.BatchNorm2d are not reproduced; only the normalized output is.
    t3 = t3_s[...]                                                 # (B, T2, L)
    count = float(B * T2 * co)                                     # real channels only
    s1 = jnp.sum(jnp.sum(t3, axis=0), axis=0, keepdims=True)       # (1, L)
    mean = jnp.dot(s1, sel_ref[...], preferred_element_type=jnp.float32) / count
    d = t3 - mean                                                  # broadcast (1,L)
    s2 = jnp.sum(jnp.sum(d * d, axis=0), axis=0, keepdims=True)    # (1, L)
    var = jnp.dot(s2, sel_ref[...], preferred_element_type=jnp.float32) / count
    inv = jax.lax.rsqrt(var + 1e-5)
    o_ref[...] = gl_ref[...] * d * inv + bl_ref[...]


# -------------------- one-time parameter expansion (init) -------------------

def _pad_co(n_nodes, co, lane_multiple=128):
    """Smallest Co_p >= Co such that N*Co_p is a multiple of the lane width."""
    co_p = co
    while (n_nodes * co_p) % lane_multiple != 0:
        co_p += 1
    return co_p


def expand_stgcn_params(p, A_hat, weight_dtype=WEIGHT_DTYPE):
    """Expand the tiny module parameters into lane-space operators, ONCE.

    Returns (expanded_dict, Co).  Run at init time -- keep it off the hot path.
    """
    A_hat = jnp.asarray(A_hat, jnp.float32)
    N = A_hat.shape[0]
    Co = p["tb1_w1"].shape[-1]
    Cs = p["theta"].shape[-1]
    Co_p = _pad_co(N, Co)
    eyeN = jnp.eye(N, dtype=jnp.float32)

    def pad_w(w):   # (3, Ci, Co) -> (3, Ci, Co_p)  (zero columns for pad channels)
        return jnp.pad(w, ((0, 0), (0, 0), (0, Co_p - Co)))

    def pad_b(b):   # (1, Co) -> (1, Co_p)
        return jnp.pad(b, ((0, 0), (0, Co_p - Co)))

    def timeblock(w1, b1, w2, b2, w3, b3):
        ws = [pad_w(w) for w in (w1, w2, w3)]
        wk = [jnp.concatenate([jnp.kron(eyeN, w[k]) for w in ws], axis=1)
              for k in range(3)]                                   # (N*Ci, 3*N*Co_p)
        bias = jnp.concatenate([jnp.tile(pad_b(b), (1, N)) for b in (b1, b2, b3)],
                               axis=1)                             # (1, 3*N*Co_p)
        return jnp.stack(wk, axis=0).astype(weight_dtype), bias

    w1, b1 = timeblock(p["tb1_w1"], p["tb1_b1"], p["tb1_w2"], p["tb1_b2"],
                       p["tb1_w3"], p["tb1_b3"])
    w2, b2 = timeblock(p["tb2_w1"], p["tb2_b1"], p["tb2_w2"], p["tb2_b2"],
                       p["tb2_w3"], p["tb2_b3"])

    ga = jnp.kron(A_hat.T, jnp.eye(Co_p, dtype=jnp.float32)).astype(weight_dtype)
    theta_p = jnp.pad(p["theta"], ((0, Co_p - Co), (0, 0)))        # (Co_p, Cs)
    th = jnp.kron(eyeN, theta_p).astype(weight_dtype)              # (N*Co_p, N*Cs)

    gl = jnp.repeat(p["bn_gamma"].reshape(-1), Co_p).reshape(1, N * Co_p)
    bl = jnp.repeat(p["bn_beta"].reshape(-1), Co_p).reshape(1, N * Co_p)
    mask = (jnp.arange(Co_p) < Co).astype(jnp.float32)             # exclude pads
    sel = jnp.kron(eyeN, mask[:, None] * jnp.ones((1, Co_p), jnp.float32))

    ep = dict(w1=w1, b1=b1, ga=ga, th=th, w2=w2, b2=b2, gl=gl, bl=bl, sel=sel)
    return jax.tree.map(jnp.asarray, ep), Co


# ------------------------------- hot forward --------------------------------

@functools.partial(jax.jit, static_argnums=(2,))
def stgcn_block_forward(X, ep, co):
    """Forward pass of STGCNBlock.  X: (B, N, T, Cin), ep: expanded params."""
    B, N, T, Cin = X.shape
    L = ep["ga"].shape[0]            # N * Co_p (multiple of 128)
    co_p = L // N
    T1, T2 = T - 2, T - 4

    # glue: (B, N, T, Cin) -> (B, T, N*Cin) lane layout (tiny, data-dependent)
    xg = X.transpose(0, 2, 1, 3).reshape(B, T, N * Cin)

    # Single fused kernel (grid=(1,)): at B=2 a single call beats a batch-
    # parallel split (launch/DMA overhead dominates); for large B keep a
    # leading "parallel" batch axis on v7x and split the BN apply.
    out = pl.pallas_call(
        functools.partial(stgcn_fused_kernel, co=co),
        out_shape=jax.ShapeDtypeStruct((B, T2, L), jnp.float32),
        grid=(1,),
        in_specs=[
            pl.BlockSpec((B, T, N * Cin), lambda i: (0, 0, 0)),
            pl.BlockSpec(ep["w1"].shape, lambda i: (0, 0, 0)),
            pl.BlockSpec(ep["b1"].shape, lambda i: (0, 0)),
            pl.BlockSpec(ep["ga"].shape, lambda i: (0, 0)),
            pl.BlockSpec(ep["th"].shape, lambda i: (0, 0)),
            pl.BlockSpec(ep["w2"].shape, lambda i: (0, 0, 0)),
            pl.BlockSpec(ep["b2"].shape, lambda i: (0, 0)),
            pl.BlockSpec(ep["gl"].shape, lambda i: (0, 0)),
            pl.BlockSpec(ep["bl"].shape, lambda i: (0, 0)),
            pl.BlockSpec(ep["sel"].shape, lambda i: (0, 0)),
        ],
        out_specs=pl.BlockSpec((B, T2, L), lambda i: (0, 0, 0)),
        scratch_shapes=[
            pltpu.VMEM((T1, ep["th"].shape[-1]), jnp.float32),   # t2 scratch
            pltpu.VMEM((B, T2, L), jnp.float32),                 # t3 scratch
        ],
        compiler_params=pltpu.CompilerParams(
            dimension_semantics=("arbitrary",)),
    )(xg, ep["w1"], ep["b1"], ep["ga"], ep["th"], ep["w2"], ep["b2"],
      ep["gl"], ep["bl"], ep["sel"])

    # glue: strip channel padding, back to the module's (B, N, T2, Co) layout
    return out.reshape(B, T2, N, co_p)[..., :co].transpose(0, 2, 1, 3)


# --------------------------- pure-JAX reference -----------------------------

def stgcn_reference(X, A_hat, p):
    def timeblock(x, w1, b1, w2, b2, w3, b3):
        bB, nN, tT, _ = x.shape
        to = tT - 2

        def conv(w, b):
            acc = jnp.zeros((bB, nN, to, w.shape[-1]), jnp.float32)
            for k in range(3):
                acc = acc + jnp.einsum('bntc,cd->bntd', x[:, :, k:k + to, :], w[k])
            return acc + b.reshape(1, 1, 1, -1)

        return jax.nn.relu(conv(w1, b1) + jax.nn.sigmoid(conv(w2, b2)) + conv(w3, b3))

    t = timeblock(X, p["tb1_w1"], p["tb1_b1"], p["tb1_w2"], p["tb1_b2"],
                  p["tb1_w3"], p["tb1_b3"])
    lfs = jnp.einsum('ij,bjtc->bitc', A_hat, t)
    t2 = jax.nn.relu(jnp.einsum('bitc,cd->bitd', lfs, p["theta"]))
    t3 = timeblock(t2, p["tb2_w1"], p["tb2_b1"], p["tb2_w2"], p["tb2_b2"],
                   p["tb2_w3"], p["tb2_b3"])
    mean = jnp.mean(t3, axis=(0, 2, 3), keepdims=True)
    var = jnp.mean((t3 - mean) ** 2, axis=(0, 2, 3), keepdims=True)
    g = p["bn_gamma"].reshape(1, -1, 1, 1)
    b = p["bn_beta"].reshape(1, -1, 1, 1)
    return g * (t3 - mean) / jnp.sqrt(var + 1e-5) + b


# ---------------------------------- main ------------------------------------

if __name__ == "__main__":
    B, N, T, Cin = 2, 8, 16, 4       # batch, num_nodes, num_timesteps, in_channels
    Cs, Co = 16, 8                   # spatial_channels, out_channels

    key = jax.random.PRNGKey(0)
    ks = jax.random.split(key, 16)
    X = jax.random.normal(ks[0], (B, N, T, Cin), jnp.float32)
    A_hat = jax.random.uniform(ks[1], (N, N), jnp.float32)
    A_hat = A_hat / jnp.sum(A_hat, axis=1, keepdims=True)  # normalized adjacency

    def conv_w(k, ci, co):
        bound = 1.0 / np.sqrt(ci * 3)
        return jax.random.uniform(k, (3, ci, co), jnp.float32, -bound, bound)

    def conv_b(k, co, ci):
        bound = 1.0 / np.sqrt(ci * 3)
        return jax.random.uniform(k, (1, co), jnp.float32, -bound, bound)

    stdv = 1.0 / np.sqrt(Cs)
    params = dict(
        tb1_w1=conv_w(ks[2], Cin, Co), tb1_b1=conv_b(ks[3], Co, Cin),
        tb1_w2=conv_w(ks[4], Cin, Co), tb1_b2=conv_b(ks[5], Co, Cin),
        tb1_w3=conv_w(ks[6], Cin, Co), tb1_b3=conv_b(ks[7], Co, Cin),
        theta=jax.random.uniform(ks[8], (Co, Cs), jnp.float32, -stdv, stdv),
        tb2_w1=conv_w(ks[9], Cs, Co), tb2_b1=conv_b(ks[10], Co, Cs),
        tb2_w2=conv_w(ks[11], Cs, Co), tb2_b2=conv_b(ks[12], Co, Cs),
        tb2_w3=conv_w(ks[13], Cs, Co), tb2_b3=conv_b(ks[14], Co, Cs),
        bn_gamma=jnp.ones((N, 1), jnp.float32),   # BatchNorm2d(num_nodes) weight
        bn_beta=jnp.zeros((N, 1), jnp.float32),   # BatchNorm2d(num_nodes) bias
    )

    # one-time parameter expansion (off the hot path)
    ep, co = expand_stgcn_params(params, A_hat)
    ep = jax.block_until_ready(ep)

    out = jax.block_until_ready(stgcn_block_forward(X, ep, co))
    ref = jax.block_until_ready(stgcn_reference(X, A_hat, params))

    assert out.shape == (B, N, T - 4, Co), out.shape
    np.testing.assert_allclose(np.asarray(out), np.asarray(ref),
                               rtol=1e-3, atol=1e-3)
    print("KERNEL_OK")
</pallas_src>

<mosaic_0001>
module attributes {stable_mosaic.version = 11 : i64} {
  func.func @stgcn_fused_kernel(%arg0: i32, %arg1: memref<2x16x32xf32, #tpu.memory_space<vmem>>, %arg2: memref<3x32x384xf32, #tpu.memory_space<vmem>>, %arg3: memref<1x384xf32, #tpu.memory_space<vmem>>, %arg4: memref<128x128xf32, #tpu.memory_space<vmem>>, %arg5: memref<128x128xf32, #tpu.memory_space<vmem>>, %arg6: memref<3x128x384xf32, #tpu.memory_space<vmem>>, %arg7: memref<1x384xf32, #tpu.memory_space<vmem>>, %arg8: memref<1x128xf32, #tpu.memory_space<vmem>>, %arg9: memref<1x128xf32, #tpu.memory_space<vmem>>, %arg10: memref<128x128xf32, #tpu.memory_space<vmem>>, %arg11: memref<2x12x128xf32, #tpu.memory_space<vmem>>, %arg12: memref<14x128xf32, #tpu.memory_space<vmem>>, %arg13: memref<2x12x128xf32, #tpu.memory_space<vmem>>) attributes {dimension_semantics = [#tpu.dimension_semantics<arbitrary>], iteration_bounds = array<i64: 1>, scalar_prefetch = 0 : i64, scratch_operands = 2 : i64, tpu.core_type = #tpu.core_type<tc>, window_params = [{pipeline_mode = #tpu.pipeline_mode<synchronous>, transform_indices = @transform_0, window_bounds = array<i64: 2, 16, 32>}, {pipeline_mode = #tpu.pipeline_mode<synchronous>, transform_indices = @transform_1, window_bounds = array<i64: 3, 32, 384>}, {pipeline_mode = #tpu.pipeline_mode<synchronous>, transform_indices = @transform_2, window_bounds = array<i64: 1, 384>}, {pipeline_mode = #tpu.pipeline_mode<synchronous>, transform_indices = @transform_3, window_bounds = array<i64: 128, 128>}, {pipeline_mode = #tpu.pipeline_mode<synchronous>, transform_indices = @transform_4, window_bounds = array<i64: 128, 128>}, {pipeline_mode = #tpu.pipeline_mode<synchronous>, transform_indices = @transform_5, window_bounds = array<i64: 3, 128, 384>}, {pipeline_mode = #tpu.pipeline_mode<synchronous>, transform_indices = @transform_6, window_bounds = array<i64: 1, 384>}, {pipeline_mode = #tpu.pipeline_mode<synchronous>, transform_indices = @transform_7, window_bounds = array<i64: 1, 128>}, {pipeline_mode = #tpu.pipeline_mode<synchronous>, transform_indices = @transform_8, window_bounds = array<i64: 1, 128>}, {pipeline_mode = #tpu.pipeline_mode<synchronous>, transform_indices = @transform_9, window_bounds = array<i64: 128, 128>}, {pipeline_mode = #tpu.pipeline_mode<synchronous>, transform_indices = @transform_10, window_bounds = array<i64: 2, 12, 128>}]} {
    %c0 = arith.constant 0 : index
    %c0_0 = arith.constant 0 : index
    %0 = vector.load %arg3[%c0, %c0_0] : memref<1x384xf32, #tpu.memory_space<vmem>>, vector<1x384xf32>
    %c0_1 = arith.constant 0 : index
    %c0_2 = arith.constant 0 : index
    %c0_3 = arith.constant 0 : index
    %1 = vector.load %arg1[%c0_1, %c0_2, %c0_3] : memref<2x16x32xf32, #tpu.memory_space<vmem>>, vector<1x14x32xf32>
    %2 = vector.shape_cast %1 : vector<1x14x32xf32> to vector<14x32xf32>
    %c0_4 = arith.constant 0 : index
    %c0_5 = arith.constant 0 : index
    %c0_6 = arith.constant 0 : index
    %3 = vector.load %arg2[%c0_4, %c0_5, %c0_6] : memref<3x32x384xf32, #tpu.memory_space<vmem>>, vector<1x32x384xf32>
    %4 = vector.shape_cast %3 : vector<1x32x384xf32> to vector<32x384xf32>
    %cst = arith.constant dense<0.000000e+00> : vector<14x384xf32>
    %5 = tpu.matmul %2, %4, %cst {dimension_numbers = #tpu.dot_dimension_numbers<[1], [0], [0], [1], [0, 0, 1, 1], [], []>} : vector<14x32xf32>, vector<32x384xf32>, vector<14x384xf32> -> vector<14x384xf32>
    %6 = vector.broadcast %0 : vector<1x384xf32> to vector<14x384xf32>
    %7 = arith.addf %6, %5 : vector<14x384xf32>
    %c0_7 = arith.constant 0 : index
    %c1 = arith.constant 1 : index
    %c0_8 = arith.constant 0 : index
    %8 = vector.load %arg1[%c0_7, %c1, %c0_8] : memref<2x16x32xf32, #tpu.memory_space<vmem>>, vector<1x14x32xf32>
    %9 = vector.shape_cast %8 : vector<1x14x32xf32> to vector<14x32xf32>
    %c1_9 = arith.constant 1 : index
    %c0_10 = arith.constant 0 : index
    %c0_11 = arith.constant 0 : index
    %10 = vector.load %arg2[%c1_9, %c0_10, %c0_11] : memref<3x32x384xf32, #tpu.memory_space<vmem>>, vector<1x32x384xf32>
    %11 = vector.shape_cast %10 : vector<1x32x384xf32> to vector<32x384xf32>
    %cst_12 = arith.constant dense<0.000000e+00> : vector<14x384xf32>
    %12 = tpu.matmul %9, %11, %cst_12 {dimension_numbers = #tpu.dot_dimension_numbers<[1], [0], [0], [1], [0, 0, 1, 1], [], []>} : vector<14x32xf32>, vector<32x384xf32>, vector<14x384xf32> -> vector<14x384xf32>
    %13 = arith.addf %7, %12 : vector<14x384xf32>
    %c0_13 = arith.constant 0 : index
    %c2 = arith.constant 2 : index
    %c0_14 = arith.constant 0 : index
    %14 = vector.load %arg1[%c0_13, %c2, %c0_14] : memref<2x16x32xf32, #tpu.memory_space<vmem>>, vector<1x14x32xf32>
    %15 = vector.shape_cast %14 : vector<1x14x32xf32> to vector<14x32xf32>
    %c2_15 = arith.constant 2 : index
    %c0_16 = arith.constant 0 : index
    %c0_17 = arith.constant 0 : index
    %16 = vector.load %arg2[%c2_15, %c0_16, %c0_17] : memref<3x32x384xf32, #tpu.memory_space<vmem>>, vector<1x32x384xf32>
    %17 = vector.shape_cast %16 : vector<1x32x384xf32> to vector<32x384xf32>
    %cst_18 = arith.constant dense<0.000000e+00> : vector<14x384xf32>
    %18 = tpu.matmul %15, %17, %cst_18 {dimension_numbers = #tpu.dot_dimension_numbers<[1], [0], [0], [1], [0, 0, 1, 1], [], []>} : vector<14x32xf32>, vector<32x384xf32>, vector<14x384xf32> -> vector<14x384xf32>
    %19 = arith.addf %13, %18 : vector<14x384xf32>
    %20 = vector.extract_strided_slice %19 {offsets = [0, 0], sizes = [14, 128], strides = [1, 1]} : vector<14x384xf32> to vector<14x128xf32>
    %21 = vector.extract_strided_slice %19 {offsets = [0, 128], sizes = [14, 128], strides = [1, 1]} : vector<14x384xf32> to vector<14x128xf32>
    %22 = arith.negf %21 : vector<14x128xf32>
    %23 = math.exp %22 : vector<14x128xf32>
    %cst_19 = arith.constant 1.000000e+00 : f32
    %24 = vector.broadcast %cst_19 : f32 to vector<14x128xf32>
    %25 = arith.addf %24, %23 : vector<14x128xf32>
    %26 = arith.divf %24, %25 : vector<14x128xf32>
    %27 = arith.addf %20, %26 : vector<14x128xf32>
    %28 = vector.extract_strided_slice %19 {offsets = [0, 256], sizes = [14, 128], strides = [1, 1]} : vector<14x384xf32> to vector<14x128xf32>
    %29 = arith.addf %27, %28 : vector<14x128xf32>
    %cst_20 = arith.constant 0.000000e+00 : f32
    %30 = vector.broadcast %cst_20 : f32 to vector<14x128xf32>
    %31 = arith.maximumf %29, %30 : vector<14x128xf32>
    %c0_21 = arith.constant 0 : index
    %c0_22 = arith.constant 0 : index
    %32 = vector.load %arg4[%c0_21, %c0_22] : memref<128x128xf32, #tpu.memory_space<vmem>>, vector<128x128xf32>
    %cst_23 = arith.constant dense<0.000000e+00> : vector<14x128xf32>
    %33 = tpu.matmul %31, %32, %cst_23 {dimension_numbers = #tpu.dot_dimension_numbers<[1], [0], [0], [1], [0, 0, 1, 1], [], []>} : vector<14x128xf32>, vector<128x128xf32>, vector<14x128xf32> -> vector<14x128xf32>
    %c0_24 = arith.constant 0 : index
    %c0_25 = arith.constant 0 : index
    %34 = vector.load %arg5[%c0_24, %c0_25] : memref<128x128xf32, #tpu.memory_space<vmem>>, vector<128x128xf32>
    %cst_26 = arith.constant dense<0.000000e+00> : vector<14x128xf32>
    %35 = tpu.matmul %33, %34, %cst_26 {dimension_numbers = #tpu.dot_dimension_numbers<[1], [0], [0], [1], [0, 0, 1, 1], [], []>} : vector<14x128xf32>, vector<128x128xf32>, vector<14x128xf32> -> vector<14x128xf32>
    %cst_27 = arith.constant 0.000000e+00 : f32
    %36 = vector.broadcast %cst_27 : f32 to vector<14x128xf32>
    %37 = arith.maximumf %35, %36 : vector<14x128xf32>
    %c0_28 = arith.constant 0 : index
    %c0_29 = arith.constant 0 : index
    %38 = vector.load %arg12[%c0_28, %c0_29] : memref<14x128xf32, #tpu.memory_space<vmem>>, vector<14x128xf32>
    tpu.vector_store %arg12[%c0_28, %c0_29], %37 {strides = array<i32>} : memref<14x128xf32, #tpu.memory_space<vmem>>, vector<14x128xf32>,
    %c0_30 = arith.constant 0 : index
    %c0_31 = arith.constant 0 : index
    %39 = vector.load %arg7[%c0_30, %c0_31] : memref<1x384xf32, #tpu.memory_space<vmem>>, vector<1x384xf32>
    %c0_32 = arith.constant 0 : index
    %c0_33 = arith.constant 0 : index
    %40 = vector.load %arg12[%c0_32, %c0_33] : memref<14x128xf32, #tpu.memory_space<vmem>>, vector<12x128xf32>
    %c0_34 = arith.constant 0 : index
    %c0_35 = arith.constant 0 : index
    %c0_36 = arith.constant 0 : index
    %41 = vector.load %arg6[%c0_34, %c0_35, %c0_36] : memref<3x128x384xf32, #tpu.memory_space<vmem>>, vector<1x128x384xf32>
    %42 = vector.shape_cast %41 : vector<1x128x384xf32> to vector<128x384xf32>
    %cst_37 = arith.constant dense<0.000000e+00> : vector<12x384xf32>
    %43 = tpu.matmul %40, %42, %cst_37 {dimension_numbers = #tpu.dot_dimension_numbers<[1], [0], [0], [1], [0, 0, 1, 1], [], []>} : vector<12x128xf32>, vector<128x384xf32>, vector<12x384xf32> -> vector<12x384xf32>
    %44 = vector.broadcast %39 : vector<1x384xf32> to vector<12x384xf32>
    %45 = arith.addf %44, %43 : vector<12x384xf32>
    %c1_38 = arith.constant 1 : index
    %c0_39 = arith.constant 0 : index
    %46 = vector.load %arg12[%c1_38, %c0_39] : memref<14x128xf32, #tpu.memory_space<vmem>>, vector<12x128xf32>
    %c1_40 = arith.constant 1 : index
    %c0_41 = arith.constant 0 : index
    %c0_42 = arith.constant 0 : index
    %47 = vector.load %arg6[%c1_40, %c0_41, %c0_42] : memref<3x128x384xf32, #tpu.memory_space<vmem>>, vector<1x128x384xf32>
    %48 = vector.shape_cast %47 : vector<1x128x384xf32> to vector<128x384xf32>
    %cst_43 = arith.constant dense<0.000000e+00> : vector<12x384xf32>
    %49 = tpu.matmul %46, %48, %cst_43 {dimension_numbers = #tpu.dot_dimension_numbers<[1], [0], [0], [1], [0, 0, 1, 1], [], []>} : vector<12x128xf32>, vector<128x384xf32>, vector<12x384xf32> -> vector<12x384xf32>
    %50 = arith.addf %45, %49 : vector<12x384xf32>
    %c2_44 = arith.constant 2 : index
    %c0_45 = arith.constant 0 : index
    %51 = vector.load %arg12[%c2_44, %c0_45] : memref<14x128xf32, #tpu.memory_space<vmem>>, vector<12x128xf32>
    %c2_46 = arith.constant 2 : index
    %c0_47 = arith.constant 0 : index
    %c0_48 = arith.constant 0 : index
    %52 = vector.load %arg6[%c2_46, %c0_47, %c0_48] : memref<3x128x384xf32, #tpu.memory_space<vmem>>, vector<1x128x384xf32>
    %53 = vector.shape_cast %52 : vector<1x128x384xf32> to vector<128x384xf32>
    %cst_49 = arith.constant dense<0.000000e+00> : vector<12x384xf32>
    %54 = tpu.matmul %51, %53, %cst_49 {dimension_numbers = #tpu.dot_dimension_numbers<[1], [0], [0], [1], [0, 0, 1, 1], [], []>} : vector<12x128xf32>, vector<128x384xf32>, vector<12x384xf32> -> vector<12x384xf32>
    %55 = arith.addf %50, %54 : vector<12x384xf32>
    %56 = vector.extract_strided_slice %55 {offsets = [0, 0], sizes = [12, 128], strides = [1, 1]} : vector<12x384xf32> to vector<12x128xf32>
    %57 = vector.extract_strided_slice %55 {offsets = [0, 128], sizes = [12, 128], strides = [1, 1]} : vector<12x384xf32> to vector<12x128xf32>
    %58 = arith.negf %57 : vector<12x128xf32>
    %59 = math.exp %58 : vector<12x128xf32>
    %cst_50 = arith.constant 1.000000e+00 : f32
    %60 = vector.broadcast %cst_50 : f32 to vector<12x128xf32>
    %61 = arith.addf %60, %59 : vector<12x128xf32>
    %62 = arith.divf %60, %61 : vector<12x128xf32>
    %63 = arith.addf %56, %62 : vector<12x128xf32>
    %64 = vector.extract_strided_slice %55 {offsets = [0, 256], sizes = [12, 128], strides = [1, 1]} : vector<12x384xf32> to vector<12x128xf32>
    %65 = arith.addf %63, %64 : vector<12x128xf32>
    %cst_51 = arith.constant 0.000000e+00 : f32
    %66 = vector.broadcast %cst_51 : f32 to vector<12x128xf32>
    %67 = arith.maximumf %65, %66 : vector<12x128xf32>
    %c0_52 = arith.constant 0 : index
    %c0_53 = arith.constant 0 : index
    %c0_54 = arith.constant 0 : index
    %68 = vector.load %arg13[%c0_52, %c0_53, %c0_54] : memref<2x12x128xf32, #tpu.memory_space<vmem>>, vector<1x12x128xf32>
    %69 = vector.shape_cast %68 : vector<1x12x128xf32> to vector<12x128xf32>
    %70 = vector.shape_cast %67 : vector<12x128xf32> to vector<1x12x128xf32>
    tpu.vector_store %arg13[%c0_52, %c0_53, %c0_54], %70 {strides = array<i32>} : memref<2x12x128xf32, #tpu.memory_space<vmem>>, vector<1x12x128xf32>,
    %c0_55 = arith.constant 0 : index
    %c0_56 = arith.constant 0 : index
    %71 = vector.load %arg3[%c0_55, %c0_56] : memref<1x384xf32, #tpu.memory_space<vmem>>, vector<1x384xf32>
    %c1_57 = arith.constant 1 : index
    %c0_58 = arith.constant 0 : index
    %c0_59 = arith.constant 0 : index
    %72 = vector.load %arg1[%c1_57, %c0_58, %c0_59] : memref<2x16x32xf32, #tpu.memory_space<vmem>>, vector<1x14x32xf32>
    %73 = vector.shape_cast %72 : vector<1x14x32xf32> to vector<14x32xf32>
    %c0_60 = arith.constant 0 : index
    %c0_61 = arith.constant 0 : index
    %c0_62 = arith.constant 0 : index
    %74 = vector.load %arg2[%c0_60, %c0_61, %c0_62] : memref<3x32x384xf32, #tpu.memory_space<vmem>>, vector<1x32x384xf32>
    %75 = vector.shape_cast %74 : vector<1x32x384xf32> to vector<32x384xf32>
    %cst_63 = arith.constant dense<0.000000e+00> : vector<14x384xf32>
    %76 = tpu.matmul %73, %75, %cst_63 {dimension_numbers = #tpu.dot_dimension_numbers<[1], [0], [0], [1], [0, 0, 1, 1], [], []>} : vector<14x32xf32>, vector<32x384xf32>, vector<14x384xf32> -> vector<14x384xf32>
    %77 = vector.broadcast %71 : vector<1x384xf32> to vector<14x384xf32>
    %78 = arith.addf %77, %76 : vector<14x384xf32>
    %c1_64 = arith.constant 1 : index
    %c1_65 = arith.constant 1 : index
    %c0_66 = arith.constant 0 : index
    %79 = vector.load %arg1[%c1_64, %c1_65, %c0_66] : memref<2x16x32xf32, #tpu.memory_space<vmem>>, vector<1x14x32xf32>
    %80 = vector.shape_cast %79 : vector<1x14x32xf32> to vector<14x32xf32>
    %c1_67 = arith.constant 1 : index
    %c0_68 = arith.constant 0 : index
    %c0_69 = arith.constant 0 : index
    %81 = vector.load %arg2[%c1_67, %c0_68, %c0_69] : memref<3x32x384xf32, #tpu.memory_space<vmem>>, vector<1x32x384xf32>
    %82 = vector.shape_cast %81 : vector<1x32x384xf32> to vector<32x384xf32>
    %cst_70 = arith.constant dense<0.000000e+00> : vector<14x384xf32>
    %83 = tpu.matmul %80, %82, %cst_70 {dimension_numbers = #tpu.dot_dimension_numbers<[1], [0], [0], [1], [0, 0, 1, 1], [], []>} : vector<14x32xf32>, vector<32x384xf32>, vector<14x384xf32> -> vector<14x384xf32>
    %84 = arith.addf %78, %83 : vector<14x384xf32>
    %c1_71 = arith.constant 1 : index
    %c2_72 = arith.constant 2 : index
    %c0_73 = arith.constant 0 : index
    %85 = vector.load %arg1[%c1_71, %c2_72, %c0_73] : memref<2x16x32xf32, #tpu.memory_space<vmem>>, vector<1x14x32xf32>
    %86 = vector.shape_cast %85 : vector<1x14x32xf32> to vector<14x32xf32>
    %c2_74 = arith.constant 2 : index
    %c0_75 = arith.constant 0 : index
    %c0_76 = arith.constant 0 : index
    %87 = vector.load %arg2[%c2_74, %c0_75, %c0_76] : memref<3x32x384xf32, #tpu.memory_space<vmem>>, vector<1x32x384xf32>
    %88 = vector.shape_cast %87 : vector<1x32x384xf32> to vector<32x384xf32>
    %cst_77 = arith.constant dense<0.000000e+00> : vector<14x384xf32>
    %89 = tpu.matmul %86, %88, %cst_77 {dimension_numbers = #tpu.dot_dimension_numbers<[1], [0], [0], [1], [0, 0, 1, 1], [], []>} : vector<14x32xf32>, vector<32x384xf32>, vector<14x384xf32> -> vector<14x384xf32>
    %90 = arith.addf %84, %89 : vector<14x384xf32>
    %91 = vector.extract_strided_slice %90 {offsets = [0, 0], sizes = [14, 128], strides = [1, 1]} : vector<14x384xf32> to vector<14x128xf32>
    %92 = vector.extract_strided_slice %90 {offsets = [0, 128], sizes = [14, 128], strides = [1, 1]} : vector<14x384xf32> to vector<14x128xf32>
    %93 = arith.negf %92 : vector<14x128xf32>
    %94 = math.exp %93 : vector<14x128xf32>
    %cst_78 = arith.constant 1.000000e+00 : f32
    %95 = vector.broadcast %cst_78 : f32 to vector<14x128xf32>
    %96 = arith.addf %95, %94 : vector<14x128xf32>
    %97 = arith.divf %95, %96 : vector<14x128xf32>
    %98 = arith.addf %91, %97 : vector<14x128xf32>
    %99 = vector.extract_strided_slice %90 {offsets = [0, 256], sizes = [14, 128], strides = [1, 1]} : vector<14x384xf32> to vector<14x128xf32>
    %100 = arith.addf %98, %99 : vector<14x128xf32>
    %cst_79 = arith.constant 0.000000e+00 : f32
    %101 = vector.broadcast %cst_79 : f32 to vector<14x128xf32>
    %102 = arith.maximumf %100, %101 : vector<14x128xf32>
    %c0_80 = arith.constant 0 : index
    %c0_81 = arith.constant 0 : index
    %103 = vector.load %arg4[%c0_80, %c0_81] : memref<128x128xf32, #tpu.memory_space<vmem>>, vector<128x128xf32>
    %cst_82 = arith.constant dense<0.000000e+00> : vector<14x128xf32>
    %104 = tpu.matmul %102, %103, %cst_82 {dimension_numbers = #tpu.dot_dimension_numbers<[1], [0], [0], [1], [0, 0, 1, 1], [], []>} : vector<14x128xf32>, vector<128x128xf32>, vector<14x128xf32> -> vector<14x128xf32>
    %c0_83 = arith.constant 0 : index
    %c0_84 = arith.constant 0 : index
    %105 = vector.load %arg5[%c0_83, %c0_84] : memref<128x128xf32, #tpu.memory_space<vmem>>, vector<128x128xf32>
    %cst_85 = arith.constant dense<0.000000e+00> : vector<14x128xf32>
    %106 = tpu.matmul %104, %105, %cst_85 {dimension_numbers = #tpu.dot_dimension_numbers<[1], [0], [0], [1], [0, 0, 1, 1], [], []>} : vector<14x128xf32>, vector<128x128xf32>, vector<14x128xf32> -> vector<14x128xf32>
    %cst_86 = arith.constant 0.000000e+00 : f32
    %107 = vector.broadcast %cst_86 : f32 to vector<14x128xf32>
    %108 = arith.maximumf %106, %107 : vector<14x128xf32>
    %c0_87 = arith.constant 0 : index
    %c0_88 = arith.constant 0 : index
    %109 = vector.load %arg12[%c0_87, %c0_88] : memref<14x128xf32, #tpu.memory_space<vmem>>, vector<14x128xf32>
    tpu.vector_store %arg12[%c0_87, %c0_88], %108 {strides = array<i32>} : memref<14x128xf32, #tpu.memory_space<vmem>>, vector<14x128xf32>,
    %c0_89 = arith.constant 0 : index
    %c0_90 = arith.constant 0 : index
    %110 = vector.load %arg7[%c0_89, %c0_90] : memref<1x384xf32, #tpu.memory_space<vmem>>, vector<1x384xf32>
    %c0_91 = arith.constant 0 : index
    %c0_92 = arith.constant 0 : index
    %111 = vector.load %arg12[%c0_91, %c0_92] : memref<14x128xf32, #tpu.memory_space<vmem>>, vector<12x128xf32>
    %c0_93 = arith.constant 0 : index
    %c0_94 = arith.constant 0 : index
    %c0_95 = arith.constant 0 : index
    %112 = vector.load %arg6[%c0_93, %c0_94, %c0_95] : memref<3x128x384xf32, #tpu.memory_space<vmem>>, vector<1x128x384xf32>
    %113 = vector.shape_cast %112 : vector<1x128x384xf32> to vector<128x384xf32>
    %cst_96 = arith.constant dense<0.000000e+00> : vector<12x384xf32>
    %114 = tpu.matmul %111, %113, %cst_96 {dimension_numbers = #tpu.dot_dimension_numbers<[1], [0], [0], [1], [0, 0, 1, 1], [], []>} : vector<12x128xf32>, vector<128x384xf32>, vector<12x384xf32> -> vector<12x384xf32>
    %115 = vector.broadcast %110 : vector<1x384xf32> to vector<12x384xf32>
    %116 = arith.addf %115, %114 : vector<12x384xf32>
    %c1_97 = arith.constant 1 : index
    %c0_98 = arith.constant 0 : index
    %117 = vector.load %arg12[%c1_97, %c0_98] : memref<14x128xf32, #tpu.memory_space<vmem>>, vector<12x128xf32>
    %c1_99 = arith.constant 1 : index
    %c0_100 = arith.constant 0 : index
    %c0_101 = arith.constant 0 : index
    %118 = vector.load %arg6[%c1_99, %c0_100, %c0_101] : memref<3x128x384xf32, #tpu.memory_space<vmem>>, vector<1x128x384xf32>
    %119 = vector.shape_cast %118 : vector<1x128x384xf32> to vector<128x384xf32>
    %cst_102 = arith.constant dense<0.000000e+00> : vector<12x384xf32>
    %120 = tpu.matmul %117, %119, %cst_102 {dimension_numbers = #tpu.dot_dimension_numbers<[1], [0], [0], [1], [0, 0, 1, 1], [], []>} : vector<12x128xf32>, vector<128x384xf32>, vector<12x384xf32> -> vector<12x384xf32>
    %121 = arith.addf %116, %120 : vector<12x384xf32>
    %c2_103 = arith.constant 2 : index
    %c0_104 = arith.constant 0 : index
    %122 = vector.load %arg12[%c2_103, %c0_104] : memref<14x128xf32, #tpu.memory_space<vmem>>, vector<12x128xf32>
    %c2_105 = arith.constant 2 : index
    %c0_106 = arith.constant 0 : index
    %c0_107 = arith.constant 0 : index
    %123 = vector.load %arg6[%c2_105, %c0_106, %c0_107] : memref<3x128x384xf32, #tpu.memory_space<vmem>>, vector<1x128x384xf32>
    %124 = vector.shape_cast %123 : vector<1x128x384xf32> to vector<128x384xf32>
    %cst_108 = arith.constant dense<0.000000e+00> : vector<12x384xf32>
    %125 = tpu.matmul %122, %124, %cst_108 {dimension_numbers = #tpu.dot_dimension_numbers<[1], [0], [0], [1], [0, 0, 1, 1], [], []>} : vector<12x128xf32>, vector<128x384xf32>, vector<12x384xf32> -> vector<12x384xf32>
    %126 = arith.addf %121, %125 : vector<12x384xf32>
    %127 = vector.extract_strided_slice %126 {offsets = [0, 0], sizes = [12, 128], strides = [1, 1]} : vector<12x384xf32> to vector<12x128xf32>
    %128 = vector.extract_strided_slice %126 {offsets = [0, 128], sizes = [12, 128], strides = [1, 1]} : vector<12x384xf32> to vector<12x128xf32>
    %129 = arith.negf %128 : vector<12x128xf32>
    %130 = math.exp %129 : vector<12x128xf32>
    %cst_109 = arith.constant 1.000000e+00 : f32
    %131 = vector.broadcast %cst_109 : f32 to vector<12x128xf32>
    %132 = arith.addf %131, %130 : vector<12x128xf32>
    %133 = arith.divf %131, %132 : vector<12x128xf32>
    %134 = arith.addf %127, %133 : vector<12x128xf32>
    %135 = vector.extract_strided_slice %126 {offsets = [0, 256], sizes = [12, 128], strides = [1, 1]} : vector<12x384xf32> to vector<12x128xf32>
    %136 = arith.addf %134, %135 : vector<12x128xf32>
    %cst_110 = arith.constant 0.000000e+00 : f32
    %137 = vector.broadcast %cst_110 : f32 to vector<12x128xf32>
    %138 = arith.maximumf %136, %137 : vector<12x128xf32>
    %c1_111 = arith.constant 1 : index
    %c0_112 = arith.constant 0 : index
    %c0_113 = arith.constant 0 : index
    %139 = vector.load %arg13[%c1_111, %c0_112, %c0_113] : memref<2x12x128xf32, #tpu.memory_space<vmem>>, vector<1x12x128xf32>
    %140 = vector.shape_cast %139 : vector<1x12x128xf32> to vector<12x128xf32>
    %141 = vector.shape_cast %138 : vector<12x128xf32> to vector<1x12x128xf32>
    tpu.vector_store %arg13[%c1_111, %c0_112, %c0_113], %141 {strides = array<i32>} : memref<2x12x128xf32, #tpu.memory_space<vmem>>, vector<1x12x128xf32>,
    %c0_114 = arith.constant 0 : index
    %c0_115 = arith.constant 0 : index
    %c0_116 = arith.constant 0 : index
    %142 = vector.load %arg13[%c0_114, %c0_115, %c0_116] : memref<2x12x128xf32, #tpu.memory_space<vmem>>, vector<2x12x128xf32>
    %cst_117 = arith.constant dense<0.000000e+00> : vector<12x128xf32>
    %143 = vector.multi_reduction <add>, %142, %cst_117 [0] : vector<2x12x128xf32> to vector<12x128xf32>
    %cst_118 = arith.constant dense<0.000000e+00> : vector<128xf32>
    %144 = vector.multi_reduction <add>, %143, %cst_118 [0] : vector<12x128xf32> to vector<128xf32>
    %145 = vector.shape_cast %144 : vector<128xf32> to vector<1x128xf32>
    %c0_119 = arith.constant 0 : index
    %c0_120 = arith.constant 0 : index
    %146 = vector.load %arg10[%c0_119, %c0_120] : memref<128x128xf32, #tpu.memory_space<vmem>>, vector<128x128xf32>
    %cst_121 = arith.constant dense<0.000000e+00> : vector<1x128xf32>
    %147 = tpu.matmul %145, %146, %cst_121 {dimension_numbers = #tpu.dot_dimension_numbers<[1], [0], [0], [1], [0, 0, 1, 1], [], []>} : vector<1x128xf32>, vector<128x128xf32>, vector<1x128xf32> -> vector<1x128xf32>
    %cst_122 = arith.constant 1.920000e+02 : f32
    %148 = vector.broadcast %cst_122 : f32 to vector<1x128xf32>
    %149 = arith.divf %147, %148 : vector<1x128xf32>
    %150 = vector.shape_cast %149 : vector<1x128xf32> to vector<1x1x128xf32>
    %151 = vector.broadcast %150 : vector<1x1x128xf32> to vector<2x12x128xf32>
    %152 = arith.subf %142, %151 : vector<2x12x128xf32>
    %153 = arith.mulf %152, %152 : vector<2x12x128xf32>
    %cst_123 = arith.constant dense<0.000000e+00> : vector<12x128xf32>
    %154 = vector.multi_reduction <add>, %153, %cst_123 [0] : vector<2x12x128xf32> to vector<12x128xf32>
    %cst_124 = arith.constant dense<0.000000e+00> : vector<128xf32>
    %155 = vector.multi_reduction <add>, %154, %cst_124 [0] : vector<12x128xf32> to vector<128xf32>
    %156 = vector.shape_cast %155 : vector<128xf32> to vector<1x128xf32>
    %c0_125 = arith.constant 0 : index
    %c0_126 = arith.constant 0 : index
    %157 = vector.load %arg10[%c0_125, %c0_126] : memref<128x128xf32, #tpu.memory_space<vmem>>, vector<128x128xf32>
    %cst_127 = arith.constant dense<0.000000e+00> : vector<1x128xf32>
    %158 = tpu.matmul %156, %157, %cst_127 {dimension_numbers = #tpu.dot_dimension_numbers<[1], [0], [0], [1], [0, 0, 1, 1], [], []>} : vector<1x128xf32>, vector<128x128xf32>, vector<1x128xf32> -> vector<1x128xf32>
    %cst_128 = arith.constant 1.920000e+02 : f32
    %159 = vector.broadcast %cst_128 : f32 to vector<1x128xf32>
    %160 = arith.divf %158, %159 : vector<1x128xf32>
    %cst_129 = arith.constant 9.99999974E-6 : f32
    %161 = vector.broadcast %cst_129 : f32 to vector<1x128xf32>
    %162 = arith.addf %160, %161 : vector<1x128xf32>
    %163 = math.rsqrt %162 : vector<1x128xf32>
    %c0_130 = arith.constant 0 : index
    %c0_131 = arith.constant 0 : index
    %164 = vector.load %arg8[%c0_130, %c0_131] : memref<1x128xf32, #tpu.memory_space<vmem>>, vector<1x128xf32>
    %165 = vector.shape_cast %164 : vector<1x128xf32> to vector<1x1x128xf32>
    %166 = vector.broadcast %165 : vector<1x1x128xf32> to vector<2x12x128xf32>
    %167 = arith.mulf %166, %152 : vector<2x12x128xf32>
    %168 = vector.shape_cast %163 : vector<1x128xf32> to vector<1x1x128xf32>
    %169 = vector.broadcast %168 : vector<1x1x128xf32> to vector<2x12x128xf32>
    %170 = arith.mulf %167, %169 : vector<2x12x128xf32>
    %c0_132 = arith.constant 0 : index
    %c0_133 = arith.constant 0 : index
    %171 = vector.load %arg9[%c0_132, %c0_133] : memref<1x128xf32, #tpu.memory_space<vmem>>, vector<1x128xf32>
    %172 = vector.shape_cast %171 : vector<1x128xf32> to vector<1x1x128xf32>
    %173 = vector.broadcast %172 : vector<1x1x128xf32> to vector<2x12x128xf32>
    %174 = arith.addf %170, %173 : vector<2x12x128xf32>
    %c0_134 = arith.constant 0 : index
    %c0_135 = arith.constant 0 : index
    %c0_136 = arith.constant 0 : index
    %175 = vector.load %arg11[%c0_134, %c0_135, %c0_136] : memref<2x12x128xf32, #tpu.memory_space<vmem>>, vector<2x12x128xf32>
    tpu.vector_store %arg11[%c0_134, %c0_135, %c0_136], %174 {strides = array<i32>} : memref<2x12x128xf32, #tpu.memory_space<vmem>>, vector<2x12x128xf32>,
    return
  }
  func.func @transform_0(%arg0: i32) -> (i32, i32, i32) {
    %c0_i32 = arith.constant 0 : i32
    %c0_i32_0 = arith.constant 0 : i32
    %c0_i32_1 = arith.constant 0 : i32
    %c0_i32_2 = arith.constant 0 : i32
    return %c0_i32, %c0_i32_0, %c0_i32_1 : i32, i32, i32
  }
  func.func @transform_1(%arg0: i32) -> (i32, i32, i32) {
    %c0_i32 = arith.constant 0 : i32
    %c0_i32_0 = arith.constant 0 : i32
    %c0_i32_1 = arith.constant 0 : i32
    %c0_i32_2 = arith.constant 0 : i32
    return %c0_i32, %c0_i32_0, %c0_i32_1 : i32, i32, i32
  }
  func.func @transform_2(%arg0: i32) -> (i32, i32) {
    %c0_i32 = arith.constant 0 : i32
    %c0_i32_0 = arith.constant 0 : i32
    %c0_i32_1 = arith.constant 0 : i32
    return %c0_i32, %c0_i32_0 : i32, i32
  }
  func.func @transform_3(%arg0: i32) -> (i32, i32) {
    %c0_i32 = arith.constant 0 : i32
    %c0_i32_0 = arith.constant 0 : i32
    %c0_i32_1 = arith.constant 0 : i32
    return %c0_i32, %c0_i32_0 : i32, i32
  }
  func.func @transform_4(%arg0: i32) -> (i32, i32) {
    %c0_i32 = arith.constant 0 : i32
    %c0_i32_0 = arith.constant 0 : i32
    %c0_i32_1 = arith.constant 0 : i32
    return %c0_i32, %c0_i32_0 : i32, i32
  }
  func.func @transform_5(%arg0: i32) -> (i32, i32, i32) {
    %c0_i32 = arith.constant 0 : i32
    %c0_i32_0 = arith.constant 0 : i32
    %c0_i32_1 = arith.constant 0 : i32
    %c0_i32_2 = arith.constant 0 : i32
    return %c0_i32, %c0_i32_0, %c0_i32_1 : i32, i32, i32
  }
  func.func @transform_6(%arg0: i32) -> (i32, i32) {
    %c0_i32 = arith.constant 0 : i32
    %c0_i32_0 = arith.constant 0 : i32
    %c0_i32_1 = arith.constant 0 : i32
    return %c0_i32, %c0_i32_0 : i32, i32
  }
  func.func @transform_7(%arg0: i32) -> (i32, i32) {
    %c0_i32 = arith.constant 0 : i32
    %c0_i32_0 = arith.constant 0 : i32
    %c0_i32_1 = arith.constant 0 : i32
    return %c0_i32, %c0_i32_0 : i32, i32
  }
  func.func @transform_8(%arg0: i32) -> (i32, i32) {
    %c0_i32 = arith.constant 0 : i32
    %c0_i32_0 = arith.constant 0 : i32
    %c0_i32_1 = arith.constant 0 : i32
    return %c0_i32, %c0_i32_0 : i32, i32
  }
  func.func @transform_9(%arg0: i32) -> (i32, i32) {
    %c0_i32 = arith.constant 0 : i32
    %c0_i32_0 = arith.constant 0 : i32
    %c0_i32_1 = arith.constant 0 : i32
    return %c0_i32, %c0_i32_0 : i32, i32
  }
  func.func @transform_10(%arg0: i32) -> (i32, i32, i32) {
    %c0_i32 = arith.constant 0 : i32
    %c0_i32_0 = arith.constant 0 : i32
    %c0_i32_1 = arith.constant 0 : i32
    %c0_i32_2 = arith.constant 0 : i32
    return %c0_i32, %c0_i32_0, %c0_i32_1 : i32, i32, i32
  }
}

</mosaic_0001>

<llo_original>
// kernel: stgcn_block_forward.1
$region0: #{stgcn_block_forward.1}
  #allocation0 [shape = 'u32[]', space=smem, size = 0x4, offset = 0x4, fixed_abs, tag = 'smem constant byte address 0x4 - core index']
  #allocation1 [shape = 'u32[144,128]{1,0:T(1,128)}', space=vmem, size = 0x12000, scoped, tag = 'internal scratch']
  #allocation2 [shape = 'f32[14,128]{1,0:T(8,128)}', space=vmem, size = 0x2000, scoped, tag = 'scratch operand']
  #allocation3 [shape = 'f32[2,12,128]{2,1,0:T(8,128)}', space=vmem, size = 0x4000, scoped, tag = 'scratch operand']
  %s0 = inlined_call_operand.vmem [shape: f32[2,16,32], index: 0, kind: input, shape index: {}]
  %s1 = inlined_call_operand.hbm [shape: f32[3,32,384], index: 1, kind: input, shape index: {}]
  %s2 = inlined_call_operand.vmem [shape: f32[1,384], index: 2, kind: input, shape index: {}]
  %s3 = inlined_call_operand.hbm [shape: f32[128,128], index: 3, kind: input, shape index: {}]
  %s4 = inlined_call_operand.hbm [shape: f32[128,128], index: 4, kind: input, shape index: {}]
  %s5 = inlined_call_operand.hbm [shape: f32[3,128,384], index: 5, kind: input, shape index: {}]
  %s6 = inlined_call_operand.vmem [shape: f32[1,384], index: 6, kind: input, shape index: {}]
  %s7 = inlined_call_operand.vmem [shape: f32[1,128], index: 7, kind: input, shape index: {}]
  %s8 = inlined_call_operand.vmem [shape: f32[1,128], index: 8, kind: input, shape index: {}]
  %s9 = inlined_call_operand.hbm [shape: f32[128,128], index: 9, kind: input, shape index: {}]
  %s10 = inlined_call_operand.vmem [shape: f32[2,12,128], index: 10, kind: output, shape index: {}]
  %s11 = sld [smem:[#allocation0]]
  $region70: #{stgcn_block_forward.1} parent=0
    _
  %s13 = ssub.s32 1, %s11
  %s14 = scalar_select 0, %s13, %s11
  $region1: #{stgcn_block_forward.1} parent=0
    #allocation4 [shape = 'u8[147456]{0}', space=vmem, size = 0x24000, scoped, tag = 'input window, operand 1, single buffered']
    #allocation5 [shape = 's32[1]{0}', space=sflag, size = 0x4, scoped, tag = 'scoped memory for stgcn_block_forward.1']
    #allocation6 [shape = 'u8[65536]{0}', space=vmem, size = 0x10000, scoped, tag = 'input window, operand 3, single buffered']
    #allocation7 [shape = 's32[1]{0}', space=sflag, size = 0x4, scoped, tag = 'scoped memory for stgcn_block_forward.1']
    #allocation8 [shape = 'u8[65536]{0}', space=vmem, size = 0x10000, scoped, tag = 'input window, operand 4, single buffered']
    #allocation9 [shape = 'u8[589824]{0}', space=vmem, size = 0x90000, scoped, tag = 'input window, operand 5, single buffered']
    #allocation10 [shape = 's32[1]{0}', space=sflag, size = 0x4, scoped, tag = 'scoped memory for stgcn_block_forward.1']
    #allocation11 [shape = 'u8[65536]{0}', space=vmem, size = 0x10000, scoped, tag = 'input window, operand 9, single buffered']
    %15 = vsyncpa [#allocation5], 0
    %16 = vsyncpa [#allocation7], 0
    %17 = vsyncpa [#allocation10], 0
    // Predicated region
    $region2: #{stgcn_block_forward.1} parent=1 // pred_check
      _
    $region3: #{stgcn_block_forward.1} parent=1 // pred_check_branch
      %19 = sbr.rel (0) target = $region5
    $region4: #{stgcn_block_forward.1} parent=1 // pred_region
      _
    $region5: #{stgcn_block_forward.1} parent=1 // pred_fallthru
      _
    // Predicated region
    $region6: #{stgcn_block_forward.1} parent=1 // pred_check
      _
    $region7: #{stgcn_block_forward.1} parent=1 // pred_check_branch
      %21 = sbr.rel (0) target = $region9
    $region8: #{stgcn_block_forward.1} parent=1 // pred_region
      %s23 = ssub.s32 4608, 4608
      %24 = vsyncadd [#allocation5], %s23
      %s25 = sshll.u32 [#allocation4], 4
      %s26 = int_to_ptr.vmem [resolvable:$true] %s25
      %31 = dma.hbm_to_vmem [thread:$0]  %s1, 4608, %s26, [#allocation5], 384, 384, 24
    $region9: #{stgcn_block_forward.1} parent=1 // pred_fallthru
      _
    // Predicated region
    $region10: #{stgcn_block_forward.1} parent=1 // pred_check
      _
    $region11: #{stgcn_block_forward.1} parent=1 // pred_check_branch
      %33 = sbr.rel (0) target = $region13
    $region12: #{stgcn_block_forward.1} parent=1 // pred_region
      _
    $region13: #{stgcn_block_forward.1} parent=1 // pred_fallthru
      _
    // Predicated region
    $region14: #{stgcn_block_forward.1} parent=1 // pred_check
      _
    $region15: #{stgcn_block_forward.1} parent=1 // pred_check_branch
      %35 = sbr.rel (0) target = $region17
    $region16: #{stgcn_block_forward.1} parent=1 // pred_region
      %s37 = ssub.s32 2048, 2048
      %38 = vsyncadd [#allocation7], %s37
      %s39 = sshll.u32 [#allocation6], 4
      %s40 = int_to_ptr.vmem [resolvable:$true] %s39
      %45 = dma.hbm_to_vmem [thread:$0]  %s3, 2048, %s40, [#allocation7], 128, 128, 8
    $region17: #{stgcn_block_forward.1} parent=1 // pred_fallthru
      _
    // Predicated region
    $region18: #{stgcn_block_forward.1} parent=1 // pred_check
      _
    $region19: #{stgcn_block_forward.1} parent=1 // pred_check_branch
      %47 = sbr.rel (0) target = $region21
    $region20: #{stgcn_block_forward.1} parent=1 // pred_region
      %s49 = ssub.s32 2048, 2048
      %50 = vsyncadd [#allocation7], %s49
      %s51 = sshll.u32 [#allocation8], 4
      %s52 = int_to_ptr.vmem [resolvable:$true] %s51
      %57 = dma.hbm_to_vmem [thread:$0]  %s4, 2048, %s52, [#allocation7], 128, 128, 8
    $region21: #{stgcn_block_forward.1} parent=1 // pred_fallthru
      _
    // Predicated region
    $region22: #{stgcn_block_forward.1} parent=1 // pred_check
      _
    $region23: #{stgcn_block_forward.1} parent=1 // pred_check_branch
      %59 = sbr.rel (0) target = $region25
    $region24: #{stgcn_block_forward.1} parent=1 // pred_region
      %s61 = ssub.s32 18432, 18432
      %62 = vsyncadd [#allocation10], %s61
      %s63 = sshll.u32 [#allocation9], 4
      %s64 = int_to_ptr.vmem [resolvable:$true] %s63
      %69 = dma.hbm_to_vmem [thread:$0]  %s5, 18432, %s64, [#allocation10], 384, 384, 24
    $region25: #{stgcn_block_forward.1} parent=1 // pred_fallthru
      _
    // Predicated region
    $region26: #{stgcn_block_forward.1} parent=1 // pred_check
      _
    $region27: #{stgcn_block_forward.1} parent=1 // pred_check_branch
      %71 = sbr.rel (0) target = $region29
    $region28: #{stgcn_block_forward.1} parent=1 // pred_region
      _
    $region29: #{stgcn_block_forward.1} parent=1 // pred_fallthru
      _
    // Predicated region
    $region30: #{stgcn_block_forward.1} parent=1 // pred_check
      _
    $region31: #{stgcn_block_forward.1} parent=1 // pred_check_branch
      %73 = sbr.rel (0) target = $region33
    $region32: #{stgcn_block_forward.1} parent=1 // pred_region
      _
    $region33: #{stgcn_block_forward.1} parent=1 // pred_fallthru
      _
    // Predicated region
    $region34: #{stgcn_block_forward.1} parent=1 // pred_check
      _
    $region35: #{stgcn_block_forward.1} parent=1 // pred_check_branch
      %75 = sbr.rel (0) target = $region37
    $region36: #{stgcn_block_forward.1} parent=1 // pred_region
      _
    $region37: #{stgcn_block_forward.1} parent=1 // pred_fallthru
      _
    // Predicated region
    $region38: #{stgcn_block_forward.1} parent=1 // pred_check
      _
    $region39: #{stgcn_block_forward.1} parent=1 // pred_check_branch
      %77 = sbr.rel (0) target = $region41
    $region40: #{stgcn_block_forward.1} parent=1 // pred_region
      %s79 = ssub.s32 2048, 2048
      %80 = vsyncadd [#allocation10], %s79
      %s81 = sshll.u32 [#allocation11], 4
      %s82 = int_to_ptr.vmem [resolvable:$true] %s81
      %87 = dma.hbm_to_vmem [thread:$0]  %s9, 2048, %s82, [#allocation10], 128, 128, 8
    $region41: #{stgcn_block_forward.1} parent=1 // pred_fallthru
      _
    // Predicated region
    $region42: #{stgcn_block_forward.1} parent=1 // pred_check
      _
    $region43: #{stgcn_block_forward.1} parent=1 // pred_check_branch
      %89 = sbr.rel (0) target = $region45
    $region44: #{stgcn_block_forward.1} parent=1 // pred_region
      %90 = dma.done [#allocation5], 4608
    $region45: #{stgcn_block_forward.1} parent=1 // pred_fallthru
      _
    // Predicated region
    $region46: #{stgcn_block_forward.1} parent=1 // pred_check
      _
    $region47: #{stgcn_block_forward.1} parent=1 // pred_check_branch
      %92 = sbr.rel (0) target = $region49
    $region48: #{stgcn_block_forward.1} parent=1 // pred_region
      %93 = dma.done [#allocation7], 2048
    $region49: #{stgcn_block_forward.1} parent=1 // pred_fallthru
      _
    // Predicated region
    $region50: #{stgcn_block_forward.1} parent=1 // pred_check
      _
    $region51: #{stgcn_block_forward.1} parent=1 // pred_check_branch
      %95 = sbr.rel (0) target = $region53
    $region52: #{stgcn_block_forward.1} parent=1 // pred_region
      %96 = dma.done [#allocation7], 2048
    $region53: #{stgcn_block_forward.1} parent=1 // pred_fallthru
      _
    // Predicated region
    $region54: #{stgcn_block_forward.1} parent=1 // pred_check
      _
    $region55: #{stgcn_block_forward.1} parent=1 // pred_check_branch
      %98 = sbr.rel (0) target = $region57
    $region56: #{stgcn_block_forward.1} parent=1 // pred_region
      %99 = dma.done [#allocation10], 18432
    $region57: #{stgcn_block_forward.1} parent=1 // pred_fallthru
      _
    // Predicated region
    $region58: #{stgcn_block_forward.1} parent=1 // pred_check
      _
    $region59: #{stgcn_block_forward.1} parent=1 // pred_check_branch
      %101 = sbr.rel (0) target = $region61
    $region60: #{stgcn_block_forward.1} parent=1 // pred_region
      %102 = dma.done [#allocation10], 2048
    $region61: #{stgcn_block_forward.1} parent=1 // pred_fallthru
      _
    %v103 = vld [vmem:[%s2] sm:$0x7]
    %v104 = vld [vmem:[%s0] sm:$0xff]
    %v105 = vld [vmem:[%s0 + $0x8] sm:$0x3f]
    %v106 = vld [vmem:[#allocation4] sm:$0xff]
    %v107 = vld [vmem:[#allocation4 + $0x8] sm:$0xff]
    %v108 = vld [vmem:[#allocation4 + $0x10] sm:$0xff]
    %v109 = vld [vmem:[#allocation4 + $0x18] sm:$0xff]
    %v110 = vld [vmem:[#allocation4 + $0x20] sm:$0xff]
    %v111 = vld [vmem:[#allocation4 + $0x28] sm:$0xff]
    %v112 = vld [vmem:[#allocation4 + $0x30] sm:$0xff]
    %v113 = vld [vmem:[#allocation4 + $0x38] sm:$0xff]
    %v114 = vld [vmem:[#allocation4 + $0x40] sm:$0xff]
    %v115 = vld [vmem:[#allocation4 + $0x48] sm:$0xff]
    %v116 = vld [vmem:[#allocation4 + $0x50] sm:$0xff]
    %v117 = vld [vmem:[#allocation4 + $0x58] sm:$0xff]
    %vm118 = vcmask 261120
    %v120 = vsel %vm118, %v104, 0
    %v123 = vsel %vm118, %v105, 0
    %125 = vmatprep.subr.mxu0 %v107
    %126 = vmatpush1.msra.mxu0 %v106
    %127 = vmatprep.subr.mxu0 %v110
    %128 = vmatpush1.msra.mxu0 %v109
    %129 = vmatprep.subr.mxu0 %v113
    %130 = vmatpush1.msra.mxu0 %v112
    %131 = vmatprep.subr.mxu0 %v116
    %132 = vmatpush1.msra.mxu0 %v115
    %133 = vmatprep.subr.mxu0 0.0
    %134 = vmatpush1.msra.mxu0 0.0
    %135 = vmatprep.subr.mxu0 0.0
    %136 = vmatpush1.msra.mxu0 0.0
    %137 = vmatprep.subr.mxu0 0.0
    %138 = vmatpush1.msra.mxu0 0.0
    %139 = vmatprep.subr.mxu0 0.0
    %140 = vmatpush1.msra.mxu0 0.0
    %141 = vmatprep.subr.mxu0 0.0
    %142 = vmatpush1.msra.mxu0 0.0
    %143 = vmatprep.subr.mxu0 0.0
    %144 = vmatpush1.msra.mxu0 0.0
    %145 = vmatprep.subr.mxu0 0.0
    %146 = vmatpush1.msra.mxu0 0.0
    %147 = vmatprep.subr.mxu0 0.0
    %148 = vmatpush1.msra.mxu0 0.0
    %149 = vmatprep.subr.mxu0 0.0
    %150 = vmatpush1.msra.mxu0 0.0
    %151 = vmatprep.subr.mxu0 0.0
    %152 = vmatpush1.msra.mxu0 0.0
    %153 = vmatprep.subr.mxu0 0.0
    %154 = vmatpush1.msra.mxu0 0.0
    %155 = vmatprep.subr.mxu0 0.0
    %156 = vmatpush1.msra.mxu0 0.0
    %157 = vmatprep.subr.mxu0 0.0
    %158 = vmatpush1.msra.mxu0 0.0
    %159 = vmatprep.subr.mxu0 0.0
    %160 = vmatpush1.msra.mxu0 0.0
    %161 = vmatprep.subr.mxu0 0.0
    %162 = vmatpush1.msra.mxu0 0.0
    %163 = vmatprep.subr.mxu0 0.0
    %164 = vmatpush1.msra.mxu0 0.0
    %165 = vmatprep.subr.mxu0 0.0
    %166 = vmatpush1.msra.mxu0 0.0
    %167 = vmatprep.subr.mxu0 0.0
    %168 = vmatpush1.msra.mxu0 0.0
    %169 = vmatprep.subr.mxu0 0.0
    %170 = vmatpush1.msra.mxu0 0.0
    %171 = vmatprep.subr.mxu0 0.0
    %172 = vmatpush1.msra.mxu0 0.0
    %173 = vmatprep.subr.mxu0 0.0
    %174 = vmatpush1.msra.mxu0 0.0
    %175 = vmatprep.subr.mxu0 0.0
    %176 = vmatpush1.msra.mxu0 0.0
    %177 = vmatprep.subr.mxu0 0.0
    %178 = vmatpush1.msra.mxu0 0.0
    %179 = vmatprep.subr.mxu0 0.0
    %180 = vmatpush1.msra.mxu0 0.0
    %181 = vmatprep.subr.mxu0 0.0
    %182 = vmatpush1.msra.mxu0 0.0
    %183 = vmatprep.subr.mxu0 0.0
    %184 = vmatpush1.msra.mxu0 0.0
    %185 = vmatprep.subr.mxu0 0.0
    %186 = vmatpush1.msra.mxu0 0.0
    %187 = vmatprep.subr.mxu0 0.0
    %188 = vmatpush1.msra.mxu0 0.0
    %189 = vmatprep.mubr.f32.mxu0 0.0
    %190 = vmatmul.mubr.f32.gmra.mrb[0].mxu0 %v120
    %v191 = vpop.f32.mrb[0].mxu0
    %v192 = vadd.f32 0.0, %v191
    %v193 = vpop.f32.mrb[0].mxu0
    %v194 = vadd.f32 0.0, %v193
    %195 = vmatprep.mubr.f32.mxu0 0.0
    %196 = vmatmul.mubr.f32.gmra.mrb[0].mxu0 %v123
    %v197 = vpop.f32.mrb[0].mxu0
    %v198 = vadd.f32 0.0, %v197
    %v199 = vpop.f32.mrb[0].mxu0
    %v200 = vadd.f32 0.0, %v199
    %201 = vdwg.mxu0
    %202 = vmatprep.subr.mxu0 0.0
    %203 = vmatpush1.msra.mxu0 %v108
    %204 = vmatprep.subr.mxu0 0.0
    %205 = vmatpush1.msra.mxu0 %v111
    %206 = vmatprep.subr.mxu0 0.0
    %207 = vmatpush1.msra.mxu0 %v114
    %208 = vmatprep.subr.mxu0 0.0
    %209 = vmatpush1.msra.mxu0 %v117
    %210 = vmatprep.subr.mxu0 0.0
    %211 = vmatpush1.msra.mxu0 0.0
    %212 = vmatprep.subr.mxu0 0.0
    %213 = vmatpush1.msra.mxu0 0.0
    %214 = vmatprep.subr.mxu0 0.0
    %215 = vmatpush1.msra.mxu0 0.0
    %216 = vmatprep.subr.mxu0 0.0
    %217 = vmatpush1.msra.mxu0 0.0
    %218 = vmatprep.subr.mxu0 0.0
    %219 = vmatpush1.msra.mxu0 0.0
    %220 = vmatprep.subr.mxu0 0.0
    %221 = vmatpush1.msra.mxu0 0.0
    %222 = vmatprep.subr.mxu0 0.0
    %223 = vmatpush1.msra.mxu0 0.0
    %224 = vmatprep.subr.mxu0 0.0
    %225 = vmatpush1.msra.mxu0 0.0
    %226 = vmatprep.subr.mxu0 0.0
    %227 = vmatpush1.msra.mxu0 0.0
    %228 = vmatprep.subr.mxu0 0.0
    %229 = vmatpush1.msra.mxu0 0.0
    %230 = vmatprep.subr.mxu0 0.0
    %231 = vmatpush1.msra.mxu0 0.0
    %232 = vmatprep.subr.mxu0 0.0
    %233 = vmatpush1.msra.mxu0 0.0
    %234 = vmatprep.subr.mxu0 0.0
    %235 = vmatpush1.msra.mxu0 0.0
    %236 = vmatprep.subr.mxu0 0.0
    %237 = vmatpush1.msra.mxu0 0.0
    %238 = vmatprep.subr.mxu0 0.0
    %239 = vmatpush1.msra.mxu0 0.0
    %240 = vmatprep.subr.mxu0 0.0
    %241 = vmatpush1.msra.mxu0 0.0
    %242 = vmatprep.subr.mxu0 0.0
    %243 = vmatpush1.msra.mxu0 0.0
    %244 = vmatprep.subr.mxu0 0.0
    %245 = vmatpush1.msra.mxu0 0.0
    %246 = vmatprep.subr.mxu0 0.0
    %247 = vmatpush1.msra.mxu0 0.0
    %248 = vmatprep.subr.mxu0 0.0
    %249 = vmatpush1.msra.mxu0 0.0
    %250 = vmatprep.subr.mxu0 0.0
    %251 = vmatpush1.msra.mxu0 0.0
    %252 = vmatprep.subr.mxu0 0.0
    %253 = vmatpush1.msra.mxu0 0.0
    %254 = vmatprep.subr.mxu0 0.0
    %255 = vmatpush1.msra.mxu0 0.0
    %256 = vmatprep.subr.mxu0 0.0
    %257 = vmatpush1.msra.mxu0 0.0
    %258 = vmatprep.subr.mxu0 0.0
    %259 = vmatpush1.msra.mxu0 0.0
    %260 = vmatprep.subr.mxu0 0.0
    %261 = vmatpush1.msra.mxu0 0.0
    %262 = vmatprep.subr.mxu0 0.0
    %263 = vmatpush1.msra.mxu0 0.0
    %264 = vmatprep.subr.mxu0 0.0
    %265 = vmatpush1.msra.mxu0 0.0
    %266 = vmatprep.mubr.f32.mxu0 0.0
    %267 = vmatmul.mubr.f32.gmra.mrb[0].mxu0 %v120
    %v268 = vpop.f32.mrb[0].mxu0
    %v269 = vadd.f32 0.0, %v268
    %v270 = vpop.f32.mrb[0].mxu0
    %271 = vmatprep.mubr.f32.mxu0 0.0
    %272 = vmatmul.mubr.f32.gmra.mrb[0].mxu0 %v123
    %v273 = vpop.f32.mrb[0].mxu0
    %v274 = vadd.f32 0.0, %v273
    %v275 = vpop.f32.mrb[0].mxu0
    %276 = vdwg.mxu0
    %v278 = vlaneseq
    %v279 = vshrl.u32 %v278, 7
    %v280 = vsub.s32 0, %v279
    %v281 = vrot.slane %v103, %v280
    %v282 = vlaneseq
    %v283 = vshrl.u32 %v282, 7
    %v284 = vsub.s32 1, %v283
    %v285 = vrot.slane %v103, %v284
    %v286 = vlaneseq
    %v287 = vshrl.u32 %v286, 7
    %v288 = vsub.s32 2, %v287
    %v289 = vrot.slane %v103, %v288
    %v293 = vadd.f32 %v281, %v192
    %v294 = vadd.f32 %v285, %v194
    %v295 = vadd.f32 %v289, %v269
    %v296 = vadd.f32 %v281, %v198
    %v297 = vadd.f32 %v285, %v200
    %v298 = vadd.f32 %v289, %v274
    %v299 = vld [vmem:[%s0 + $0x1] sm:$0xff]
    %v300 = vld [vmem:[%s0 + $0x9] sm:$0x3f]
    %s301 = scalar_lea.vmem [#allocation4], 96
    %v302 = vld [vmem:[%s301] sm:$0xff]
    %v303 = vld [vmem:[%s301 + $0x8] sm:$0xff]
    %v304 = vld [vmem:[%s301 + $0x10] sm:$0xff]
    %v305 = vld [vmem:[%s301 + $0x18] sm:$0xff]
    %v306 = vld [vmem:[%s301 + $0x20] sm:$0xff]
    %v307 = vld [vmem:[%s301 + $0x28] sm:$0xff]
    %v308 = vld [vmem:[%s301 + $0x30] sm:$0xff]
    %v309 = vld [vmem:[%s301 + $0x38] sm:$0xff]
    %v310 = vld [vmem:[%s301 + $0x40] sm:$0xff]
    %v311 = vld [vmem:[%s301 + $0x48] sm:$0xff]
    %v312 = vld [vmem:[%s301 + $0x50] sm:$0xff]
    %v313 = vld [vmem:[%s301 + $0x58] sm:$0xff]
    %v315 = vsel %vm118, %v299, 0
    %v318 = vsel %vm118, %v300, 0
    %320 = vmatprep.subr.mxu0 %v303
    %321 = vmatpush1.msra.mxu0 %v302
    %322 = vmatprep.subr.mxu0 %v306
    %323 = vmatpush1.msra.mxu0 %v305
    %324 = vmatprep.subr.mxu0 %v309
    %325 = vmatpush1.msra.mxu0 %v308
    %326 = vmatprep.subr.mxu0 %v312
    %327 = vmatpush1.msra.mxu0 %v311
    %328 = vmatprep.subr.mxu0 0.0
    %329 = vmatpush1.msra.mxu0 0.0
    %330 = vmatprep.subr.mxu0 0.0
    %331 = vmatpush1.msra.mxu0 0.0
    %332 = vmatprep.subr.mxu0 0.0
    %333 = vmatpush1.msra.mxu0 0.0
    %334 = vmatprep.subr.mxu0 0.0
    %335 = vmatpush1.msra.mxu0 0.0
    %336 = vmatprep.subr.mxu0 0.0
    %337 = vmatpush1.msra.mxu0 0.0
    %338 = vmatprep.subr.mxu0 0.0
    %339 = vmatpush1.msra.mxu0 0.0
    %340 = vmatprep.subr.mxu0 0.0
    %341 = vmatpush1.msra.mxu0 0.0
    %342 = vmatprep.subr.mxu0 0.0
    %343 = vmatpush1.msra.mxu0 0.0
    %344 = vmatprep.subr.mxu0 0.0
    %345 = vmatpush1.msra.mxu0 0.0
    %346 = vmatprep.subr.mxu0 0.0
    %347 = vmatpush1.msra.mxu0 0.0
    %348 = vmatprep.subr.mxu0 0.0
    %349 = vmatpush1.msra.mxu0 0.0
    %350 = vmatprep.subr.mxu0 0.0
    %351 = vmatpush1.msra.mxu0 0.0
    %352 = vmatprep.subr.mxu0 0.0
    %353 = vmatpush1.msra.mxu0 0.0
    %354 = vmatprep.subr.mxu0 0.0
    %355 = vmatpush1.msra.mxu0 0.0
    %356 = vmatprep.subr.mxu0 0.0
    %357 = vmatpush1.msra.mxu0 0.0
    %358 = vmatprep.subr.mxu0 0.0
    %359 = vmatpush1.msra.mxu0 0.0
    %360 = vmatprep.subr.mxu0 0.0
    %361 = vmatpush1.msra.mxu0 0.0
    %362 = vmatprep.subr.mxu0 0.0
    %363 = vmatpush1.msra.mxu0 0.0
    %364 = vmatprep.subr.mxu0 0.0
    %365 = vmatpush1.msra.mxu0 0.0
    %366 = vmatprep.subr.mxu0 0.0
    %367 = vmatpush1.msra.mxu0 0.0
    %368 = vmatprep.subr.mxu0 0.0
    %369 = vmatpush1.msra.mxu0 0.0
    %370 = vmatprep.subr.mxu0 0.0
    %371 = vmatpush1.msra.mxu0 0.0
    %372 = vmatprep.subr.mxu0 0.0
    %373 = vmatpush1.msra.mxu0 0.0
    %374 = vmatprep.subr.mxu0 0.0
    %375 = vmatpush1.msra.mxu0 0.0
    %376 = vmatprep.subr.mxu0 0.0
    %377 = vmatpush1.msra.mxu0 0.0
    %378 = vmatprep.subr.mxu0 0.0
    %379 = vmatpush1.msra.mxu0 0.0
    %380 = vmatprep.subr.mxu0 0.0
    %381 = vmatpush1.msra.mxu0 0.0
    %382 = vmatprep.subr.mxu0 0.0
    %383 = vmatpush1.msra.mxu0 0.0
    %384 = vmatprep.mubr.f32.mxu0 0.0
    %385 = vmatmul.mubr.f32.gmra.mrb[0].mxu0 %v315
    %v386 = vpop.f32.mrb[0].mxu0
    %v387 = vadd.f32 0.0, %v386
    %v388 = vpop.f32.mrb[0].mxu0
    %v389 = vadd.f32 0.0, %v388
    %390 = vmatprep.mubr.f32.mxu0 0.0
    %391 = vmatmul.mubr.f32.gmra.mrb[0].mxu0 %v318
    %v392 = vpop.f32.mrb[0].mxu0
    %v393 = vadd.f32 0.0, %v392
    %v394 = vpop.f32.mrb[0].mxu0
    %v395 = vadd.f32 0.0, %v394
    %396 = vdwg.mxu0
    %397 = vmatprep.subr.mxu0 0.0
    %398 = vmatpush1.msra.mxu0 %v304
    %399 = vmatprep.subr.mxu0 0.0
    %400 = vmatpush1.msra.mxu0 %v307
    %401 = vmatprep.subr.mxu0 0.0
    %402 = vmatpush1.msra.mxu0 %v310
    %403 = vmatprep.subr.mxu0 0.0
    %404 = vmatpush1.msra.mxu0 %v313
    %405 = vmatprep.subr.mxu0 0.0
    %406 = vmatpush1.msra.mxu0 0.0
    %407 = vmatprep.subr.mxu0 0.0
    %408 = vmatpush1.msra.mxu0 0.0
    %409 = vmatprep.subr.mxu0 0.0
    %410 = vmatpush1.msra.mxu0 0.0
    %411 = vmatprep.subr.mxu0 0.0
    %412 = vmatpush1.msra.mxu0 0.0
    %413 = vmatprep.subr.mxu0 0.0
    %414 = vmatpush1.msra.mxu0 0.0
    %415 = vmatprep.subr.mxu0 0.0
    %416 = vmatpush1.msra.mxu0 0.0
    %417 = vmatprep.subr.mxu0 0.0
    %418 = vmatpush1.msra.mxu0 0.0
    %419 = vmatprep.subr.mxu0 0.0
    %420 = vmatpush1.msra.mxu0 0.0
    %421 = vmatprep.subr.mxu0 0.0
    %422 = vmatpush1.msra.mxu0 0.0
    %423 = vmatprep.subr.mxu0 0.0
    %424 = vmatpush1.msra.mxu0 0.0
    %425 = vmatprep.subr.mxu0 0.0
    %426 = vmatpush1.msra.mxu0 0.0
    %427 = vmatprep.subr.mxu0 0.0
    %428 = vmatpush1.msra.mxu0 0.0
    %429 = vmatprep.subr.mxu0 0.0
    %430 = vmatpush1.msra.mxu0 0.0
    %431 = vmatprep.subr.mxu0 0.0
    %432 = vmatpush1.msra.mxu0 0.0
    %433 = vmatprep.subr.mxu0 0.0
    %434 = vmatpush1.msra.mxu0 0.0
    %435 = vmatprep.subr.mxu0 0.0
    %436 = vmatpush1.msra.mxu0 0.0
    %437 = vmatprep.subr.mxu0 0.0
    %438 = vmatpush1.msra.mxu0 0.0
    %439 = vmatprep.subr.mxu0 0.0
    %440 = vmatpush1.msra.mxu0 0.0
    %441 = vmatprep.subr.mxu0 0.0
    %442 = vmatpush1.msra.mxu0 0.0
    %443 = vmatprep.subr.mxu0 0.0
    %444 = vmatpush1.msra.mxu0 0.0
    %445 = vmatprep.subr.mxu0 0.0
    %446 = vmatpush1.msra.mxu0 0.0
    %447 = vmatprep.subr.mxu0 0.0
    %448 = vmatpush1.msra.mxu0 0.0
    %449 = vmatprep.subr.mxu0 0.0
    %450 = vmatpush1.msra.mxu0 0.0
    %451 = vmatprep.subr.mxu0 0.0
    %452 = vmatpush1.msra.mxu0 0.0
    %453 = vmatprep.subr.mxu0 0.0
    %454 = vmatpush1.msra.mxu0 0.0
    %455 = vmatprep.subr.mxu0 0.0
    %456 = vmatpush1.msra.mxu0 0.0
    %457 = vmatprep.subr.mxu0 0.0
    %458 = vmatpush1.msra.mxu0 0.0
    %459 = vmatprep.subr.mxu0 0.0
    %460 = vmatpush1.msra.mxu0 0.0
    %461 = vmatprep.mubr.f32.mxu0 0.0
    %462 = vmatmul.mubr.f32.gmra.mrb[0].mxu0 %v315
    %v463 = vpop.f32.mrb[0].mxu0
    %v464 = vadd.f32 0.0, %v463
    %v465 = vpop.f32.mrb[0].mxu0
    %466 = vmatprep.mubr.f32.mxu0 0.0
    %467 = vmatmul.mubr.f32.gmra.mrb[0].mxu0 %v318
    %v468 = vpop.f32.mrb[0].mxu0
    %v469 = vadd.f32 0.0, %v468
    %v470 = vpop.f32.mrb[0].mxu0
    %471 = vdwg.mxu0
    %v472 = vadd.f32 %v293, %v387
    %v473 = vadd.f32 %v294, %v389
    %v474 = vadd.f32 %v295, %v464
    %v475 = vadd.f32 %v296, %v393
    %v476 = vadd.f32 %v297, %v395
    %v477 = vadd.f32 %v298, %v469
    %v478 = vld [vmem:[%s0 + $0x2] sm:$0xff]
    %v479 = vld [vmem:[%s0 + $0xa] sm:$0x3f]
    %s480 = scalar_lea.vmem [#allocation4], 192
    %v481 = vld [vmem:[%s480] sm:$0xff]
    %v482 = vld [vmem:[%s480 + $0x8] sm:$0xff]
    %v483 = vld [vmem:[%s480 + $0x10] sm:$0xff]
    %v484 = vld [vmem:[%s480 + $0x18] sm:$0xff]
    %v485 = vld [vmem:[%s480 + $0x20] sm:$0xff]
    %v486 = vld [vmem:[%s480 + $0x28] sm:$0xff]
    %v487 = vld [vmem:[%s480 + $0x30] sm:$0xff]
    %v488 = vld [vmem:[%s480 + $0x38] sm:$0xff]
    %v489 = vld [vmem:[%s480 + $0x40] sm:$0xff]
    %v490 = vld [vmem:[%s480 + $0x48] sm:$0xff]
    %v491 = vld [vmem:[%s480 + $0x50] sm:$0xff]
    %v492 = vld [vmem:[%s480 + $0x58] sm:$0xff]
    %v494 = vsel %vm118, %v478, 0
    %v497 = vsel %vm118, %v479, 0
    %499 = vmatprep.subr.mxu0 %v482
    %500 = vmatpush1.msra.mxu0 %v481
    %501 = vmatprep.subr.mxu0 %v485
    %502 = vmatpush1.msra.mxu0 %v484
    %503 = vmatprep.subr.mxu0 %v488
    %504 = vmatpush1.msra.mxu0 %v487
    %505 = vmatprep.subr.mxu0 %v491
    %506 = vmatpush1.msra.mxu0 %v490
    %507 = vmatprep.subr.mxu0 0.0
    %508 = vmatpush1.msra.mxu0 0.0
    %509 = vmatprep.subr.mxu0 0.0
    %510 = vmatpush1.msra.mxu0 0.0
    %511 = vmatprep.subr.mxu0 0.0
    %512 = vmatpush1.msra.mxu0 0.0
    %513 = vmatprep.subr.mxu0 0.0
    %514 = vmatpush1.msra.mxu0 0.0
    %515 = vmatprep.subr.mxu0 0.0
    %516 = vmatpush1.msra.mxu0 0.0
    %517 = vmatprep.subr.mxu0 0.0
    %518 = vmatpush1.msra.mxu0 0.0
    %519 = vmatprep.subr.mxu0 0.0
    %520 = vmatpush1.msra.mxu0 0.0
    %521 = vmatprep.subr.mxu0 0.0
    %522 = vmatpush1.msra.mxu0 0.0
    %523 = vmatprep.subr.mxu0 0.0
    %524 = vmatpush1.msra.mxu0 0.0
    %525 = vmatprep.subr.mxu0 0.0
    %526 = vmatpush1.msra.mxu0 0.0
    %527 = vmatprep.subr.mxu0 0.0
    %528 = vmatpush1.msra.mxu0 0.0
    %529 = vmatprep.subr.mxu0 0.0
    %530 = vmatpush1.msra.mxu0 0.0
    %531 = vmatprep.subr.mxu0 0.0
    %532 = vmatpush1.msra.mxu0 0.0
    %533 = vmatprep.subr.mxu0 0.0
    %534 = vmatpush1.msra.mxu0 0.0
    %535 = vmatprep.subr.mxu0 0.0
    %536 = vmatpush1.msra.mxu0 0.0
    %537 = vmatprep.subr.mxu0 0.0
    %538 = vmatpush1.msra.mxu0 0.0
    %539 = vmatprep.subr.mxu0 0.0
    %540 = vmatpush1.msra.mxu0 0.0
    %541 = vmatprep.subr.mxu0 0.0
    %542 = vmatpush1.msra.mxu0 0.0
    %543 = vmatprep.subr.mxu0 0.0
    %544 = vmatpush1.msra.mxu0 0.0
    %545 = vmatprep.subr.mxu0 0.0
    %546 = vmatpush1.msra.mxu0 0.0
    %547 = vmatprep.subr.mxu0 0.0
    %548 = vmatpush1.msra.mxu0 0.0
    %549 = vmatprep.subr.mxu0 0.0
    %550 = vmatpush1.msra.mxu0 0.0
    %551 = vmatprep.subr.mxu0 0.0
    %552 = vmatpush1.msra.mxu0 0.0
    %553 = vmatprep.subr.mxu0 0.0
    %554 = vmatpush1.msra.mxu0 0.0
    %555 = vmatprep.subr.mxu0 0.0
    %556 = vmatpush1.msra.mxu0 0.0
    %557 = vmatprep.subr.mxu0 0.0
    %558 = vmatpush1.msra.mxu0 0.0
    %559 = vmatprep.subr.mxu0 0.0
    %560 = vmatpush1.msra.mxu0 0.0
    %561 = vmatprep.subr.mxu0 0.0
    %562 = vmatpush1.msra.mxu0 0.0
    %563 = vmatprep.mubr.f32.mxu0 0.0
    %564 = vmatmul.mubr.f32.gmra.mrb[0].mxu0 %v494
    %v565 = vpop.f32.mrb[0].mxu0
    %v566 = vadd.f32 0.0, %v565
    %v567 = vpop.f32.mrb[0].mxu0
    %v568 = vadd.f32 0.0, %v567
    %569 = vmatprep.mubr.f32.mxu0 0.0
    %570 = vmatmul.mubr.f32.gmra.mrb[0].mxu0 %v497
    %v571 = vpop.f32.mrb[0].mxu0
    %v572 = vadd.f32 0.0, %v571
    %v573 = vpop.f32.mrb[0].mxu0
    %v574 = vadd.f32 0.0, %v573
    %575 = vdwg.mxu0
    %576 = vmatprep.subr.mxu0 0.0
    %577 = vmatpush1.msra.mxu0 %v483
    %578 = vmatprep.subr.mxu0 0.0
    %579 = vmatpush1.msra.mxu0 %v486
    %580 = vmatprep.subr.mxu0 0.0
    %581 = vmatpush1.msra.mxu0 %v489
    %582 = vmatprep.subr.mxu0 0.0
    %583 = vmatpush1.msra.mxu0 %v492
    %584 = vmatprep.subr.mxu0 0.0
    %585 = vmatpush1.msra.mxu0 0.0
    %586 = vmatprep.subr.mxu0 0.0
    %587 = vmatpush1.msra.mxu0 0.0
    %588 = vmatprep.subr.mxu0 0.0
    %589 = vmatpush1.msra.mxu0 0.0
    %590 = vmatprep.subr.mxu0 0.0
    %591 = vmatpush1.msra.mxu0 0.0
    %592 = vmatprep.subr.mxu0 0.0
    %593 = vmatpush1.msra.mxu0 0.0
    %594 = vmatprep.subr.mxu0 0.0
    %595 = vmatpush1.msra.mxu0 0.0
    %596 = vmatprep.subr.mxu0 0.0
    %597 = vmatpush1.msra.mxu0 0.0
    %598 = vmatprep.subr.mxu0 0.0
    %599 = vmatpush1.msra.mxu0 0.0
    %600 = vmatprep.subr.mxu0 0.0
    %601 = vmatpush1.msra.mxu0 0.0
    %602 = vmatprep.subr.mxu0 0.0
    %603 = vmatpush1.msra.mxu0 0.0
    %604 = vmatprep.subr.mxu0 0.0
    %605 = vmatpush1.msra.mxu0 0.0
    %606 = vmatprep.subr.mxu0 0.0
    %607 = vmatpush1.msra.mxu0 0.0
    %608 = vmatprep.subr.mxu0 0.0
    %609 = vmatpush1.msra.mxu0 0.0
    %610 = vmatprep.subr.mxu0 0.0
    %611 = vmatpush1.msra.mxu0 0.0
    %612 = vmatprep.subr.mxu0 0.0
    %613 = vmatpush1.msra.mxu0 0.0
    %614 = vmatprep.subr.mxu0 0.0
    %615 = vmatpush1.msra.mxu0 0.0
    %616 = vmatprep.subr.mxu0 0.0
    %617 = vmatpush1.msra.mxu0 0.0
    %618 = vmatprep.subr.mxu0 0.0
    %619 = vmatpush1.msra.mxu0 0.0
    %620 = vmatprep.subr.mxu0 0.0
    %621 = vmatpush1.msra.mxu0 0.0
    %622 = vmatprep.subr.mxu0 0.0
    %623 = vmatpush1.msra.mxu0 0.0
    %624 = vmatprep.subr.mxu0 0.0
    %625 = vmatpush1.msra.mxu0 0.0
    %626 = vmatprep.subr.mxu0 0.0
    %627 = vmatpush1.msra.mxu0 0.0
    %628 = vmatprep.subr.mxu0 0.0
    %629 = vmatpush1.msra.mxu0 0.0
    %630 = vmatprep.subr.mxu0 0.0
    %631 = vmatpush1.msra.mxu0 0.0
    %632 = vmatprep.subr.mxu0 0.0
    %633 = vmatpush1.msra.mxu0 0.0
    %634 = vmatprep.subr.mxu0 0.0
    %635 = vmatpush1.msra.mxu0 0.0
    %636 = vmatprep.subr.mxu0 0.0
    %637 = vmatpush1.msra.mxu0 0.0
    %638 = vmatprep.subr.mxu0 0.0
    %639 = vmatpush1.msra.mxu0 0.0
    %640 = vmatprep.mubr.f32.mxu0 0.0
    %641 = vmatmul.mubr.f32.gmra.mrb[0].mxu0 %v494
    %v642 = vpop.f32.mrb[0].mxu0
    %v643 = vadd.f32 0.0, %v642
    %v644 = vpop.f32.mrb[0].mxu0
    %645 = vmatprep.mubr.f32.mxu0 0.0
    %646 = vmatmul.mubr.f32.gmra.mrb[0].mxu0 %v497
    %v647 = vpop.f32.mrb[0].mxu0
    %v648 = vadd.f32 0.0, %v647
    %v649 = vpop.f32.mrb[0].mxu0
    %650 = vdwg.mxu0
    %v651 = vadd.f32 %v472, %v566
    %v652 = vadd.f32 %v473, %v568
    %v653 = vadd.f32 %v474, %v643
    %v654 = vadd.f32 %v475, %v572
    %v655 = vadd.f32 %v476, %v574
    %v656 = vadd.f32 %v477, %v648
    %v657 = vxor.u32 %v652, 2147483648
    %v658 = vxor.u32 %v655, 2147483648
    %v659 = vmul.f32 %v657, 1.442695
    %v660 = vpow.pop %v659
    %v661 = vmul.f32 %v658, 1.442695
    %v662 = vpow.pop %v661
    %v663 = vadd.f32 %v660, 1.0
    %v664 = vadd.f32 %v662, 1.0
    %v665 = vrcp.pop %v663
    %v666 = vmul.f32 1.0, %v665
    %v667 = vrcp.pop %v664
    %v668 = vmul.f32 1.0, %v667
    %v669 = vadd.f32 %v651, %v666
    %v670 = vadd.f32 %v654, %v668
    %v671 = vadd.f32 %v669, %v653
    %v672 = vadd.f32 %v670, %v656
    %v673 = vmax.f32 %v671, 0.0
    %v674 = vmax.f32 %v672, 0.0
    %v675 = vld [vmem:[#allocation6] sm:$0xff]
    %v676 = vld [vmem:[#allocation6 + $0x8] sm:$0xff]
    %v677 = vld [vmem:[#allocation6 + $0x10] sm:$0xff]
    %v678 = vld [vmem:[#allocation6 + $0x18] sm:$0xff]
    %v679 = vld [vmem:[#allocation6 + $0x20] sm:$0xff]
    %v680 = vld [vmem:[#allocation6 + $0x28] sm:$0xff]
    %v681 = vld [vmem:[#allocation6 + $0x30] sm:$0xff]
    %v682 = vld [vmem:[#allocation6 + $0x38] sm:$0xff]
    %v683 = vld [vmem:[#allocation6 + $0x40] sm:$0xff]
    %v684 = vld [vmem:[#allocation6 + $0x48] sm:$0xff]
    %v685 = vld [vmem:[#allocation6 + $0x50] sm:$0xff]
    %v686 = vld [vmem:[#allocation6 + $0x58] sm:$0xff]
    %v687 = vld [vmem:[#allocation6 + $0x60] sm:$0xff]
    %v688 = vld [vmem:[#allocation6 + $0x68] sm:$0xff]
    %v689 = vld [vmem:[#allocation6 + $0x70] sm:$0xff]
    %v690 = vld [vmem:[#allocation6 + $0x78] sm:$0xff]
    %691 = vmatprep.subr.mxu0 0.0
    %692 = vmatpush1.msra.mxu0 %v675
    %693 = vmatprep.subr.mxu0 0.0
    %694 = vmatpush1.msra.mxu0 %v676
    %695 = vmatprep.subr.mxu0 0.0
    %696 = vmatpush1.msra.mxu0 %v677
    %697 = vmatprep.subr.mxu0 0.0
    %698 = vmatpush1.msra.mxu0 %v678
    %699 = vmatprep.subr.mxu0 0.0
    %700 = vmatpush1.msra.mxu0 %v679
    %701 = vmatprep.subr.mxu0 0.0
    %702 = vmatpush1.msra.mxu0 %v680
    %703 = vmatprep.subr.mxu0 0.0
    %704 = vmatpush1.msra.mxu0 %v681
    %705 = vmatprep.subr.mxu0 0.0
    %706 = vmatpush1.msra.mxu0 %v682
    %707 = vmatprep.subr.mxu0 0.0
    %708 = vmatpush1.msra.mxu0 %v683
    %709 = vmatprep.subr.mxu0 0.0
    %710 = vmatpush1.msra.mxu0 %v684
    %711 = vmatprep.subr.mxu0 0.0
    %712 = vmatpush1.msra.mxu0 %v685
    %713 = vmatprep.subr.mxu0 0.0
    %714 = vmatpush1.msra.mxu0 %v686
    %715 = vmatprep.subr.mxu0 0.0
    %716 = vmatpush1.msra.mxu0 %v687
    %717 = vmatprep.subr.mxu0 0.0
    %718 = vmatpush1.msra.mxu0 %v688
    %719 = vmatprep.subr.mxu0 0.0
    %720 = vmatpush1.msra.mxu0 %v689
    %721 = vmatprep.subr.mxu0 0.0
    %722 = vmatpush1.msra.mxu0 %v690
    %723 = vmatprep.subr.mxu0 0.0
    %724 = vmatpush1.msra.mxu0 0.0
    %725 = vmatprep.subr.mxu0 0.0
    %726 = vmatpush1.msra.mxu0 0.0
    %727 = vmatprep.subr.mxu0 0.0
    %728 = vmatpush1.msra.mxu0 0.0
    %729 = vmatprep.subr.mxu0 0.0
    %730 = vmatpush1.msra.mxu0 0.0
    %731 = vmatprep.subr.mxu0 0.0
    %732 = vmatpush1.msra.mxu0 0.0
    %733 = vmatprep.subr.mxu0 0.0
    %734 = vmatpush1.msra.mxu0 0.0
    %735 = vmatprep.subr.mxu0 0.0
    %736 = vmatpush1.msra.mxu0 0.0
    %737 = vmatprep.subr.mxu0 0.0
    %738 = vmatpush1.msra.mxu0 0.0
    %739 = vmatprep.subr.mxu0 0.0
    %740 = vmatpush1.msra.mxu0 0.0
    %741 = vmatprep.subr.mxu0 0.0
    %742 = vmatpush1.msra.mxu0 0.0
    %743 = vmatprep.subr.mxu0 0.0
    %744 = vmatpush1.msra.mxu0 0.0
    %745 = vmatprep.subr.mxu0 0.0
    %746 = vmatpush1.msra.mxu0 0.0
    %747 = vmatprep.subr.mxu0 0.0
    %748 = vmatpush1.msra.mxu0 0.0
    %749 = vmatprep.subr.mxu0 0.0
    %750 = vmatpush1.msra.mxu0 0.0
    %751 = vmatprep.subr.mxu0 0.0
    %752 = vmatpush1.msra.mxu0 0.0
    %753 = vmatprep.subr.mxu0 0.0
    %754 = vmatpush1.msra.mxu0 0.0
    %755 = vmatprep.mubr.f32.mxu0 0.0
    %756 = vmatmul.mubr.f32.gmra.mrb[0].mxu0 %v673
    %v757 = vpop.f32.mrb[0].mxu0
    %v758 = vadd.f32 0.0, %v757
    %v759 = vpop.f32.mrb[0].mxu0
    %760 = vmatprep.mubr.f32.mxu0 0.0
    %761 = vmatmul.mubr.f32.gmra.mrb[0].mxu0 %v674
    %v762 = vpop.f32.mrb[0].mxu0
    %v763 = vadd.f32 0.0, %v762
    %v764 = vpop.f32.mrb[0].mxu0
    %765 = vdwg.mxu0
    %v766 = vld [vmem:[#allocation8] sm:$0xff]
    %v767 = vld [vmem:[#allocation8 + $0x8] sm:$0xff]
    %v768 = vld [vmem:[#allocation8 + $0x10] sm:$0xff]
    %v769 = vld [vmem:[#allocation8 + $0x18] sm:$0xff]
    %v770 = vld [vmem:[#allocation8 + $0x20] sm:$0xff]
    %v771 = vld [vmem:[#allocation8 + $0x28] sm:$0xff]
    %v772 = vld [vmem:[#allocation8 + $0x30] sm:$0xff]
    %v773 = vld [vmem:[#allocation8 + $0x38] sm:$0xff]
    %v774 = vld [vmem:[#allocation8 + $0x40] sm:$0xff]
    %v775 = vld [vmem:[#allocation8 + $0x48] sm:$0xff]
    %v776 = vld [vmem:[#allocation8 + $0x50] sm:$0xff]
    %v777 = vld [vmem:[#allocation8 + $0x58] sm:$0xff]
    %v778 = vld [vmem:[#allocation8 + $0x60] sm:$0xff]
    %v779 = vld [vmem:[#allocation8 + $0x68] sm:$0xff]
    %v780 = vld [vmem:[#allocation8 + $0x70] sm:$0xff]
    %v781 = vld [vmem:[#allocation8 + $0x78] sm:$0xff]
    %782 = vmatprep.subr.mxu0 0.0
    %783 = vmatpush1.msra.mxu0 %v766
    %784 = vmatprep.subr.mxu0 0.0
    %785 = vmatpush1.msra.mxu0 %v767
    %786 = vmatprep.subr.mxu0 0.0
    %787 = vmatpush1.msra.mxu0 %v768
    %788 = vmatprep.subr.mxu0 0.0
    %789 = vmatpush1.msra.mxu0 %v769
    %790 = vmatprep.subr.mxu0 0.0
    %791 = vmatpush1.msra.mxu0 %v770
    %792 = vmatprep.subr.mxu0 0.0
    %793 = vmatpush1.msra.mxu0 %v771
    %794 = vmatprep.subr.mxu0 0.0
    %795 = vmatpush1.msra.mxu0 %v772
    %796 = vmatprep.subr.mxu0 0.0
    %797 = vmatpush1.msra.mxu0 %v773
    %798 = vmatprep.subr.mxu0 0.0
    %799 = vmatpush1.msra.mxu0 %v774
    %800 = vmatprep.subr.mxu0 0.0
    %801 = vmatpush1.msra.mxu0 %v775
    %802 = vmatprep.subr.mxu0 0.0
    %803 = vmatpush1.msra.mxu0 %v776
    %804 = vmatprep.subr.mxu0 0.0
    %805 = vmatpush1.msra.mxu0 %v777
    %806 = vmatprep.subr.mxu0 0.0
    %807 = vmatpush1.msra.mxu0 %v778
    %808 = vmatprep.subr.mxu0 0.0
    %809 = vmatpush1.msra.mxu0 %v779
    %810 = vmatprep.subr.mxu0 0.0
    %811 = vmatpush1.msra.mxu0 %v780
    %812 = vmatprep.subr.mxu0 0.0
    %813 = vmatpush1.msra.mxu0 %v781
    %814 = vmatprep.subr.mxu0 0.0
    %815 = vmatpush1.msra.mxu0 0.0
    %816 = vmatprep.subr.mxu0 0.0
    %817 = vmatpush1.msra.mxu0 0.0
    %818 = vmatprep.subr.mxu0 0.0
    %819 = vmatpush1.msra.mxu0 0.0
    %820 = vmatprep.subr.mxu0 0.0
    %821 = vmatpush1.msra.mxu0 0.0
    %822 = vmatprep.subr.mxu0 0.0
    %823 = vmatpush1.msra.mxu0 0.0
    %824 = vmatprep.subr.mxu0 0.0
    %825 = vmatpush1.msra.mxu0 0.0
    %826 = vmatprep.subr.mxu0 0.0
    %827 = vmatpush1.msra.mxu0 0.0
    %828 = vmatprep.subr.mxu0 0.0
    %829 = vmatpush1.msra.mxu0 0.0
    %830 = vmatprep.subr.mxu0 0.0
    %831 = vmatpush1.msra.mxu0 0.0
    %832 = vmatprep.subr.mxu0 0.0
    %833 = vmatpush1.msra.mxu0 0.0
    %834 = vmatprep.subr.mxu0 0.0
    %835 = vmatpush1.msra.mxu0 0.0
    %836 = vmatprep.subr.mxu0 0.0
    %837 = vmatpush1.msra.mxu0 0.0
    %838 = vmatprep.subr.mxu0 0.0
    %839 = vmatpush1.msra.mxu0 0.0
    %840 = vmatprep.subr.mxu0 0.0
    %841 = vmatpush1.msra.mxu0 0.0
    %842 = vmatprep.subr.mxu0 0.0
    %843 = vmatpush1.msra.mxu0 0.0
    %844 = vmatprep.subr.mxu0 0.0
    %845 = vmatpush1.msra.mxu0 0.0
    %846 = vmatprep.mubr.f32.mxu0 0.0
    %847 = vmatmul.mubr.f32.gmra.mrb[0].mxu0 %v758
    %v848 = vpop.f32.mrb[0].mxu0
    %v849 = vadd.f32 0.0, %v848
    %v850 = vpop.f32.mrb[0].mxu0
    %851 = vmatprep.mubr.f32.mxu0 0.0
    %852 = vmatmul.mubr.f32.gmra.mrb[0].mxu0 %v763
    %v853 = vpop.f32.mrb[0].mxu0
    %v854 = vadd.f32 0.0, %v853
    %v855 = vpop.f32.mrb[0].mxu0
    %856 = vdwg.mxu0
    %v857 = vmax.f32 %v849, 0.0
    %v858 = vmax.f32 %v854, 0.0
    %859 = vst [vmem:[#allocation2] sm:$0xff] %v857
    %860 = vst [vmem:[#allocation2 + $0x8] sm:$0x3f] %v858
    %v861 = vld [vmem:[%s6] sm:$0x7]
    %v862 = vld [vmem:[#allocation2] sm:$0xff]
    %v863 = vld [vmem:[#allocation2 + $0x8] sm:$0xf]
    %v864 = vld [vmem:[#allocation9] sm:$0xff]
    %v865 = vld [vmem:[#allocation9 + $0x8] sm:$0xff]
    %v866 = vld [vmem:[#allocation9 + $0x10] sm:$0xff]
    %v867 = vld [vmem:[#allocation9 + $0x18] sm:$0xff]
    %v868 = vld [vmem:[#allocation9 + $0x20] sm:$0xff]
    %v869 = vld [vmem:[#allocation9 + $0x28] sm:$0xff]
    %v870 = vld [vmem:[#allocation9 + $0x30] sm:$0xff]
    %v871 = vld [vmem:[#allocation9 + $0x38] sm:$0xff]
    %v872 = vld [vmem:[#allocation9 + $0x40] sm:$0xff]
    %v873 = vld [vmem:[#allocation9 + $0x48] sm:$0xff]
    %v874 = vld [vmem:[#allocation9 + $0x50] sm:$0xff]
    %v875 = vld [vmem:[#allocation9 + $0x58] sm:$0xff]
    %v876 = vld [vmem:[#allocation9 + $0x60] sm:$0xff]
    %v877 = vld [vmem:[#allocation9 + $0x68] sm:$0xff]
    %v878 = vld [vmem:[#allocation9 + $0x70] sm:$0xff]
    %v879 = vld [vmem:[#allocation9 + $0x78] sm:$0xff]
    %v880 = vld [vmem:[#allocation9 + $0x80] sm:$0xff]
    %v881 = vld [vmem:[#allocation9 + $0x88] sm:$0xff]
    %v882 = vld [vmem:[#allocation9 + $0x90] sm:$0xff]
    %v883 = vld [vmem:[#allocation9 + $0x98] sm:$0xff]
    %v884 = vld [vmem:[#allocation9 + $0xa0] sm:$0xff]
    %v885 = vld [vmem:[#allocation9 + $0xa8] sm:$0xff]
    %v886 = vld [vmem:[#allocation9 + $0xb0] sm:$0xff]
    %v887 = vld [vmem:[#allocation9 + $0xb8] sm:$0xff]
    %v888 = vld [vmem:[#allocation9 + $0xc0] sm:$0xff]
    %v889 = vld [vmem:[#allocation9 + $0xc8] sm:$0xff]
    %v890 = vld [vmem:[#allocation9 + $0xd0] sm:$0xff]
    %v891 = vld [vmem:[#allocation9 + $0xd8] sm:$0xff]
    %v892 = vld [vmem:[#allocation9 + $0xe0] sm:$0xff]
    %v893 = vld [vmem:[#allocation9 + $0xe8] sm:$0xff]
    %v894 = vld [vmem:[#allocation9 + $0xf0] sm:$0xff]
    %v895 = vld [vmem:[#allocation9 + $0xf8] sm:$0xff]
    %v896 = vld [vmem:[#allocation9 + $0x100] sm:$0xff]
    %v897 = vld [vmem:[#allocation9 + $0x108] sm:$0xff]
    %v898 = vld [vmem:[#allocation9 + $0x110] sm:$0xff]
    %v899 = vld [vmem:[#allocation9 + $0x118] sm:$0xff]
    %v900 = vld [vmem:[#allocation9 + $0x120] sm:$0xff]
    %v901 = vld [vmem:[#allocation9 + $0x128] sm:$0xff]
    %v902 = vld [vmem:[#allocation9 + $0x130] sm:$0xff]
    %v903 = vld [vmem:[#allocation9 + $0x138] sm:$0xff]
    %v904 = vld [vmem:[#allocation9 + $0x140] sm:$0xff]
    %v905 = vld [vmem:[#allocation9 + $0x148] sm:$0xff]
    %v906 = vld [vmem:[#allocation9 + $0x150] sm:$0xff]
    %v907 = vld [vmem:[#allocation9 + $0x158] sm:$0xff]
    %v908 = vld [vmem:[#allocation9 + $0x160] sm:$0xff]
    %v909 = vld [vmem:[#allocation9 + $0x168] sm:$0xff]
    %v910 = vld [vmem:[#allocation9 + $0x170] sm:$0xff]
    %v911 = vld [vmem:[#allocation9 + $0x178] sm:$0xff]
    %912 = vmatprep.subr.mxu0 %v865
    %913 = vmatpush1.msra.mxu0 %v864
    %914 = vmatprep.subr.mxu0 %v868
    %915 = vmatpush1.msra.mxu0 %v867
    %916 = vmatprep.subr.mxu0 %v871
    %917 = vmatpush1.msra.mxu0 %v870
    %918 = vmatprep.subr.mxu0 %v874
    %919 = vmatpush1.msra.mxu0 %v873
    %920 = vmatprep.subr.mxu0 %v877
    %921 = vmatpush1.msra.mxu0 %v876
    %922 = vmatprep.subr.mxu0 %v880
    %923 = vmatpush1.msra.mxu0 %v879
    %924 = vmatprep.subr.mxu0 %v883
    %925 = vmatpush1.msra.mxu0 %v882
    %926 = vmatprep.subr.mxu0 %v886
    %927 = vmatpush1.msra.mxu0 %v885
    %928 = vmatprep.subr.mxu0 %v889
    %929 = vmatpush1.msra.mxu0 %v888
    %930 = vmatprep.subr.mxu0 %v892
    %931 = vmatpush1.msra.mxu0 %v891
    %932 = vmatprep.subr.mxu0 %v895
    %933 = vmatpush1.msra.mxu0 %v894
    %934 = vmatprep.subr.mxu0 %v898
    %935 = vmatpush1.msra.mxu0 %v897
    %936 = vmatprep.subr.mxu0 %v901
    %937 = vmatpush1.msra.mxu0 %v900
    %938 = vmatprep.subr.mxu0 %v904
    %939 = vmatpush1.msra.mxu0 %v903
    %940 = vmatprep.subr.mxu0 %v907
    %941 = vmatpush1.msra.mxu0 %v906
    %942 = vmatprep.subr.mxu0 %v910
    %943 = vmatpush1.msra.mxu0 %v909
    %944 = vmatprep.subr.mxu0 0.0
    %945 = vmatpush1.msra.mxu0 0.0
    %946 = vmatprep.subr.mxu0 0.0
    %947 = vmatpush1.msra.mxu0 0.0
    %948 = vmatprep.subr.mxu0 0.0
    %949 = vmatpush1.msra.mxu0 0.0
    %950 = vmatprep.subr.mxu0 0.0
    %951 = vmatpush1.msra.mxu0 0.0
    %952 = vmatprep.subr.mxu0 0.0
    %953 = vmatpush1.msra.mxu0 0.0
    %954 = vmatprep.subr.mxu0 0.0
    %955 = vmatpush1.msra.mxu0 0.0
    %956 = vmatprep.subr.mxu0 0.0
    %957 = vmatpush1.msra.mxu0 0.0
    %958 = vmatprep.subr.mxu0 0.0
    %959 = vmatpush1.msra.mxu0 0.0
    %960 = vmatprep.subr.mxu0 0.0
    %961 = vmatpush1.msra.mxu0 0.0
    %962 = vmatprep.subr.mxu0 0.0
    %963 = vmatpush1.msra.mxu0 0.0
    %964 = vmatprep.subr.mxu0 0.0
    %965 = vmatpush1.msra.mxu0 0.0
    %966 = vmatprep.subr.mxu0 0.0
    %967 = vmatpush1.msra.mxu0 0.0
    %968 = vmatprep.subr.mxu0 0.0
    %969 = vmatpush1.msra.mxu0 0.0
    %970 = vmatprep.subr.mxu0 0.0
    %971 = vmatpush1.msra.mxu0 0.0
    %972 = vmatprep.subr.mxu0 0.0
    %973 = vmatpush1.msra.mxu0 0.0
    %974 = vmatprep.subr.mxu0 0.0
    %975 = vmatpush1.msra.mxu0 0.0
    %976 = vmatprep.mubr.f32.mxu0 0.0
    %977 = vmatmul.mubr.f32.gmra.mrb[0].mxu0 %v862
    %v978 = vpop.f32.mrb[0].mxu0
    %v979 = vadd.f32 0.0, %v978
    %v980 = vpop.f32.mrb[0].mxu0
    %v981 = vadd.f32 0.0, %v980
    %982 = vmatprep.mubr.f32.mxu0 0.0
    %983 = vmatmul.mubr.f32.gmra.mrb[0].mxu0 %v863
    %v984 = vpop.f32.mrb[0].mxu0
    %v985 = vadd.f32 0.0, %v984
    %v986 = vpop.f32.mrb[0].mxu0
    %v987 = vadd.f32 0.0, %v986
    %988 = vdwg.mxu0
    %989 = vmatprep.subr.mxu0 0.0
    %990 = vmatpush1.msra.mxu0 %v866
    %991 = vmatprep.subr.mxu0 0.0
    %992 = vmatpush1.msra.mxu0 %v869
    %993 = vmatprep.subr.mxu0 0.0
    %994 = vmatpush1.msra.mxu0 %v872
    %995 = vmatprep.subr.mxu0 0.0
    %996 = vmatpush1.msra.mxu0 %v875
    %997 = vmatprep.subr.mxu0 0.0
    %998 = vmatpush1.msra.mxu0 %v878
    %999 = vmatprep.subr.mxu0 0.0
    %1000 = vmatpush1.msra.mxu0 %v881
    %1001 = vmatprep.subr.mxu0 0.0
    %1002 = vmatpush1.msra.mxu0 %v884
    %1003 = vmatprep.subr.mxu0 0.0
    %1004 = vmatpush1.msra.mxu0 %v887
    %1005 = vmatprep.subr.mxu0 0.0
    %1006 = vmatpush1.msra.mxu0 %v890
    %1007 = vmatprep.subr.mxu0 0.0
    %1008 = vmatpush1.msra.mxu0 %v893
    %1009 = vmatprep.subr.mxu0 0.0
    %1010 = vmatpush1.msra.mxu0 %v896
    %1011 = vmatprep.subr.mxu0 0.0
    %1012 = vmatpush1.msra.mxu0 %v899
    %1013 = vmatprep.subr.mxu0 0.0
    %1014 = vmatpush1.msra.mxu0 %v902
    %1015 = vmatprep.subr.mxu0 0.0
    %1016 = vmatpush1.msra.mxu0 %v905
    %1017 = vmatprep.subr.mxu0 0.0
    %1018 = vmatpush1.msra.mxu0 %v908
    %1019 = vmatprep.subr.mxu0 0.0
    %1020 = vmatpush1.msra.mxu0 %v911
    %1021 = vmatprep.subr.mxu0 0.0
    %1022 = vmatpush1.msra.mxu0 0.0
    %1023 = vmatprep.subr.mxu0 0.0
    %1024 = vmatpush1.msra.mxu0 0.0
    %1025 = vmatprep.subr.mxu0 0.0
    %1026 = vmatpush1.msra.mxu0 0.0
    %1027 = vmatprep.subr.mxu0 0.0
    %1028 = vmatpush1.msra.mxu0 0.0
    %1029 = vmatprep.subr.mxu0 0.0
    %1030 = vmatpush1.msra.mxu0 0.0
    %1031 = vmatprep.subr.mxu0 0.0
    %1032 = vmatpush1.msra.mxu0 0.0
    %1033 = vmatprep.subr.mxu0 0.0
    %1034 = vmatpush1.msra.mxu0 0.0
    %1035 = vmatprep.subr.mxu0 0.0
    %1036 = vmatpush1.msra.mxu0 0.0
    %1037 = vmatprep.subr.mxu0 0.0
    %1038 = vmatpush1.msra.mxu0 0.0
    %1039 = vmatprep.subr.mxu0 0.0
    %1040 = vmatpush1.msra.mxu0 0.0
    %1041 = vmatprep.subr.mxu0 0.0
    %1042 = vmatpush1.msra.mxu0 0.0
    %1043 = vmatprep.subr.mxu0 0.0
    %1044 = vmatpush1.msra.mxu0 0.0
    %1045 = vmatprep.subr.mxu0 0.0
    %1046 = vmatpush1.msra.mxu0 0.0
    %1047 = vmatprep.subr.mxu0 0.0
    %1048 = vmatpush1.msra.mxu0 0.0
    %1049 = vmatprep.subr.mxu0 0.0
    %1050 = vmatpush1.msra.mxu0 0.0
    %1051 = vmatprep.subr.mxu0 0.0
    %1052 = vmatpush1.msra.mxu0 0.0
    %1053 = vmatprep.mubr.f32.mxu0 0.0
    %1054 = vmatmul.mubr.f32.gmra.mrb[0].mxu0 %v862
    %v1055 = vpop.f32.mrb[0].mxu0
    %v1056 = vadd.f32 0.0, %v1055
    %v1057 = vpop.f32.mrb[0].mxu0
    %1058 = vmatprep.mubr.f32.mxu0 0.0
    %1059 = vmatmul.mubr.f32.gmra.mrb[0].mxu0 %v863
    %v1060 = vpop.f32.mrb[0].mxu0
    %v1061 = vadd.f32 0.0, %v1060
    %v1062 = vpop.f32.mrb[0].mxu0
    %1063 = vdwg.mxu0
    %v1065 = vlaneseq
    %v1066 = vshrl.u32 %v1065, 7
    %v1067 = vsub.s32 0, %v1066
    %v1068 = vrot.slane %v861, %v1067
    %v1069 = vlaneseq
    %v1070 = vshrl.u32 %v1069, 7
    %v1071 = vsub.s32 1, %v1070
    %v1072 = vrot.slane %v861, %v1071
    %v1073 = vlaneseq
    %v1074 = vshrl.u32 %v1073, 7
    %v1075 = vsub.s32 2, %v1074
    %v1076 = vrot.slane %v861, %v1075
    %v1080 = vadd.f32 %v1068, %v979
    %v1081 = vadd.f32 %v1072, %v981
    %v1082 = vadd.f32 %v1076, %v1056
    %v1083 = vadd.f32 %v1068, %v985
    %v1084 = vadd.f32 %v1072, %v987
    %v1085 = vadd.f32 %v1076, %v1061
    %v1086 = vld [vmem:[#allocation2 + $0x1] sm:$0xff]
    %v1087 = vld [vmem:[#allocation2 + $0x9] sm:$0xf]
    %s1088 = scalar_lea.vmem [#allocation9], 384
    %v1089 = vld [vmem:[%s1088] sm:$0xff]
    %v1090 = vld [vmem:[%s1088 + $0x8] sm:$0xff]
    %v1091 = vld [vmem:[%s1088 + $0x10] sm:$0xff]
    %v1092 = vld [vmem:[%s1088 + $0x18] sm:$0xff]
    %v1093 = vld [vmem:[%s1088 + $0x20] sm:$0xff]
    %v1094 = vld [vmem:[%s1088 + $0x28] sm:$0xff]
    %v1095 = vld [vmem:[%s1088 + $0x30] sm:$0xff]
    %v1096 = vld [vmem:[%s1088 + $0x38] sm:$0xff]
    %v1097 = vld [vmem:[%s1088 + $0x40] sm:$0xff]
    %v1098 = vld [vmem:[%s1088 + $0x48] sm:$0xff]
    %v1099 = vld [vmem:[%s1088 + $0x50] sm:$0xff]
    %v1100 = vld [vmem:[%s1088 + $0x58] sm:$0xff]
    %v1101 = vld [vmem:[%s1088 + $0x60] sm:$0xff]
    %v1102 = vld [vmem:[%s1088 + $0x68] sm:$0xff]
    %v1103 = vld [vmem:[%s1088 + $0x70] sm:$0xff]
    %v1104 = vld [vmem:[%s1088 + $0x78] sm:$0xff]
    %v1105 = vld [vmem:[%s1088 + $0x80] sm:$0xff]
    %v1106 = vld [vmem:[%s1088 + $0x88] sm:$0xff]
    %v1107 = vld [vmem:[%s1088 + $0x90] sm:$0xff]
    %v1108 = vld [vmem:[%s1088 + $0x98] sm:$0xff]
    %v1109 = vld [vmem:[%s1088 + $0xa0] sm:$0xff]
    %v1110 = vld [vmem:[%s1088 + $0xa8] sm:$0xff]
    %v1111 = vld [vmem:[%s1088 + $0xb0] sm:$0xff]
    %v1112 = vld [vmem:[%s1088 + $0xb8] sm:$0xff]
    %v1113 = vld [vmem:[%s1088 + $0xc0] sm:$0xff]
    %v1114 = vld [vmem:[%s1088 + $0xc8] sm:$0xff]
    %v1115 = vld [vmem:[%s1088 + $0xd0] sm:$0xff]
    %v1116 = vld [vmem:[%s1088 + $0xd8] sm:$0xff]
    %v1117 = vld [vmem:[%s1088 + $0xe0] sm:$0xff]
    %v1118 = vld [vmem:[%s1088 + $0xe8] sm:$0xff]
    %v1119 = vld [vmem:[%s1088 + $0xf0] sm:$0xff]
    %v1120 = vld [vmem:[%s1088 + $0xf8] sm:$0xff]
    %v1121 = vld [vmem:[%s1088 + $0x100] sm:$0xff]
    %v1122 = vld [vmem:[%s1088 + $0x108] sm:$0xff]
    %v1123 = vld [vmem:[%s1088 + $0x110] sm:$0xff]
    %v1124 = vld [vmem:[%s1088 + $0x118] sm:$0xff]
    %v1125 = vld [vmem:[%s1088 + $0x120] sm:$0xff]
    %v1126 = vld [vmem:[%s1088 + $0x128] sm:$0xff]
    %v1127 = vld [vmem:[%s1088 + $0x130] sm:$0xff]
    %v1128 = vld [vmem:[%s1088 + $0x138] sm:$0xff]
    %v1129 = vld [vmem:[%s1088 + $0x140] sm:$0xff]
    %v1130 = vld [vmem:[%s1088 + $0x148] sm:$0xff]
    %v1131 = vld [vmem:[%s1088 + $0x150] sm:$0xff]
    %v1132 = vld [vmem:[%s1088 + $0x158] sm:$0xff]
    %v1133 = vld [vmem:[%s1088 + $0x160] sm:$0xff]
    %v1134 = vld [vmem:[%s1088 + $0x168] sm:$0xff]
    %v1135 = vld [vmem:[%s1088 + $0x170] sm:$0xff]
    %v1136 = vld [vmem:[%s1088 + $0x178] sm:$0xff]
    %1137 = vmatprep.subr.mxu0 %v1090
    %1138 = vmatpush1.msra.mxu0 %v1089
    %1139 = vmatprep.subr.mxu0 %v1093
    %1140 = vmatpush1.msra.mxu0 %v1092
    %1141 = vmatprep.subr.mxu0 %v1096
    %1142 = vmatpush1.msra.mxu0 %v1095
    %1143 = vmatprep.subr.mxu0 %v1099
    %1144 = vmatpush1.msra.mxu0 %v1098
    %1145 = vmatprep.subr.mxu0 %v1102
    %1146 = vmatpush1.msra.mxu0 %v1101
    %1147 = vmatprep.subr.mxu0 %v1105
    %1148 = vmatpush1.msra.mxu0 %v1104
    %1149 = vmatprep.subr.mxu0 %v1108
    %1150 = vmatpush1.msra.mxu0 %v1107
    %1151 = vmatprep.subr.mxu0 %v1111
    %1152 = vmatpush1.msra.mxu0 %v1110
    %1153 = vmatprep.subr.mxu0 %v1114
    %1154 = vmatpush1.msra.mxu0 %v1113
    %1155 = vmatprep.subr.mxu0 %v1117
    %1156 = vmatpush1.msra.mxu0 %v1116
    %1157 = vmatprep.subr.mxu0 %v1120
    %1158 = vmatpush1.msra.mxu0 %v1119
    %1159 = vmatprep.subr.mxu0 %v1123
    %1160 = vmatpush1.msra.mxu0 %v1122
    %1161 = vmatprep.subr.mxu0 %v1126
    %1162 = vmatpush1.msra.mxu0 %v1125
    %1163 = vmatprep.subr.mxu0 %v1129
    %1164 = vmatpush1.msra.mxu0 %v1128
    %1165 = vmatprep.subr.mxu0 %v1132
    %1166 = vmatpush1.msra.mxu0 %v1131
    %1167 = vmatprep.subr.mxu0 %v1135
    %1168 = vmatpush1.msra.mxu0 %v1134
    %1169 = vmatprep.subr.mxu0 0.0
    %1170 = vmatpush1.msra.mxu0 0.0
    %1171 = vmatprep.subr.mxu0 0.0
    %1172 = vmatpush1.msra.mxu0 0.0
    %1173 = vmatprep.subr.mxu0 0.0
    %1174 = vmatpush1.msra.mxu0 0.0
    %1175 = vmatprep.subr.mxu0 0.0
    %1176 = vmatpush1.msra.mxu0 0.0
    %1177 = vmatprep.subr.mxu0 0.0
    %1178 = vmatpush1.msra.mxu0 0.0
    %1179 = vmatprep.subr.mxu0 0.0
    %1180 = vmatpush1.msra.mxu0 0.0
    %1181 = vmatprep.subr.mxu0 0.0
    %1182 = vmatpush1.msra.mxu0 0.0
    %1183 = vmatprep.subr.mxu0 0.0
    %1184 = vmatpush1.msra.mxu0 0.0
    %1185 = vmatprep.subr.mxu0 0.0
    %1186 = vmatpush1.msra.mxu0 0.0
    %1187 = vmatprep.subr.mxu0 0.0
    %1188 = vmatpush1.msra.mxu0 0.0
    %1189 = vmatprep.subr.mxu0 0.0
    %1190 = vmatpush1.msra.mxu0 0.0
    %1191 = vmatprep.subr.mxu0 0.0
    %1192 = vmatpush1.msra.mxu0 0.0
    %1193 = vmatprep.subr.mxu0 0.0
    %1194 = vmatpush1.msra.mxu0 0.0
    %1195 = vmatprep.subr.mxu0 0.0
    %1196 = vmatpush1.msra.mxu0 0.0
    %1197 = vmatprep.subr.mxu0 0.0
    %1198 = vmatpush1.msra.mxu0 0.0
    %1199 = vmatprep.subr.mxu0 0.0
    %1200 = vmatpush1.msra.mxu0 0.0
    %1201 = vmatprep.mubr.f32.mxu0 0.0
    %1202 = vmatmul.mubr.f32.gmra.mrb[0].mxu0 %v1086
    %v1203 = vpop.f32.mrb[0].mxu0
    %v1204 = vadd.f32 0.0, %v1203
    %v1205 = vpop.f32.mrb[0].mxu0
    %v1206 = vadd.f32 0.0, %v1205
    %1207 = vmatprep.mubr.f32.mxu0 0.0
    %1208 = vmatmul.mubr.f32.gmra.mrb[0].mxu0 %v1087
    %v1209 = vpop.f32.mrb[0].mxu0
    %v1210 = vadd.f32 0.0, %v1209
    %v1211 = vpop.f32.mrb[0].mxu0
    %v1212 = vadd.f32 0.0, %v1211
    %1213 = vdwg.mxu0
    %1214 = vmatprep.subr.mxu0 0.0
    %1215 = vmatpush1.msra.mxu0 %v1091
    %1216 = vmatprep.subr.mxu0 0.0
    %1217 = vmatpush1.msra.mxu0 %v1094
    %1218 = vmatprep.subr.mxu0 0.0
    %1219 = vmatpush1.msra.mxu0 %v1097
    %1220 = vmatprep.subr.mxu0 0.0
    %1221 = vmatpush1.msra.mxu0 %v1100
    %1222 = vmatprep.subr.mxu0 0.0
    %1223 = vmatpush1.msra.mxu0 %v1103
    %1224 = vmatprep.subr.mxu0 0.0
    %1225 = vmatpush1.msra.mxu0 %v1106
    %1226 = vmatprep.subr.mxu0 0.0
    %1227 = vmatpush1.msra.mxu0 %v1109
    %1228 = vmatprep.subr.mxu0 0.0
    %1229 = vmatpush1.msra.mxu0 %v1112
    %1230 = vmatprep.subr.mxu0 0.0
    %1231 = vmatpush1.msra.mxu0 %v1115
    %1232 = vmatprep.subr.mxu0 0.0
    %1233 = vmatpush1.msra.mxu0 %v1118
    %1234 = vmatprep.subr.mxu0 0.0
    %1235 = vmatpush1.msra.mxu0 %v1121
    %1236 = vmatprep.subr.mxu0 0.0
    %1237 = vmatpush1.msra.mxu0 %v1124
    %1238 = vmatprep.subr.mxu0 0.0
    %1239 = vmatpush1.msra.mxu0 %v1127
    %1240 = vmatprep.subr.mxu0 0.0
    %1241 = vmatpush1.msra.mxu0 %v1130
    %1242 = vmatprep.subr.mxu0 0.0
    %1243 = vmatpush1.msra.mxu0 %v1133
    %1244 = vmatprep.subr.mxu0 0.0
    %1245 = vmatpush1.msra.mxu0 %v1136
    %1246 = vmatprep.subr.mxu0 0.0
    %1247 = vmatpush1.msra.mxu0 0.0
    %1248 = vmatprep.subr.mxu0 0.0
    %1249 = vmatpush1.msra.mxu0 0.0
    %1250 = vmatprep.subr.mxu0 0.0
    %1251 = vmatpush1.msra.mxu0 0.0
    %1252 = vmatprep.subr.mxu0 0.0
    %1253 = vmatpush1.msra.mxu0 0.0
    %1254 = vmatprep.subr.mxu0 0.0
    %1255 = vmatpush1.msra.mxu0 0.0
    %1256 = vmatprep.subr.mxu0 0.0
    %1257 = vmatpush1.msra.mxu0 0.0
    %1258 = vmatprep.subr.mxu0 0.0
    %1259 = vmatpush1.msra.mxu0 0.0
    %1260 = vmatprep.subr.mxu0 0.0
    %1261 = vmatpush1.msra.mxu0 0.0
    %1262 = vmatprep.subr.mxu0 0.0
    %1263 = vmatpush1.msra.mxu0 0.0
    %1264 = vmatprep.subr.mxu0 0.0
    %1265 = vmatpush1.msra.mxu0 0.0
    %1266 = vmatprep.subr.mxu0 0.0
    %1267 = vmatpush1.msra.mxu0 0.0
    %1268 = vmatprep.subr.mxu0 0.0
    %1269 = vmatpush1.msra.mxu0 0.0
    %1270 = vmatprep.subr.mxu0 0.0
    %1271 = vmatpush1.msra.mxu0 0.0
    %1272 = vmatprep.subr.mxu0 0.0
    %1273 = vmatpush1.msra.mxu0 0.0
    %1274 = vmatprep.subr.mxu0 0.0
    %1275 = vmatpush1.msra.mxu0 0.0
    %1276 = vmatprep.subr.mxu0 0.0
    %1277 = vmatpush1.msra.mxu0 0.0
    %1278 = vmatprep.mubr.f32.mxu0 0.0
    %1279 = vmatmul.mubr.f32.gmra.mrb[0].mxu0 %v1086
    %v1280 = vpop.f32.mrb[0].mxu0
    %v1281 = vadd.f32 0.0, %v1280
    %v1282 = vpop.f32.mrb[0].mxu0
    %1283 = vmatprep.mubr.f32.mxu0 0.0
    %1284 = vmatmul.mubr.f32.gmra.mrb[0].mxu0 %v1087
    %v1285 = vpop.f32.mrb[0].mxu0
    %v1286 = vadd.f32 0.0, %v1285
    %v1287 = vpop.f32.mrb[0].mxu0
    %1288 = vdwg.mxu0
    %v1289 = vadd.f32 %v1080, %v1204
    %v1290 = vadd.f32 %v1081, %v1206
    %v1291 = vadd.f32 %v1082, %v1281
    %v1292 = vadd.f32 %v1083, %v1210
    %v1293 = vadd.f32 %v1084, %v1212
    %v1294 = vadd.f32 %v1085, %v1286
    %v1295 = vld [vmem:[#allocation2 + $0x2] sm:$0xff]
    %v1296 = vld [vmem:[#allocation2 + $0xa] sm:$0xf]
    %s1297 = scalar_lea.vmem [#allocation9], 768
    %v1298 = vld [vmem:[%s1297] sm:$0xff]
    %v1299 = vld [vmem:[%s1297 + $0x8] sm:$0xff]
    %v1300 = vld [vmem:[%s1297 + $0x10] sm:$0xff]
    %v1301 = vld [vmem:[%s1297 + $0x18] sm:$0xff]
    %v1302 = vld [vmem:[%s1297 + $0x20] sm:$0xff]
    %v1303 = vld [vmem:[%s1297 + $0x28] sm:$0xff]
    %v1304 = vld [vmem:[%s1297 + $0x30] sm:$0xff]
    %v1305 = vld [vmem:[%s1297 + $0x38] sm:$0xff]
    %v1306 = vld [vmem:[%s1297 + $0x40] sm:$0xff]
    %v1307 = vld [vmem:[%s1297 + $0x48] sm:$0xff]
    %v1308 = vld [vmem:[%s1297 + $0x50] sm:$0xff]
    %v1309 = vld [vmem:[%s1297 + $0x58] sm:$0xff]
    %v1310 = vld [vmem:[%s1297 + $0x60] sm:$0xff]
    %v1311 = vld [vmem:[%s1297 + $0x68] sm:$0xff]
    %v1312 = vld [vmem:[%s1297 + $0x70] sm:$0xff]
    %v1313 = vld [vmem:[%s1297 + $0x78] sm:$0xff]
    %v1314 = vld [vmem:[%s1297 + $0x80] sm:$0xff]
    %v1315 = vld [vmem:[%s1297 + $0x88] sm:$0xff]
    %v1316 = vld [vmem:[%s1297 + $0x90] sm:$0xff]
    %v1317 = vld [vmem:[%s1297 + $0x98] sm:$0xff]
    %v1318 = vld [vmem:[%s1297 + $0xa0] sm:$0xff]
    %v1319 = vld [vmem:[%s1297 + $0xa8] sm:$0xff]
    %v1320 = vld [vmem:[%s1297 + $0xb0] sm:$0xff]
    %v1321 = vld [vmem:[%s1297 + $0xb8] sm:$0xff]
    %v1322 = vld [vmem:[%s1297 + $0xc0] sm:$0xff]
    %v1323 = vld [vmem:[%s1297 + $0xc8] sm:$0xff]
    %v1324 = vld [vmem:[%s1297 + $0xd0] sm:$0xff]
    %v1325 = vld [vmem:[%s1297 + $0xd8] sm:$0xff]
    %v1326 = vld [vmem:[%s1297 + $0xe0] sm:$0xff]
    %v1327 = vld [vmem:[%s1297 + $0xe8] sm:$0xff]
    %v1328 = vld [vmem:[%s1297 + $0xf0] sm:$0xff]
    %v1329 = vld [vmem:[%s1297 + $0xf8] sm:$0xff]
    %v1330 = vld [vmem:[%s1297 + $0x100] sm:$0xff]
    %v1331 = vld [vmem:[%s1297 + $0x108] sm:$0xff]
    %v1332 = vld [vmem:[%s1297 + $0x110] sm:$0xff]
    %v1333 = vld [vmem:[%s1297 + $0x118] sm:$0xff]
    %v1334 = vld [vmem:[%s1297 + $0x120] sm:$0xff]
    %v1335 = vld [vmem:[%s1297 + $0x128] sm:$0xff]
    %v1336 = vld [vmem:[%s1297 + $0x130] sm:$0xff]
    %v1337 = vld [vmem:[%s1297 + $0x138] sm:$0xff]
    %v1338 = vld [vmem:[%s1297 + $0x140] sm:$0xff]
    %v1339 = vld [vmem:[%s1297 + $0x148] sm:$0xff]
    %v1340 = vld [vmem:[%s1297 + $0x150] sm:$0xff]
    %v1341 = vld [vmem:[%s1297 + $0x158] sm:$0xff]
    %v1342 = vld [vmem:[%s1297 + $0x160] sm:$0xff]
    %v1343 = vld [vmem:[%s1297 + $0x168] sm:$0xff]
    %v1344 = vld [vmem:[%s1297 + $0x170] sm:$0xff]
    %v1345 = vld [vmem:[%s1297 + $0x178] sm:$0xff]
    %1346 = vmatprep.subr.mxu0 %v1299
    %1347 = vmatpush1.msra.mxu0 %v1298
    %1348 = vmatprep.subr.mxu0 %v1302
    %1349 = vmatpush1.msra.mxu0 %v1301
    %1350 = vmatprep.subr.mxu0 %v1305
    %1351 = vmatpush1.msra.mxu0 %v1304
    %1352 = vmatprep.subr.mxu0 %v1308
    %1353 = vmatpush1.msra.mxu0 %v1307
    %1354 = vmatprep.subr.mxu0 %v1311
    %1355 = vmatpush1.msra.mxu0 %v1310
    %1356 = vmatprep.subr.mxu0 %v1314
    %1357 = vmatpush1.msra.mxu0 %v1313
    %1358 = vmatprep.subr.mxu0 %v1317
    %1359 = vmatpush1.msra.mxu0 %v1316
    %1360 = vmatprep.subr.mxu0 %v1320
    %1361 = vmatpush1.msra.mxu0 %v1319
    %1362 = vmatprep.subr.mxu0 %v1323
    %1363 = vmatpush1.msra.mxu0 %v1322
    %1364 = vmatprep.subr.mxu0 %v1326
    %1365 = vmatpush1.msra.mxu0 %v1325
    %1366 = vmatprep.subr.mxu0 %v1329
    %1367 = vmatpush1.msra.mxu0 %v1328
    %1368 = vmatprep.subr.mxu0 %v1332
    %1369 = vmatpush1.msra.mxu0 %v1331
    %1370 = vmatprep.subr.mxu0 %v1335
    %1371 = vmatpush1.msra.mxu0 %v1334
    %1372 = vmatprep.subr.mxu0 %v1338
    %1373 = vmatpush1.msra.mxu0 %v1337
    %1374 = vmatprep.subr.mxu0 %v1341
    %1375 = vmatpush1.msra.mxu0 %v1340
    %1376 = vmatprep.subr.mxu0 %v1344
    %1377 = vmatpush1.msra.mxu0 %v1343
    %1378 = vmatprep.subr.mxu0 0.0
    %1379 = vmatpush1.msra.mxu0 0.0
    %1380 = vmatprep.subr.mxu0 0.0
    %1381 = vmatpush1.msra.mxu0 0.0
    %1382 = vmatprep.subr.mxu0 0.0
    %1383 = vmatpush1.msra.mxu0 0.0
    %1384 = vmatprep.subr.mxu0 0.0
    %1385 = vmatpush1.msra.mxu0 0.0
    %1386 = vmatprep.subr.mxu0 0.0
    %1387 = vmatpush1.msra.mxu0 0.0
    %1388 = vmatprep.subr.mxu0 0.0
    %1389 = vmatpush1.msra.mxu0 0.0
    %1390 = vmatprep.subr.mxu0 0.0
    %1391 = vmatpush1.msra.mxu0 0.0
    %1392 = vmatprep.subr.mxu0 0.0
    %1393 = vmatpush1.msra.mxu0 0.0
    %1394 = vmatprep.subr.mxu0 0.0
    %1395 = vmatpush1.msra.mxu0 0.0
    %1396 = vmatprep.subr.mxu0 0.0
    %1397 = vmatpush1.msra.mxu0 0.0
    %1398 = vmatprep.subr.mxu0 0.0
    %1399 = vmatpush1.msra.mxu0 0.0
    %1400 = vmatprep.subr.mxu0 0.0
    %1401 = vmatpush1.msra.mxu0 0.0
    %1402 = vmatprep.subr.mxu0 0.0
    %1403 = vmatpush1.msra.mxu0 0.0
    %1404 = vmatprep.subr.mxu0 0.0
    %1405 = vmatpush1.msra.mxu0 0.0
    %1406 = vmatprep.subr.mxu0 0.0
    %1407 = vmatpush1.msra.mxu0 0.0
    %1408 = vmatprep.subr.mxu0 0.0
    %1409 = vmatpush1.msra.mxu0 0.0
    %1410 = vmatprep.mubr.f32.mxu0 0.0
    %1411 = vmatmul.mubr.f32.gmra.mrb[0].mxu0 %v1295
    %v1412 = vpop.f32.mrb[0].mxu0
    %v1413 = vadd.f32 0.0, %v1412
    %v1414 = vpop.f32.mrb[0].mxu0
    %v1415 = vadd.f32 0.0, %v1414
    %1416 = vmatprep.mubr.f32.mxu0 0.0
    %1417 = vmatmul.mubr.f32.gmra.mrb[0].mxu0 %v1296
    %v1418 = vpop.f32.mrb[0].mxu0
    %v1419 = vadd.f32 0.0, %v1418
    %v1420 = vpop.f32.mrb[0].mxu0
    %v1421 = vadd.f32 0.0, %v1420
    %1422 = vdwg.mxu0
    %1423 = vmatprep.subr.mxu0 0.0
    %1424 = vmatpush1.msra.mxu0 %v1300
    %1425 = vmatprep.subr.mxu0 0.0
    %1426 = vmatpush1.msra.mxu0 %v1303
    %1427 = vmatprep.subr.mxu0 0.0
    %1428 = vmatpush1.msra.mxu0 %v1306
    %1429 = vmatprep.subr.mxu0 0.0
    %1430 = vmatpush1.msra.mxu0 %v1309
    %1431 = vmatprep.subr.mxu0 0.0
    %1432 = vmatpush1.msra.mxu0 %v1312
    %1433 = vmatprep.subr.mxu0 0.0
    %1434 = vmatpush1.msra.mxu0 %v1315
    %1435 = vmatprep.subr.mxu0 0.0
    %1436 = vmatpush1.msra.mxu0 %v1318
    %1437 = vmatprep.subr.mxu0 0.0
    %1438 = vmatpush1.msra.mxu0 %v1321
    %1439 = vmatprep.subr.mxu0 0.0
    %1440 = vmatpush1.msra.mxu0 %v1324
    %1441 = vmatprep.subr.mxu0 0.0
    %1442 = vmatpush1.msra.mxu0 %v1327
    %1443 = vmatprep.subr.mxu0 0.0
    %1444 = vmatpush1.msra.mxu0 %v1330
    %1445 = vmatprep.subr.mxu0 0.0
    %1446 = vmatpush1.msra.mxu0 %v1333
    %1447 = vmatprep.subr.mxu0 0.0
    %1448 = vmatpush1.msra.mxu0 %v1336
    %1449 = vmatprep.subr.mxu0 0.0
    %1450 = vmatpush1.msra.mxu0 %v1339
    %1451 = vmatprep.subr.mxu0 0.0
    %1452 = vmatpush1.msra.mxu0 %v1342
    %1453 = vmatprep.subr.mxu0 0.0
    %1454 = vmatpush1.msra.mxu0 %v1345
    %1455 = vmatprep.subr.mxu0 0.0
    %1456 = vmatpush1.msra.mxu0 0.0
    %1457 = vmatprep.subr.mxu0 0.0
    %1458 = vmatpush1.msra.mxu0 0.0
    %1459 = vmatprep.subr.mxu0 0.0
    %1460 = vmatpush1.msra.mxu0 0.0
    %1461 = vmatprep.subr.mxu0 0.0
    %1462 = vmatpush1.msra.mxu0 0.0
    %1463 = vmatprep.subr.mxu0 0.0
    %1464 = vmatpush1.msra.mxu0 0.0
    %1465 = vmatprep.subr.mxu0 0.0
    %1466 = vmatpush1.msra.mxu0 0.0
    %1467 = vmatprep.subr.mxu0 0.0
    %1468 = vmatpush1.msra.mxu0 0.0
    %1469 = vmatprep.subr.mxu0 0.0
    %1470 = vmatpush1.msra.mxu0 0.0
    %1471 = vmatprep.subr.mxu0 0.0
    %1472 = vmatpush1.msra.mxu0 0.0
    %1473 = vmatprep.subr.mxu0 0.0
    %1474 = vmatpush1.msra.mxu0 0.0
    %1475 = vmatprep.subr.mxu0 0.0
    %1476 = vmatpush1.msra.mxu0 0.0
    %1477 = vmatprep.subr.mxu0 0.0
    %1478 = vmatpush1.msra.mxu0 0.0
    %1479 = vmatprep.subr.mxu0 0.0
    %1480 = vmatpush1.msra.mxu0 0.0
    %1481 = vmatprep.subr.mxu0 0.0
    %1482 = vmatpush1.msra.mxu0 0.0
    %1483 = vmatprep.subr.mxu0 0.0
    %1484 = vmatpush1.msra.mxu0 0.0
    %1485 = vmatprep.subr.mxu0 0.0
    %1486 = vmatpush1.msra.mxu0 0.0
    %1487 = vmatprep.mubr.f32.mxu0 0.0
    %1488 = vmatmul.mubr.f32.gmra.mrb[0].mxu0 %v1295
    %v1489 = vpop.f32.mrb[0].mxu0
    %v1490 = vadd.f32 0.0, %v1489
    %v1491 = vpop.f32.mrb[0].mxu0
    %1492 = vmatprep.mubr.f32.mxu0 0.0
    %1493 = vmatmul.mubr.f32.gmra.mrb[0].mxu0 %v1296
    %v1494 = vpop.f32.mrb[0].mxu0
    %v1495 = vadd.f32 0.0, %v1494
    %v1496 = vpop.f32.mrb[0].mxu0
    %1497 = vdwg.mxu0
    %v1498 = vadd.f32 %v1289, %v1413
    %v1499 = vadd.f32 %v1290, %v1415
    %v1500 = vadd.f32 %v1291, %v1490
    %v1501 = vadd.f32 %v1292, %v1419
    %v1502 = vadd.f32 %v1293, %v1421
    %v1503 = vadd.f32 %v1294, %v1495
    %v1504 = vxor.u32 %v1499, 2147483648
    %v1505 = vxor.u32 %v1502, 2147483648
    %v1506 = vmul.f32 %v1504, 1.442695
    %v1507 = vpow.pop %v1506
    %v1508 = vmul.f32 %v1505, 1.442695
    %v1509 = vpow.pop %v1508
    %v1510 = vadd.f32 %v1507, 1.0
    %v1511 = vadd.f32 %v1509, 1.0
    %v1512 = vrcp.pop %v1510
    %v1513 = vmul.f32 1.0, %v1512
    %v1514 = vrcp.pop %v1511
    %v1515 = vmul.f32 1.0, %v1514
    %v1516 = vadd.f32 %v1498, %v1513
    %v1517 = vadd.f32 %v1501, %v1515
    %v1518 = vadd.f32 %v1516, %v1500
    %v1519 = vadd.f32 %v1517, %v1503
    %v1520 = vmax.f32 %v1518, 0.0
    %v1521 = vmax.f32 %v1519, 0.0
    %1522 = vst [vmem:[#allocation3] sm:$0xff] %v1520
    %1523 = vst [vmem:[#allocation3 + $0x8] sm:$0xf] %v1521
    %v1524 = vld [vmem:[%s2] sm:$0x7]
    %s1525 = scalar_lea.vmem %s0, 16
    %v1526 = vld [vmem:[%s1525] sm:$0xff]
    %v1527 = vld [vmem:[%s1525 + $0x8] sm:$0x3f]
    %v1528 = vld [vmem:[#allocation4] sm:$0xff]
    %v1529 = vld [vmem:[#allocation4 + $0x8] sm:$0xff]
    %v1530 = vld [vmem:[#allocation4 + $0x10] sm:$0xff]
    %v1531 = vld [vmem:[#allocation4 + $0x18] sm:$0xff]
    %v1532 = vld [vmem:[#allocation4 + $0x20] sm:$0xff]
    %v1533 = vld [vmem:[#allocation4 + $0x28] sm:$0xff]
    %v1534 = vld [vmem:[#allocation4 + $0x30] sm:$0xff]
    %v1535 = vld [vmem:[#allocation4 + $0x38] sm:$0xff]
    %v1536 = vld [vmem:[#allocation4 + $0x40] sm:$0xff]
    %v1537 = vld [vmem:[#allocation4 + $0x48] sm:$0xff]
    %v1538 = vld [vmem:[#allocation4 + $0x50] sm:$0xff]
    %v1539 = vld [vmem:[#allocation4 + $0x58] sm:$0xff]
    %v1541 = vsel %vm118, %v1526, 0
    %v1544 = vsel %vm118, %v1527, 0
    %1546 = vmatprep.subr.mxu0 %v1529
    %1547 = vmatpush1.msra.mxu0 %v1528
    %1548 = vmatprep.subr.mxu0 %v1532
    %1549 = vmatpush1.msra.mxu0 %v1531
    %1550 = vmatprep.subr.mxu0 %v1535
    %1551 = vmatpush1.msra.mxu0 %v1534
    %1552 = vmatprep.subr.mxu0 %v1538
    %1553 = vmatpush1.msra.mxu0 %v1537
    %1554 = vmatprep.subr.mxu0 0.0
    %1555 = vmatpush1.msra.mxu0 0.0
    %1556 = vmatprep.subr.mxu0 0.0
    %1557 = vmatpush1.msra.mxu0 0.0
    %1558 = vmatprep.subr.mxu0 0.0
    %1559 = vmatpush1.msra.mxu0 0.0
    %1560 = vmatprep.subr.mxu0 0.0
    %1561 = vmatpush1.msra.mxu0 0.0
    %1562 = vmatprep.subr.mxu0 0.0
    %1563 = vmatpush1.msra.mxu0 0.0
    %1564 = vmatprep.subr.mxu0 0.0
    %1565 = vmatpush1.msra.mxu0 0.0
    %1566 = vmatprep.subr.mxu0 0.0
    %1567 = vmatpush1.msra.mxu0 0.0
    %1568 = vmatprep.subr.mxu0 0.0
    %1569 = vmatpush1.msra.mxu0 0.0
    %1570 = vmatprep.subr.mxu0 0.0
    %1571 = vmatpush1.msra.mxu0 0.0
    %1572 = vmatprep.subr.mxu0 0.0
    %1573 = vmatpush1.msra.mxu0 0.0
    %1574 = vmatprep.subr.mxu0 0.0
    %1575 = vmatpush1.msra.mxu0 0.0
    %1576 = vmatprep.subr.mxu0 0.0
    %1577 = vmatpush1.msra.mxu0 0.0
    %1578 = vmatprep.subr.mxu0 0.0
    %1579 = vmatpush1.msra.mxu0 0.0
    %1580 = vmatprep.subr.mxu0 0.0
    %1581 = vmatpush1.msra.mxu0 0.0
    %1582 = vmatprep.subr.mxu0 0.0
    %1583 = vmatpush1.msra.mxu0 0.0
    %1584 = vmatprep.subr.mxu0 0.0
    %1585 = vmatpush1.msra.mxu0 0.0
    %1586 = vmatprep.subr.mxu0 0.0
    %1587 = vmatpush1.msra.mxu0 0.0
    %1588 = vmatprep.subr.mxu0 0.0
    %1589 = vmatpush1.msra.mxu0 0.0
    %1590 = vmatprep.subr.mxu0 0.0
    %1591 = vmatpush1.msra.mxu0 0.0
    %1592 = vmatprep.subr.mxu0 0.0
    %1593 = vmatpush1.msra.mxu0 0.0
    %1594 = vmatprep.subr.mxu0 0.0
    %1595 = vmatpush1.msra.mxu0 0.0
    %1596 = vmatprep.subr.mxu0 0.0
    %1597 = vmatpush1.msra.mxu0 0.0
    %1598 = vmatprep.subr.mxu0 0.0
    %1599 = vmatpush1.msra.mxu0 0.0
    %1600 = vmatprep.subr.mxu0 0.0
    %1601 = vmatpush1.msra.mxu0 0.0
    %1602 = vmatprep.subr.mxu0 0.0
    %1603 = vmatpush1.msra.mxu0 0.0
    %1604 = vmatprep.subr.mxu0 0.0
    %1605 = vmatpush1.msra.mxu0 0.0
    %1606 = vmatprep.subr.mxu0 0.0
    %1607 = vmatpush1.msra.mxu0 0.0
    %1608 = vmatprep.subr.mxu0 0.0
    %1609 = vmatpush1.msra.mxu0 0.0
    %1610 = vmatprep.mubr.f32.mxu0 0.0
    %1611 = vmatmul.mubr.f32.gmra.mrb[0].mxu0 %v1541
    %v1612 = vpop.f32.mrb[0].mxu0
    %v1613 = vadd.f32 0.0, %v1612
    %v1614 = vpop.f32.mrb[0].mxu0
    %v1615 = vadd.f32 0.0, %v1614
    %1616 = vmatprep.mubr.f32.mxu0 0.0
    %1617 = vmatmul.mubr.f32.gmra.mrb[0].mxu0 %v1544
    %v1618 = vpop.f32.mrb[0].mxu0
    %v1619 = vadd.f32 0.0, %v1618
    %v1620 = vpop.f32.mrb[0].mxu0
    %v1621 = vadd.f32 0.0, %v1620
    %1622 = vdwg.mxu0
    %1623 = vmatprep.subr.mxu0 0.0
    %1624 = vmatpush1.msra.mxu0 %v1530
    %1625 = vmatprep.subr.mxu0 0.0
    %1626 = vmatpush1.msra.mxu0 %v1533
    %1627 = vmatprep.subr.mxu0 0.0
    %1628 = vmatpush1.msra.mxu0 %v1536
    %1629 = vmatprep.subr.mxu0 0.0
    %1630 = vmatpush1.msra.mxu0 %v1539
    %1631 = vmatprep.subr.mxu0 0.0
    %1632 = vmatpush1.msra.mxu0 0.0
    %1633 = vmatprep.subr.mxu0 0.0
    %1634 = vmatpush1.msra.mxu0 0.0
    %1635 = vmatprep.subr.mxu0 0.0
    %1636 = vmatpush1.msra.mxu0 0.0
    %1637 = vmatprep.subr.mxu0 0.0
    %1638 = vmatpush1.msra.mxu0 0.0
    %1639 = vmatprep.subr.mxu0 0.0
    %1640 = vmatpush1.msra.mxu0 0.0
    %1641 = vmatprep.subr.mxu0 0.0
    %1642 = vmatpush1.msra.mxu0 0.0
    %1643 = vmatprep.subr.mxu0 0.0
    %1644 = vmatpush1.msra.mxu0 0.0
    %1645 = vmatprep.subr.mxu0 0.0
    %1646 = vmatpush1.msra.mxu0 0.0
    %1647 = vmatprep.subr.mxu0 0.0
    %1648 = vmatpush1.msra.mxu0 0.0
    %1649 = vmatprep.subr.mxu0 0.0
    %1650 = vmatpush1.msra.mxu0 0.0
    %1651 = vmatprep.subr.mxu0 0.0
    %1652 = vmatpush1.msra.mxu0 0.0
    %1653 = vmatprep.subr.mxu0 0.0
    %1654 = vmatpush1.msra.mxu0 0.0
    %1655 = vmatprep.subr.mxu0 0.0
    %1656 = vmatpush1.msra.mxu0 0.0
    %1657 = vmatprep.subr.mxu0 0.0
    %1658 = vmatpush1.msra.mxu0 0.0
    %1659 = vmatprep.subr.mxu0 0.0
    %1660 = vmatpush1.msra.mxu0 0.0
    %1661 = vmatprep.subr.mxu0 0.0
    %1662 = vmatpush1.msra.mxu0 0.0
    %1663 = vmatprep.subr.mxu0 0.0
    %1664 = vmatpush1.msra.mxu0 0.0
    %1665 = vmatprep.subr.mxu0 0.0
    %1666 = vmatpush1.msra.mxu0 0.0
    %1667 = vmatprep.subr.mxu0 0.0
    %1668 = vmatpush1.msra.mxu0 0.0
    %1669 = vmatprep.subr.mxu0 0.0
    %1670 = vmatpush1.msra.mxu0 0.0
    %1671 = vmatprep.subr.mxu0 0.0
    %1672 = vmatpush1.msra.mxu0 0.0
    %1673 = vmatprep.subr.mxu0 0.0
    %1674 = vmatpush1.msra.mxu0 0.0
    %1675 = vmatprep.subr.mxu0 0.0
    %1676 = vmatpush1.msra.mxu0 0.0
    %1677 = vmatprep.subr.mxu0 0.0
    %1678 = vmatpush1.msra.mxu0 0.0
    %1679 = vmatprep.subr.mxu0 0.0
    %1680 = vmatpush1.msra.mxu0 0.0
    %1681 = vmatprep.subr.mxu0 0.0
    %1682 = vmatpush1.msra.mxu0 0.0
    %1683 = vmatprep.subr.mxu0 0.0
    %1684 = vmatpush1.msra.mxu0 0.0
    %1685 = vmatprep.subr.mxu0 0.0
    %1686 = vmatpush1.msra.mxu0 0.0
    %1687 = vmatprep.mubr.f32.mxu0 0.0
    %1688 = vmatmul.mubr.f32.gmra.mrb[0].mxu0 %v1541
    %v1689 = vpop.f32.mrb[0].mxu0
    %v1690 = vadd.f32 0.0, %v1689
    %v1691 = vpop.f32.mrb[0].mxu0
    %1692 = vmatprep.mubr.f32.mxu0 0.0
    %1693 = vmatmul.mubr.f32.gmra.mrb[0].mxu0 %v1544
    %v1694 = vpop.f32.mrb[0].mxu0
    %v1695 = vadd.f32 0.0, %v1694
    %v1696 = vpop.f32.mrb[0].mxu0
    %1697 = vdwg.mxu0
    %v1699 = vlaneseq
    %v1700 = vshrl.u32 %v1699, 7
    %v1701 = vsub.s32 0, %v1700
    %v1702 = vrot.slane %v1524, %v1701
    %v1703 = vlaneseq
    %v1704 = vshrl.u32 %v1703, 7
    %v1705 = vsub.s32 1, %v1704
    %v1706 = vrot.slane %v1524, %v1705
    %v1707 = vlaneseq
    %v1708 = vshrl.u32 %v1707, 7
    %v1709 = vsub.s32 2, %v1708
    %v1710 = vrot.slane %v1524, %v1709
    %v1714 = vadd.f32 %v1702, %v1613
    %v1715 = vadd.f32 %v1706, %v1615
    %v1716 = vadd.f32 %v1710, %v1690
    %v1717 = vadd.f32 %v1702, %v1619
    %v1718 = vadd.f32 %v1706, %v1621
    %v1719 = vadd.f32 %v1710, %v1695
    %v1720 = vld [vmem:[%s1525 + $0x1] sm:$0xff]
    %v1721 = vld [vmem:[%s1525 + $0x9] sm:$0x3f]
    %v1722 = vld [vmem:[%s301] sm:$0xff]
    %v1723 = vld [vmem:[%s301 + $0x8] sm:$0xff]
    %v1724 = vld [vmem:[%s301 + $0x10] sm:$0xff]
    %v1725 = vld [vmem:[%s301 + $0x18] sm:$0xff]
    %v1726 = vld [vmem:[%s301 + $0x20] sm:$0xff]
    %v1727 = vld [vmem:[%s301 + $0x28] sm:$0xff]
    %v1728 = vld [vmem:[%s301 + $0x30] sm:$0xff]
    %v1729 = vld [vmem:[%s301 + $0x38] sm:$0xff]
    %v1730 = vld [vmem:[%s301 + $0x40] sm:$0xff]
    %v1731 = vld [vmem:[%s301 + $0x48] sm:$0xff]
    %v1732 = vld [vmem:[%s301 + $0x50] sm:$0xff]
    %v1733 = vld [vmem:[%s301 + $0x58] sm:$0xff]
    %v1735 = vsel %vm118, %v1720, 0
    %v1738 = vsel %vm118, %v1721, 0
    %1740 = vmatprep.subr.mxu0 %v1723
    %1741 = vmatpush1.msra.mxu0 %v1722
    %1742 = vmatprep.subr.mxu0 %v1726
    %1743 = vmatpush1.msra.mxu0 %v1725
    %1744 = vmatprep.subr.mxu0 %v1729
    %1745 = vmatpush1.msra.mxu0 %v1728
    %1746 = vmatprep.subr.mxu0 %v1732
    %1747 = vmatpush1.msra.mxu0 %v1731
    %1748 = vmatprep.subr.mxu0 0.0
    %1749 = vmatpush1.msra.mxu0 0.0
    %1750 = vmatprep.subr.mxu0 0.0
    %1751 = vmatpush1.msra.mxu0 0.0
    %1752 = vmatprep.subr.mxu0 0.0
    %1753 = vmatpush1.msra.mxu0 0.0
    %1754 = vmatprep.subr.mxu0 0.0
    %1755 = vmatpush1.msra.mxu0 0.0
    %1756 = vmatprep.subr.mxu0 0.0
    %1757 = vmatpush1.msra.mxu0 0.0
    %1758 = vmatprep.subr.mxu0 0.0
    %1759 = vmatpush1.msra.mxu0 0.0
    %1760 = vmatprep.subr.mxu0 0.0
    %1761 = vmatpush1.msra.mxu0 0.0
    %1762 = vmatprep.subr.mxu0 0.0
    %1763 = vmatpush1.msra.mxu0 0.0
    %1764 = vmatprep.subr.mxu0 0.0
    %1765 = vmatpush1.msra.mxu0 0.0
    %1766 = vmatprep.subr.mxu0 0.0
    %1767 = vmatpush1.msra.mxu0 0.0
    %1768 = vmatprep.subr.mxu0 0.0
    %1769 = vmatpush1.msra.mxu0 0.0
    %1770 = vmatprep.subr.mxu0 0.0
    %1771 = vmatpush1.msra.mxu0 0.0
    %1772 = vmatprep.subr.mxu0 0.0
    %1773 = vmatpush1.msra.mxu0 0.0
    %1774 = vmatprep.subr.mxu0 0.0
    %1775 = vmatpush1.msra.mxu0 0.0
    %1776 = vmatprep.subr.mxu0 0.0
    %1777 = vmatpush1.msra.mxu0 0.0
    %1778 = vmatprep.subr.mxu0 0.0
    %1779 = vmatpush1.msra.mxu0 0.0
    %1780 = vmatprep.subr.mxu0 0.0
    %1781 = vmatpush1.msra.mxu0 0.0
    %1782 = vmatprep.subr.mxu0 0.0
    %1783 = vmatpush1.msra.mxu0 0.0
    %1784 = vmatprep.subr.mxu0 0.0
    %1785 = vmatpush1.msra.mxu0 0.0
    %1786 = vmatprep.subr.mxu0 0.0
    %1787 = vmatpush1.msra.mxu0 0.0
    %1788 = vmatprep.subr.mxu0 0.0
    %1789 = vmatpush1.msra.mxu0 0.0
    %1790 = vmatprep.subr.mxu0 0.0
    %1791 = vmatpush1.msra.mxu0 0.0
    %1792 = vmatprep.subr.mxu0 0.0
    %1793 = vmatpush1.msra.mxu0 0.0
    %1794 = vmatprep.subr.mxu0 0.0
    %1795 = vmatpush1.msra.mxu0 0.0
    %1796 = vmatprep.subr.mxu0 0.0
    %1797 = vmatpush1.msra.mxu0 0.0
    %1798 = vmatprep.subr.mxu0 0.0
    %1799 = vmatpush1.msra.mxu0 0.0
    %1800 = vmatprep.subr.mxu0 0.0
    %1801 = vmatpush1.msra.mxu0 0.0
    %1802 = vmatprep.subr.mxu0 0.0
    %1803 = vmatpush1.msra.mxu0 0.0
    %1804 = vmatprep.mubr.f32.mxu0 0.0
    %1805 = vmatmul.mubr.f32.gmra.mrb[0].mxu0 %v1735
    %v1806 = vpop.f32.mrb[0].mxu0
    %v1807 = vadd.f32 0.0, %v1806
    %v1808 = vpop.f32.mrb[0].mxu0
    %v1809 = vadd.f32 0.0, %v1808
    %1810 = vmatprep.mubr.f32.mxu0 0.0
    %1811 = vmatmul.mubr.f32.gmra.mrb[0].mxu0 %v1738
    %v1812 = vpop.f32.mrb[0].mxu0
    %v1813 = vadd.f32 0.0, %v1812
    %v1814 = vpop.f32.mrb[0].mxu0
    %v1815 = vadd.f32 0.0, %v1814
    %1816 = vdwg.mxu0
    %1817 = vmatprep.subr.mxu0 0.0
    %1818 = vmatpush1.msra.mxu0 %v1724
    %1819 = vmatprep.subr.mxu0 0.0
    %1820 = vmatpush1.msra.mxu0 %v1727
    %1821 = vmatprep.subr.mxu0 0.0
    %1822 = vmatpush1.msra.mxu0 %v1730
    %1823 = vmatprep.subr.mxu0 0.0
    %1824 = vmatpush1.msra.mxu0 %v1733
    %1825 = vmatprep.subr.mxu0 0.0
    %1826 = vmatpush1.msra.mxu0 0.0
    %1827 = vmatprep.subr.mxu0 0.0
    %1828 = vmatpush1.msra.mxu0 0.0
    %1829 = vmatprep.subr.mxu0 0.0
    %1830 = vmatpush1.msra.mxu0 0.0
    %1831 = vmatprep.subr.mxu0 0.0
    %1832 = vmatpush1.msra.mxu0 0.0
    %1833 = vmatprep.subr.mxu0 0.0
    %1834 = vmatpush1.msra.mxu0 0.0
    %1835 = vmatprep.subr.mxu0 0.0
    %1836 = vmatpush1.msra.mxu0 0.0
    %1837 = vmatprep.subr.mxu0 0.0
    %1838 = vmatpush1.msra.mxu0 0.0
    %1839 = vmatprep.subr.mxu0 0.0
    %1840 = vmatpush1.msra.mxu0 0.0
    %1841 = vmatprep.subr.mxu0 0.0
    %1842 = vmatpush1.msra.mxu0 0.0
    %1843 = vmatprep.subr.mxu0 0.0
    %1844 = vmatpush1.msra.mxu0 0.0
    %1845 = vmatprep.subr.mxu0 0.0
    %1846 = vmatpush1.msra.mxu0 0.0
    %1847 = vmatprep.subr.mxu0 0.0
    %1848 = vmatpush1.msra.mxu0 0.0
    %1849 = vmatprep.subr.mxu0 0.0
    %1850 = vmatpush1.msra.mxu0 0.0
    %1851 = vmatprep.subr.mxu0 0.0
    %1852 = vmatpush1.msra.mxu0 0.0
    %1853 = vmatprep.subr.mxu0 0.0
    %1854 = vmatpush1.msra.mxu0 0.0
    %1855 = vmatprep.subr.mxu0 0.0
    %1856 = vmatpush1.msra.mxu0 0.0
    %1857 = vmatprep.subr.mxu0 0.0
    %1858 = vmatpush1.msra.mxu0 0.0
    %1859 = vmatprep.subr.mxu0 0.0
    %1860 = vmatpush1.msra.mxu0 0.0
    %1861 = vmatprep.subr.mxu0 0.0
    %1862 = vmatpush1.msra.mxu0 0.0
    %1863 = vmatprep.subr.mxu0 0.0
    %1864 = vmatpush1.msra.mxu0 0.0
    %1865 = vmatprep.subr.mxu0 0.0
    %1866 = vmatpush1.msra.mxu0 0.0
    %1867 = vmatprep.subr.mxu0 0.0
    %1868 = vmatpush1.msra.mxu0 0.0
    %1869 = vmatprep.subr.mxu0 0.0
    %1870 = vmatpush1.msra.mxu0 0.0
    %1871 = vmatprep.subr.mxu0 0.0
    %1872 = vmatpush1.msra.mxu0 0.0
    %1873 = vmatprep.subr.mxu0 0.0
    %1874 = vmatpush1.msra.mxu0 0.0
    %1875 = vmatprep.subr.mxu0 0.0
    %1876 = vmatpush1.msra.mxu0 0.0
    %1877 = vmatprep.subr.mxu0 0.0
    %1878 = vmatpush1.msra.mxu0 0.0
    %1879 = vmatprep.subr.mxu0 0.0
    %1880 = vmatpush1.msra.mxu0 0.0
    %1881 = vmatprep.mubr.f32.mxu0 0.0
    %1882 = vmatmul.mubr.f32.gmra.mrb[0].mxu0 %v1735
    %v1883 = vpop.f32.mrb[0].mxu0
    %v1884 = vadd.f32 0.0, %v1883
    %v1885 = vpop.f32.mrb[0].mxu0
    %1886 = vmatprep.mubr.f32.mxu0 0.0
    %1887 = vmatmul.mubr.f32.gmra.mrb[0].mxu0 %v1738
    %v1888 = vpop.f32.mrb[0].mxu0
    %v1889 = vadd.f32 0.0, %v1888
    %v1890 = vpop.f32.mrb[0].mxu0
    %1891 = vdwg.mxu0
    %v1892 = vadd.f32 %v1714, %v1807
    %v1893 = vadd.f32 %v1715, %v1809
    %v1894 = vadd.f32 %v1716, %v1884
    %v1895 = vadd.f32 %v1717, %v1813
    %v1896 = vadd.f32 %v1718, %v1815
    %v1897 = vadd.f32 %v1719, %v1889
    %v1898 = vld [vmem:[%s1525 + $0x2] sm:$0xff]
    %v1899 = vld [vmem:[%s1525 + $0xa] sm:$0x3f]
    %v1900 = vld [vmem:[%s480] sm:$0xff]
    %v1901 = vld [vmem:[%s480 + $0x8] sm:$0xff]
    %v1902 = vld [vmem:[%s480 + $0x10] sm:$0xff]
    %v1903 = vld [vmem:[%s480 + $0x18] sm:$0xff]
    %v1904 = vld [vmem:[%s480 + $0x20] sm:$0xff]
    %v1905 = vld [vmem:[%s480 + $0x28] sm:$0xff]
    %v1906 = vld [vmem:[%s480 + $0x30] sm:$0xff]
    %v1907 = vld [vmem:[%s480 + $0x38] sm:$0xff]
    %v1908 = vld [vmem:[%s480 + $0x40] sm:$0xff]
    %v1909 = vld [vmem:[%s480 + $0x48] sm:$0xff]
    %v1910 = vld [vmem:[%s480 + $0x50] sm:$0xff]
    %v1911 = vld [vmem:[%s480 + $0x58] sm:$0xff]
    %v1913 = vsel %vm118, %v1898, 0
    %v1916 = vsel %vm118, %v1899, 0
    %1918 = vmatprep.subr.mxu0 %v1901
    %1919 = vmatpush1.msra.mxu0 %v1900
    %1920 = vmatprep.subr.mxu0 %v1904
    %1921 = vmatpush1.msra.mxu0 %v1903
    %1922 = vmatprep.subr.mxu0 %v1907
    %1923 = vmatpush1.msra.mxu0 %v1906
    %1924 = vmatprep.subr.mxu0 %v1910
    %1925 = vmatpush1.msra.mxu0 %v1909
    %1926 = vmatprep.subr.mxu0 0.0
    %1927 = vmatpush1.msra.mxu0 0.0
    %1928 = vmatprep.subr.mxu0 0.0
    %1929 = vmatpush1.msra.mxu0 0.0
    %1930 = vmatprep.subr.mxu0 0.0
    %1931 = vmatpush1.msra.mxu0 0.0
    %1932 = vmatprep.subr.mxu0 0.0
    %1933 = vmatpush1.msra.mxu0 0.0
    %1934 = vmatprep.subr.mxu0 0.0
    %1935 = vmatpush1.msra.mxu0 0.0
    %1936 = vmatprep.subr.mxu0 0.0
    %1937 = vmatpush1.msra.mxu0 0.0
    %1938 = vmatprep.subr.mxu0 0.0
    %1939 = vmatpush1.msra.mxu0 0.0
    %1940 = vmatprep.subr.mxu0 0.0
    %1941 = vmatpush1.msra.mxu0 0.0
    %1942 = vmatprep.subr.mxu0 0.0
    %1943 = vmatpush1.msra.mxu0 0.0
    %1944 = vmatprep.subr.mxu0 0.0
    %1945 = vmatpush1.msra.mxu0 0.0
    %1946 = vmatprep.subr.mxu0 0.0
    %1947 = vmatpush1.msra.mxu0 0.0
    %1948 = vmatprep.subr.mxu0 0.0
    %1949 = vmatpush1.msra.mxu0 0.0
    %1950 = vmatprep.subr.mxu0 0.0
    %1951 = vmatpush1.msra.mxu0 0.0
    %1952 = vmatprep.subr.mxu0 0.0
    %1953 = vmatpush1.msra.mxu0 0.0
    %1954 = vmatprep.subr.mxu0 0.0
    %1955 = vmatpush1.msra.mxu0 0.0
    %1956 = vmatprep.subr.mxu0 0.0
    %1957 = vmatpush1.msra.mxu0 0.0
    %1958 = vmatprep.subr.mxu0 0.0
    %1959 = vmatpush1.msra.mxu0 0.0
    %1960 = vmatprep.subr.mxu0 0.0
    %1961 = vmatpush1.msra.mxu0 0.0
    %1962 = vmatprep.subr.mxu0 0.0
    %1963 = vmatpush1.msra.mxu0 0.0
    %1964 = vmatprep.subr.mxu0 0.0
    %1965 = vmatpush1.msra.mxu0 0.0
    %1966 = vmatprep.subr.mxu0 0.0
    %1967 = vmatpush1.msra.mxu0 0.0
    %1968 = vmatprep.subr.mxu0 0.0
    %1969 = vmatpush1.msra.mxu0 0.0
    %1970 = vmatprep.subr.mxu0 0.0
    %1971 = vmatpush1.msra.mxu0 0.0
    %1972 = vmatprep.subr.mxu0 0.0
    %1973 = vmatpush1.msra.mxu0 0.0
    %1974 = vmatprep.subr.mxu0 0.0
    %1975 = vmatpush1.msra.mxu0 0.0
    %1976 = vmatprep.subr.mxu0 0.0
    %1977 = vmatpush1.msra.mxu0 0.0
    %1978 = vmatprep.subr.mxu0 0.0
    %1979 = vmatpush1.msra.mxu0 0.0
    %1980 = vmatprep.subr.mxu0 0.0
    %1981 = vmatpush1.msra.mxu0 0.0
    %1982 = vmatprep.mubr.f32.mxu0 0.0
    %1983 = vmatmul.mubr.f32.gmra.mrb[0].mxu0 %v1913
    %v1984 = vpop.f32.mrb[0].mxu0
    %v1985 = vadd.f32 0.0, %v1984
    %v1986 = vpop.f32.mrb[0].mxu0
    %v1987 = vadd.f32 0.0, %v1986
    %1988 = vmatprep.mubr.f32.mxu0 0.0
    %1989 = vmatmul.mubr.f32.gmra.mrb[0].mxu0 %v1916
    %v1990 = vpop.f32.mrb[0].mxu0
    %v1991 = vadd.f32 0.0, %v1990
    %v1992 = vpop.f32.mrb[0].mxu0
    %v1993 = vadd.f32 0.0, %v1992
    %1994 = vdwg.mxu0
    %1995 = vmatprep.subr.mxu0 0.0
    %1996 = vmatpush1.msra.mxu0 %v1902
    %1997 = vmatprep.subr.mxu0 0.0
    %1998 = vmatpush1.msra.mxu0 %v1905
    %1999 = vmatprep.subr.mxu0 0.0
    %2000 = vmatpush1.msra.mxu0 %v1908
    %2001 = vmatprep.subr.mxu0 0.0
    %2002 = vmatpush1.msra.mxu0 %v1911
    %2003 = vmatprep.subr.mxu0 0.0
    %2004 = vmatpush1.msra.mxu0 0.0
    %2005 = vmatprep.subr.mxu0 0.0
    %2006 = vmatpush1.msra.mxu0 0.0
    %2007 = vmatprep.subr.mxu0 0.0
    %2008 = vmatpush1.msra.mxu0 0.0
    %2009 = vmatprep.subr.mxu0 0.0
    %2010 = vmatpush1.msra.mxu0 0.0
    %2011 = vmatprep.subr.mxu0 0.0
    %2012 = vmatpush1.msra.mxu0 0.0
    %2013 = vmatprep.subr.mxu0 0.0
    %2014 = vmatpush1.msra.mxu0 0.0
    %2015 = vmatprep.subr.mxu0 0.0
    %2016 = vmatpush1.msra.mxu0 0.0
    %2017 = vmatprep.subr.mxu0 0.0
    %2018 = vmatpush1.msra.mxu0 0.0
    %2019 = vmatprep.subr.mxu0 0.0
    %2020 = vmatpush1.msra.mxu0 0.0
    %2021 = vmatprep.subr.mxu0 0.0
    %2022 = vmatpush1.msra.mxu0 0.0
    %2023 = vmatprep.subr.mxu0 0.0
    %2024 = vmatpush1.msra.mxu0 0.0
    %2025 = vmatprep.subr.mxu0 0.0
    %2026 = vmatpush1.msra.mxu0 0.0
    %2027 = vmatprep.subr.mxu0 0.0
    %2028 = vmatpush1.msra.mxu0 0.0
    %2029 = vmatprep.subr.mxu0 0.0
    %2030 = vmatpush1.msra.mxu0 0.0
    %2031 = vmatprep.subr.mxu0 0.0
    %2032 = vmatpush1.msra.mxu0 0.0
    %2033 = vmatprep.subr.mxu0 0.0
    %2034 = vmatpush1.msra.mxu0 0.0
    %2035 = vmatprep.subr.mxu0 0.0
    %2036 = vmatpush1.msra.mxu0 0.0
    %2037 = vmatprep.subr.mxu0 0.0
    %2038 = vmatpush1.msra.mxu0 0.0
    %2039 = vmatprep.subr.mxu0 0.0
    %2040 = vmatpush1.msra.mxu0 0.0
    %2041 = vmatprep.subr.mxu0 0.0
    %2042 = vmatpush1.msra.mxu0 0.0
    %2043 = vmatprep.subr.mxu0 0.0
    %2044 = vmatpush1.msra.mxu0 0.0
    %2045 = vmatprep.subr.mxu0 0.0
    %2046 = vmatpush1.msra.mxu0 0.0
    %2047 = vmatprep.subr.mxu0 0.0
    %2048 = vmatpush1.msra.mxu0 0.0
    %2049 = vmatprep.subr.mxu0 0.0
    %2050 = vmatpush1.msra.mxu0 0.0
    %2051 = vmatprep.subr.mxu0 0.0
    %2052 = vmatpush1.msra.mxu0 0.0
    %2053 = vmatprep.subr.mxu0 0.0
    %2054 = vmatpush1.msra.mxu0 0.0
    %2055 = vmatprep.subr.mxu0 0.0
    %2056 = vmatpush1.msra.mxu0 0.0
    %2057 = vmatprep.subr.mxu0 0.0
    %2058 = vmatpush1.msra.mxu0 0.0
    %2059 = vmatprep.mubr.f32.mxu0 0.0
    %2060 = vmatmul.mubr.f32.gmra.mrb[0].mxu0 %v1913
    %v2061 = vpop.f32.mrb[0].mxu0
    %v2062 = vadd.f32 0.0, %v2061
    %v2063 = vpop.f32.mrb[0].mxu0
    %2064 = vmatprep.mubr.f32.mxu0 0.0
    %2065 = vmatmul.mubr.f32.gmra.mrb[0].mxu0 %v1916
    %v2066 = vpop.f32.mrb[0].mxu0
    %v2067 = vadd.f32 0.0, %v2066
    %v2068 = vpop.f32.mrb[0].mxu0
    %2069 = vdwg.mxu0
    %v2070 = vadd.f32 %v1892, %v1985
    %v2071 = vadd.f32 %v1893, %v1987
    %v2072 = vadd.f32 %v1894, %v2062
    %v2073 = vadd.f32 %v1895, %v1991
    %v2074 = vadd.f32 %v1896, %v1993
    %v2075 = vadd.f32 %v1897, %v2067
    %v2076 = vxor.u32 %v2071, 2147483648
    %v2077 = vxor.u32 %v2074, 2147483648
    %v2078 = vmul.f32 %v2076, 1.442695
    %v2079 = vpow.pop %v2078
    %v2080 = vmul.f32 %v2077, 1.442695
    %v2081 = vpow.pop %v2080
    %v2082 = vadd.f32 %v2079, 1.0
    %v2083 = vadd.f32 %v2081, 1.0
    %v2084 = vrcp.pop %v2082
    %v2085 = vmul.f32 1.0, %v2084
    %v2086 = vrcp.pop %v2083
    %v2087 = vmul.f32 1.0, %v2086
    %v2088 = vadd.f32 %v2070, %v2085
    %v2089 = vadd.f32 %v2073, %v2087
    %v2090 = vadd.f32 %v2088, %v2072
    %v2091 = vadd.f32 %v2089, %v2075
    %v2092 = vmax.f32 %v2090, 0.0
    %v2093 = vmax.f32 %v2091, 0.0
    %v2094 = vld [vmem:[#allocation6] sm:$0xff]
    %v2095 = vld [vmem:[#allocation6 + $0x8] sm:$0xff]
    %v2096 = vld [vmem:[#allocation6 + $0x10] sm:$0xff]
    %v2097 = vld [vmem:[#allocation6 + $0x18] sm:$0xff]
    %v2098 = vld [vmem:[#allocation6 + $0x20] sm:$0xff]
    %v2099 = vld [vmem:[#allocation6 + $0x28] sm:$0xff]
    %v2100 = vld [vmem:[#allocation6 + $0x30] sm:$0xff]
    %v2101 = vld [vmem:[#allocation6 + $0x38] sm:$0xff]
    %v2102 = vld [vmem:[#allocation6 + $0x40] sm:$0xff]
    %v2103 = vld [vmem:[#allocation6 + $0x48] sm:$0xff]
    %v2104 = vld [vmem:[#allocation6 + $0x50] sm:$0xff]
    %v2105 = vld [vmem:[#allocation6 + $0x58] sm:$0xff]
    %v2106 = vld [vmem:[#allocation6 + $0x60] sm:$0xff]
    %v2107 = vld [vmem:[#allocation6 + $0x68] sm:$0xff]
    %v2108 = vld [vmem:[#allocation6 + $0x70] sm:$0xff]
    %v2109 = vld [vmem:[#allocation6 + $0x78] sm:$0xff]
    %2110 = vmatprep.subr.mxu0 0.0
    %2111 = vmatpush1.msra.mxu0 %v2094
    %2112 = vmatprep.subr.mxu0 0.0
    %2113 = vmatpush1.msra.mxu0 %v2095
    %2114 = vmatprep.subr.mxu0 0.0
    %2115 = vmatpush1.msra.mxu0 %v2096
    %2116 = vmatprep.subr.mxu0 0.0
    %2117 = vmatpush1.msra.mxu0 %v2097
    %2118 = vmatprep.subr.mxu0 0.0
    %2119 = vmatpush1.msra.mxu0 %v2098
    %2120 = vmatprep.subr.mxu0 0.0
    %2121 = vmatpush1.msra.mxu0 %v2099
    %2122 = vmatprep.subr.mxu0 0.0
    %2123 = vmatpush1.msra.mxu0 %v2100
    %2124 = vmatprep.subr.mxu0 0.0
    %2125 = vmatpush1.msra.mxu0 %v2101
    %2126 = vmatprep.subr.mxu0 0.0
    %2127 = vmatpush1.msra.mxu0 %v2102
    %2128 = vmatprep.subr.mxu0 0.0
    %2129 = vmatpush1.msra.mxu0 %v2103
    %2130 = vmatprep.subr.mxu0 0.0
    %2131 = vmatpush1.msra.mxu0 %v2104
    %2132 = vmatprep.subr.mxu0 0.0
    %2133 = vmatpush1.msra.mxu0 %v2105
    %2134 = vmatprep.subr.mxu0 0.0
    %2135 = vmatpush1.msra.mxu0 %v2106
    %2136 = vmatprep.subr.mxu0 0.0
    %2137 = vmatpush1.msra.mxu0 %v2107
    %2138 = vmatprep.subr.mxu0 0.0
    %2139 = vmatpush1.msra.mxu0 %v2108
    %2140 = vmatprep.subr.mxu0 0.0
    %2141 = vmatpush1.msra.mxu0 %v2109
    %2142 = vmatprep.subr.mxu0 0.0
    %2143 = vmatpush1.msra.mxu0 0.0
    %2144 = vmatprep.subr.mxu0 0.0
    %2145 = vmatpush1.msra.mxu0 0.0
    %2146 = vmatprep.subr.mxu0 0.0
    %2147 = vmatpush1.msra.mxu0 0.0
    %2148 = vmatprep.subr.mxu0 0.0
    %2149 = vmatpush1.msra.mxu0 0.0
    %2150 = vmatprep.subr.mxu0 0.0
    %2151 = vmatpush1.msra.mxu0 0.0
    %2152 = vmatprep.subr.mxu0 0.0
    %2153 = vmatpush1.msra.mxu0 0.0
    %2154 = vmatprep.subr.mxu0 0.0
    %2155 = vmatpush1.msra.mxu0 0.0
    %2156 = vmatprep.subr.mxu0 0.0
    %2157 = vmatpush1.msra.mxu0 0.0
    %2158 = vmatprep.subr.mxu0 0.0
    %2159 = vmatpush1.msra.mxu0 0.0
    %2160 = vmatprep.subr.mxu0 0.0
    %2161 = vmatpush1.msra.mxu0 0.0
    %2162 = vmatprep.subr.mxu0 0.0
    %2163 = vmatpush1.msra.mxu0 0.0
    %2164 = vmatprep.subr.mxu0 0.0
    %2165 = vmatpush1.msra.mxu0 0.0
    %2166 = vmatprep.subr.mxu0 0.0
    %2167 = vmatpush1.msra.mxu0 0.0
    %2168 = vmatprep.subr.mxu0 0.0
    %2169 = vmatpush1.msra.mxu0 0.0
    %2170 = vmatprep.subr.mxu0 0.0
    %2171 = vmatpush1.msra.mxu0 0.0
    %2172 = vmatprep.subr.mxu0 0.0
    %2173 = vmatpush1.msra.mxu0 0.0
    %2174 = vmatprep.mubr.f32.mxu0 0.0
    %2175 = vmatmul.mubr.f32.gmra.mrb[0].mxu0 %v2092
    %v2176 = vpop.f32.mrb[0].mxu0
    %v2177 = vadd.f32 0.0, %v2176
    %v2178 = vpop.f32.mrb[0].mxu0
    %2179 = vmatprep.mubr.f32.mxu0 0.0
    %2180 = vmatmul.mubr.f32.gmra.mrb[0].mxu0 %v2093
    %v2181 = vpop.f32.mrb[0].mxu0
    %v2182 = vadd.f32 0.0, %v2181
    %v2183 = vpop.f32.mrb[0].mxu0
    %2184 = vdwg.mxu0
    %v2185 = vld [vmem:[#allocation8] sm:$0xff]
    %v2186 = vld [vmem:[#allocation8 + $0x8] sm:$0xff]
    %v2187 = vld [vmem:[#allocation8 + $0x10] sm:$0xff]
    %v2188 = vld [vmem:[#allocation8 + $0x18] sm:$0xff]
    %v2189 = vld [vmem:[#allocation8 + $0x20] sm:$0xff]
    %v2190 = vld [vmem:[#allocation8 + $0x28] sm:$0xff]
    %v2191 = vld [vmem:[#allocation8 + $0x30] sm:$0xff]
    %v2192 = vld [vmem:[#allocation8 + $0x38] sm:$0xff]
    %v2193 = vld [vmem:[#allocation8 + $0x40] sm:$0xff]
    %v2194 = vld [vmem:[#allocation8 + $0x48] sm:$0xff]
    %v2195 = vld [vmem:[#allocation8 + $0x50] sm:$0xff]
    %v2196 = vld [vmem:[#allocation8 + $0x58] sm:$0xff]
    %v2197 = vld [vmem:[#allocation8 + $0x60] sm:$0xff]
    %v2198 = vld [vmem:[#allocation8 + $0x68] sm:$0xff]
    %v2199 = vld [vmem:[#allocation8 + $0x70] sm:$0xff]
    %v2200 = vld [vmem:[#allocation8 + $0x78] sm:$0xff]
    %2201 = vmatprep.subr.mxu0 0.0
    %2202 = vmatpush1.msra.mxu0 %v2185
    %2203 = vmatprep.subr.mxu0 0.0
    %2204 = vmatpush1.msra.mxu0 %v2186
    %2205 = vmatprep.subr.mxu0 0.0
    %2206 = vmatpush1.msra.mxu0 %v2187
    %2207 = vmatprep.subr.mxu0 0.0
    %2208 = vmatpush1.msra.mxu0 %v2188
    %2209 = vmatprep.subr.mxu0 0.0
    %2210 = vmatpush1.msra.mxu0 %v2189
    %2211 = vmatprep.subr.mxu0 0.0
    %2212 = vmatpush1.msra.mxu0 %v2190
    %2213 = vmatprep.subr.mxu0 0.0
    %2214 = vmatpush1.msra.mxu0 %v2191
    %2215 = vmatprep.subr.mxu0 0.0
    %2216 = vmatpush1.msra.mxu0 %v2192
    %2217 = vmatprep.subr.mxu0 0.0
    %2218 = vmatpush1.msra.mxu0 %v2193
    %2219 = vmatprep.subr.mxu0 0.0
    %2220 = vmatpush1.msra.mxu0 %v2194
    %2221 = vmatprep.subr.mxu0 0.0
    %2222 = vmatpush1.msra.mxu0 %v2195
    %2223 = vmatprep.subr.mxu0 0.0
    %2224 = vmatpush1.msra.mxu0 %v2196
    %2225 = vmatprep.subr.mxu0 0.0
    %2226 = vmatpush1.msra.mxu0 %v2197
    %2227 = vmatprep.subr.mxu0 0.0
    %2228 = vmatpush1.msra.mxu0 %v2198
    %2229 = vmatprep.subr.mxu0 0.0
    %2230 = vmatpush1.msra.mxu0 %v2199
    %2231 = vmatprep.subr.mxu0 0.0
    %2232 = vmatpush1.msra.mxu0 %v2200
    %2233 = vmatprep.subr.mxu0 0.0
    %2234 = vmatpush1.msra.mxu0 0.0
    %2235 = vmatprep.subr.mxu0 0.0
    %2236 = vmatpush1.msra.mxu0 0.0
    %2237 = vmatprep.subr.mxu0 0.0
    %2238 = vmatpush1.msra.mxu0 0.0
    %2239 = vmatprep.subr.mxu0 0.0
    %2240 = vmatpush1.msra.mxu0 0.0
    %2241 = vmatprep.subr.mxu0 0.0
    %2242 = vmatpush1.msra.mxu0 0.0
    %2243 = vmatprep.subr.mxu0 0.0
    %2244 = vmatpush1.msra.mxu0 0.0
    %2245 = vmatprep.subr.mxu0 0.0
    %2246 = vmatpush1.msra.mxu0 0.0
    %2247 = vmatprep.subr.mxu0 0.0
    %2248 = vmatpush1.msra.mxu0 0.0
    %2249 = vmatprep.subr.mxu0 0.0
    %2250 = vmatpush1.msra.mxu0 0.0
    %2251 = vmatprep.subr.mxu0 0.0
    %2252 = vmatpush1.msra.mxu0 0.0
    %2253 = vmatprep.subr.mxu0 0.0
    %2254 = vmatpush1.msra.mxu0 0.0
    %2255 = vmatprep.subr.mxu0 0.0
    %2256 = vmatpush1.msra.mxu0 0.0
    %2257 = vmatprep.subr.mxu0 0.0
    %2258 = vmatpush1.msra.mxu0 0.0
    %2259 = vmatprep.subr.mxu0 0.0
    %2260 = vmatpush1.msra.mxu0 0.0
    %2261 = vmatprep.subr.mxu0 0.0
    %2262 = vmatpush1.msra.mxu0 0.0
    %2263 = vmatprep.subr.mxu0 0.0
    %2264 = vmatpush1.msra.mxu0 0.0
    %2265 = vmatprep.mubr.f32.mxu0 0.0
    %2266 = vmatmul.mubr.f32.gmra.mrb[0].mxu0 %v2177
    %v2267 = vpop.f32.mrb[0].mxu0
    %v2268 = vadd.f32 0.0, %v2267
    %v2269 = vpop.f32.mrb[0].mxu0
    %2270 = vmatprep.mubr.f32.mxu0 0.0
    %2271 = vmatmul.mubr.f32.gmra.mrb[0].mxu0 %v2182
    %v2272 = vpop.f32.mrb[0].mxu0
    %v2273 = vadd.f32 0.0, %v2272
    %v2274 = vpop.f32.mrb[0].mxu0
    %2275 = vdwg.mxu0
    %v2276 = vmax.f32 %v2268, 0.0
    %v2277 = vmax.f32 %v2273, 0.0
    %2278 = vst [vmem:[#allocation2] sm:$0xff] %v2276
    %2279 = vst [vmem:[#allocation2 + $0x8] sm:$0x3f] %v2277
    %v2280 = vld [vmem:[%s6] sm:$0x7]
    %v2281 = vld [vmem:[#allocation2] sm:$0xff]
    %v2282 = vld [vmem:[#allocation2 + $0x8] sm:$0xf]
    %v2283 = vld [vmem:[#allocation9] sm:$0xff]
    %v2284 = vld [vmem:[#allocation9 + $0x8] sm:$0xff]
    %v2285 = vld [vmem:[#allocation9 + $0x10] sm:$0xff]
    %v2286 = vld [vmem:[#allocation9 + $0x18] sm:$0xff]
    %v2287 = vld [vmem:[#allocation9 + $0x20] sm:$0xff]
    %v2288 = vld [vmem:[#allocation9 + $0x28] sm:$0xff]
    %v2289 = vld [vmem:[#allocation9 + $0x30] sm:$0xff]
    %v2290 = vld [vmem:[#allocation9 + $0x38] sm:$0xff]
    %v2291 = vld [vmem:[#allocation9 + $0x40] sm:$0xff]
    %v2292 = vld [vmem:[#allocation9 + $0x48] sm:$0xff]
    %v2293 = vld [vmem:[#allocation9 + $0x50] sm:$0xff]
    %v2294 = vld [vmem:[#allocation9 + $0x58] sm:$0xff]
    %v2295 = vld [vmem:[#allocation9 + $0x60] sm:$0xff]
    %v2296 = vld [vmem:[#allocation9 + $0x68] sm:$0xff]
    %v2297 = vld [vmem:[#allocation9 + $0x70] sm:$0xff]
    %v2298 = vld [vmem:[#allocation9 + $0x78] sm:$0xff]
    %v2299 = vld [vmem:[#allocation9 + $0x80] sm:$0xff]
    %v2300 = vld [vmem:[#allocation9 + $0x88] sm:$0xff]
    %v2301 = vld [vmem:[#allocation9 + $0x90] sm:$0xff]
    %v2302 = vld [vmem:[#allocation9 + $0x98] sm:$0xff]
    %v2303 = vld [vmem:[#allocation9 + $0xa0] sm:$0xff]
    %v2304 = vld [vmem:[#allocation9 + $0xa8] sm:$0xff]
    %v2305 = vld [vmem:[#allocation9 + $0xb0] sm:$0xff]
    %v2306 = vld [vmem:[#allocation9 + $0xb8] sm:$0xff]
    %v2307 = vld [vmem:[#allocation9 + $0xc0] sm:$0xff]
    %v2308 = vld [vmem:[#allocation9 + $0xc8] sm:$0xff]
    %v2309 = vld [vmem:[#allocation9 + $0xd0] sm:$0xff]
    %v2310 = vld [vmem:[#allocation9 + $0xd8] sm:$0xff]
    %v2311 = vld [vmem:[#allocation9 + $0xe0] sm:$0xff]
    %v2312 = vld [vmem:[#allocation9 + $0xe8] sm:$0xff]
    %v2313 = vld [vmem:[#allocation9 + $0xf0] sm:$0xff]
    %v2314 = vld [vmem:[#allocation9 + $0xf8] sm:$0xff]
    %v2315 = vld [vmem:[#allocation9 + $0x100] sm:$0xff]
    %v2316 = vld [vmem:[#allocation9 + $0x108] sm:$0xff]
    %v2317 = vld [vmem:[#allocation9 + $0x110] sm:$0xff]
    %v2318 = vld [vmem:[#allocation9 + $0x118] sm:$0xff]
    %v2319 = vld [vmem:[#allocation9 + $0x120] sm:$0xff]
    %v2320 = vld [vmem:[#allocation9 + $0x128] sm:$0xff]
    %v2321 = vld [vmem:[#allocation9 + $0x130] sm:$0xff]
    %v2322 = vld [vmem:[#allocation9 + $0x138] sm:$0xff]
    %v2323 = vld [vmem:[#allocation9 + $0x140] sm:$0xff]
    %v2324 = vld [vmem:[#allocation9 + $0x148] sm:$0xff]
    %v2325 = vld [vmem:[#allocation9 + $0x150] sm:$0xff]
    %v2326 = vld [vmem:[#allocation9 + $0x158] sm:$0xff]
    %v2327 = vld [vmem:[#allocation9 + $0x160] sm:$0xff]
    %v2328 = vld [vmem:[#allocation9 + $0x168] sm:$0xff]
    %v2329 = vld [vmem:[#allocation9 + $0x170] sm:$0xff]
    %v2330 = vld [vmem:[#allocation9 + $0x178] sm:$0xff]
    %2331 = vmatprep.subr.mxu0 %v2284
    %2332 = vmatpush1.msra.mxu0 %v2283
    %2333 = vmatprep.subr.mxu0 %v2287
    %2334 = vmatpush1.msra.mxu0 %v2286
    %2335 = vmatprep.subr.mxu0 %v2290
    %2336 = vmatpush1.msra.mxu0 %v2289
    %2337 = vmatprep.subr.mxu0 %v2293
    %2338 = vmatpush1.msra.mxu0 %v2292
    %2339 = vmatprep.subr.mxu0 %v2296
    %2340 = vmatpush1.msra.mxu0 %v2295
    %2341 = vmatprep.subr.mxu0 %v2299
    %2342 = vmatpush1.msra.mxu0 %v2298
    %2343 = vmatprep.subr.mxu0 %v2302
    %2344 = vmatpush1.msra.mxu0 %v2301
    %2345 = vmatprep.subr.mxu0 %v2305
    %2346 = vmatpush1.msra.mxu0 %v2304
    %2347 = vmatprep.subr.mxu0 %v2308
    %2348 = vmatpush1.msra.mxu0 %v2307
    %2349 = vmatprep.subr.mxu0 %v2311
    %2350 = vmatpush1.msra.mxu0 %v2310
    %2351 = vmatprep.subr.mxu0 %v2314
    %2352 = vmatpush1.msra.mxu0 %v2313
    %2353 = vmatprep.subr.mxu0 %v2317
    %2354 = vmatpush1.msra.mxu0 %v2316
    %2355 = vmatprep.subr.mxu0 %v2320
    %2356 = vmatpush1.msra.mxu0 %v2319
    %2357 = vmatprep.subr.mxu0 %v2323
    %2358 = vmatpush1.msra.mxu0 %v2322
    %2359 = vmatprep.subr.mxu0 %v2326
    %2360 = vmatpush1.msra.mxu0 %v2325
    %2361 = vmatprep.subr.mxu0 %v2329
    %2362 = vmatpush1.msra.mxu0 %v2328
    %2363 = vmatprep.subr.mxu0 0.0
    %2364 = vmatpush1.msra.mxu0 0.0
    %2365 = vmatprep.subr.mxu0 0.0
    %2366 = vmatpush1.msra.mxu0 0.0
    %2367 = vmatprep.subr.mxu0 0.0
    %2368 = vmatpush1.msra.mxu0 0.0
    %2369 = vmatprep.subr.mxu0 0.0
    %2370 = vmatpush1.msra.mxu0 0.0
    %2371 = vmatprep.subr.mxu0 0.0
    %2372 = vmatpush1.msra.mxu0 0.0
    %2373 = vmatprep.subr.mxu0 0.0
    %2374 = vmatpush1.msra.mxu0 0.0
    %2375 = vmatprep.subr.mxu0 0.0
    %2376 = vmatpush1.msra.mxu0 0.0
    %2377 = vmatprep.subr.mxu0 0.0
    %2378 = vmatpush1.msra.mxu0 0.0
    %2379 = vmatprep.subr.mxu0 0.0
    %2380 = vmatpush1.msra.mxu0 0.0
    %2381 = vmatprep.subr.mxu0 0.0
    %2382 = vmatpush1.msra.mxu0 0.0
    %2383 = vmatprep.subr.mxu0 0.0
    %2384 = vmatpush1.msra.mxu0 0.0
    %2385 = vmatprep.subr.mxu0 0.0
    %2386 = vmatpush1.msra.mxu0 0.0
    %2387 = vmatprep.subr.mxu0 0.0
    %2388 = vmatpush1.msra.mxu0 0.0
    %2389 = vmatprep.subr.mxu0 0.0
    %2390 = vmatpush1.msra.mxu0 0.0
    %2391 = vmatprep.subr.mxu0 0.0
    %2392 = vmatpush1.msra.mxu0 0.0
    %2393 = vmatprep.subr.mxu0 0.0
    %2394 = vmatpush1.msra.mxu0 0.0
    %2395 = vmatprep.mubr.f32.mxu0 0.0
    %2396 = vmatmul.mubr.f32.gmra.mrb[0].mxu0 %v2281
    %v2397 = vpop.f32.mrb[0].mxu0
    %v2398 = vadd.f32 0.0, %v2397
    %v2399 = vpop.f32.mrb[0].mxu0
    %v2400 = vadd.f32 0.0, %v2399
    %2401 = vmatprep.mubr.f32.mxu0 0.0
    %2402 = vmatmul.mubr.f32.gmra.mrb[0].mxu0 %v2282
    %v2403 = vpop.f32.mrb[0].mxu0
    %v2404 = vadd.f32 0.0, %v2403
    %v2405 = vpop.f32.mrb[0].mxu0
    %v2406 = vadd.f32 0.0, %v2405
    %2407 = vdwg.mxu0
    %2408 = vmatprep.subr.mxu0 0.0
    %2409 = vmatpush1.msra.mxu0 %v2285
    %2410 = vmatprep.subr.mxu0 0.0
    %2411 = vmatpush1.msra.mxu0 %v2288
    %2412 = vmatprep.subr.mxu0 0.0
    %2413 = vmatpush1.msra.mxu0 %v2291
    %2414 = vmatprep.subr.mxu0 0.0
    %2415 = vmatpush1.msra.mxu0 %v2294
    %2416 = vmatprep.subr.mxu0 0.0
    %2417 = vmatpush1.msra.mxu0 %v2297
    %2418 = vmatprep.subr.mxu0 0.0
    %2419 = vmatpush1.msra.mxu0 %v2300
    %2420 = vmatprep.subr.mxu0 0.0
    %2421 = vmatpush1.msra.mxu0 %v2303
    %2422 = vmatprep.subr.mxu0 0.0
    %2423 = vmatpush1.msra.mxu0 %v2306
    %2424 = vmatprep.subr.mxu0 0.0
    %2425 = vmatpush1.msra.mxu0 %v2309
    %2426 = vmatprep.subr.mxu0 0.0
    %2427 = vmatpush1.msra.mxu0 %v2312
    %2428 = vmatprep.subr.mxu0 0.0
    %2429 = vmatpush1.msra.mxu0 %v2315
    %2430 = vmatprep.subr.mxu0 0.0
    %2431 = vmatpush1.msra.mxu0 %v2318
    %2432 = vmatprep.subr.mxu0 0.0
    %2433 = vmatpush1.msra.mxu0 %v2321
    %2434 = vmatprep.subr.mxu0 0.0
    %2435 = vmatpush1.msra.mxu0 %v2324
    %2436 = vmatprep.subr.mxu0 0.0
    %2437 = vmatpush1.msra.mxu0 %v2327
    %2438 = vmatprep.subr.mxu0 0.0
    %2439 = vmatpush1.msra.mxu0 %v2330
    %2440 = vmatprep.subr.mxu0 0.0
    %2441 = vmatpush1.msra.mxu0 0.0
    %2442 = vmatprep.subr.mxu0 0.0
    %2443 = vmatpush1.msra.mxu0 0.0
    %2444 = vmatprep.subr.mxu0 0.0
    %2445 = vmatpush1.msra.mxu0 0.0
    %2446 = vmatprep.subr.mxu0 0.0
    %2447 = vmatpush1.msra.mxu0 0.0
    %2448 = vmatprep.subr.mxu0 0.0
    %2449 = vmatpush1.msra.mxu0 0.0
    %2450 = vmatprep.subr.mxu0 0.0
    %2451 = vmatpush1.msra.mxu0 0.0
    %2452 = vmatprep.subr.mxu0 0.0
    %2453 = vmatpush1.msra.mxu0 0.0
    %2454 = vmatprep.subr.mxu0 0.0
    %2455 = vmatpush1.msra.mxu0 0.0
    %2456 = vmatprep.subr.mxu0 0.0
    %2457 = vmatpush1.msra.mxu0 0.0
    %2458 = vmatprep.subr.mxu0 0.0
    %2459 = vmatpush1.msra.mxu0 0.0
    %2460 = vmatprep.subr.mxu0 0.0
    %2461 = vmatpush1.msra.mxu0 0.0
    %2462 = vmatprep.subr.mxu0 0.0
    %2463 = vmatpush1.msra.mxu0 0.0
    %2464 = vmatprep.subr.mxu0 0.0
    %2465 = vmatpush1.msra.mxu0 0.0
    %2466 = vmatprep.subr.mxu0 0.0
    %2467 = vmatpush1.msra.mxu0 0.0
    %2468 = vmatprep.subr.mxu0 0.0
    %2469 = vmatpush1.msra.mxu0 0.0
    %2470 = vmatprep.subr.mxu0 0.0
    %2471 = vmatpush1.msra.mxu0 0.0
    %2472 = vmatprep.mubr.f32.mxu0 0.0
    %2473 = vmatmul.mubr.f32.gmra.mrb[0].mxu0 %v2281
    %v2474 = vpop.f32.mrb[0].mxu0
    %v2475 = vadd.f32 0.0, %v2474
    %v2476 = vpop.f32.mrb[0].mxu0
    %2477 = vmatprep.mubr.f32.mxu0 0.0
    %2478 = vmatmul.mubr.f32.gmra.mrb[0].mxu0 %v2282
    %v2479 = vpop.f32.mrb[0].mxu0
    %v2480 = vadd.f32 0.0, %v2479
    %v2481 = vpop.f32.mrb[0].mxu0
    %2482 = vdwg.mxu0
    %v2484 = vlaneseq
    %v2485 = vshrl.u32 %v2484, 7
    %v2486 = vsub.s32 0, %v2485
    %v2487 = vrot.slane %v2280, %v2486
    %v2488 = vlaneseq
    %v2489 = vshrl.u32 %v2488, 7
    %v2490 = vsub.s32 1, %v2489
    %v2491 = vrot.slane %v2280, %v2490
    %v2492 = vlaneseq
    %v2493 = vshrl.u32 %v2492, 7
    %v2494 = vsub.s32 2, %v2493
    %v2495 = vrot.slane %v2280, %v2494
    %v2499 = vadd.f32 %v2487, %v2398
    %v2500 = vadd.f32 %v2491, %v2400
    %v2501 = vadd.f32 %v2495, %v2475
    %v2502 = vadd.f32 %v2487, %v2404
    %v2503 = vadd.f32 %v2491, %v2406
    %v2504 = vadd.f32 %v2495, %v2480
    %v2505 = vld [vmem:[#allocation2 + $0x1] sm:$0xff]
    %v2506 = vld [vmem:[#allocation2 + $0x9] sm:$0xf]
    %v2507 = vld [vmem:[%s1088] sm:$0xff]
    %v2508 = vld [vmem:[%s1088 + $0x8] sm:$0xff]
    %v2509 = vld [vmem:[%s1088 + $0x10] sm:$0xff]
    %v2510 = vld [vmem:[%s1088 + $0x18] sm:$0xff]
    %v2511 = vld [vmem:[%s1088 + $0x20] sm:$0xff]
    %v2512 = vld [vmem:[%s1088 + $0x28] sm:$0xff]
    %v2513 = vld [vmem:[%s1088 + $0x30] sm:$0xff]
    %v2514 = vld [vmem:[%s1088 + $0x38] sm:$0xff]
    %v2515 = vld [vmem:[%s1088 + $0x40] sm:$0xff]
    %v2516 = vld [vmem:[%s1088 + $0x48] sm:$0xff]
    %v2517 = vld [vmem:[%s1088 + $0x50] sm:$0xff]
    %v2518 = vld [vmem:[%s1088 + $0x58] sm:$0xff]
    %v2519 = vld [vmem:[%s1088 + $0x60] sm:$0xff]
    %v2520 = vld [vmem:[%s1088 + $0x68] sm:$0xff]
    %v2521 = vld [vmem:[%s1088 + $0x70] sm:$0xff]
    %v2522 = vld [vmem:[%s1088 + $0x78] sm:$0xff]
    %v2523 = vld [vmem:[%s1088 + $0x80] sm:$0xff]
    %v2524 = vld [vmem:[%s1088 + $0x88] sm:$0xff]
    %v2525 = vld [vmem:[%s1088 + $0x90] sm:$0xff]
    %v2526 = vld [vmem:[%s1088 + $0x98] sm:$0xff]
    %v2527 = vld [vmem:[%s1088 + $0xa0] sm:$0xff]
    %v2528 = vld [vmem:[%s1088 + $0xa8] sm:$0xff]
    %v2529 = vld [vmem:[%s1088 + $0xb0] sm:$0xff]
    %v2530 = vld [vmem:[%s1088 + $0xb8] sm:$0xff]
    %v2531 = vld [vmem:[%s1088 + $0xc0] sm:$0xff]
    %v2532 = vld [vmem:[%s1088 + $0xc8] sm:$0xff]
    %v2533 = vld [vmem:[%s1088 + $0xd0] sm:$0xff]
    %v2534 = vld [vmem:[%s1088 + $0xd8] sm:$0xff]
    %v2535 = vld [vmem:[%s1088 + $0xe0] sm:$0xff]
    %v2536 = vld [vmem:[%s1088 + $0xe8] sm:$0xff]
    %v2537 = vld [vmem:[%s1088 + $0xf0] sm:$0xff]
    %v2538 = vld [vmem:[%s1088 + $0xf8] sm:$0xff]
    %v2539 = vld [vmem:[%s1088 + $0x100] sm:$0xff]
    %v2540 = vld [vmem:[%s1088 + $0x108] sm:$0xff]
    %v2541 = vld [vmem:[%s1088 + $0x110] sm:$0xff]
    %v2542 = vld [vmem:[%s1088 + $0x118] sm:$0xff]
    %v2543 = vld [vmem:[%s1088 + $0x120] sm:$0xff]
    %v2544 = vld [vmem:[%s1088 + $0x128] sm:$0xff]
    %v2545 = vld [vmem:[%s1088 + $0x130] sm:$0xff]
    %v2546 = vld [vmem:[%s1088 + $0x138] sm:$0xff]
    %v2547 = vld [vmem:[%s1088 + $0x140] sm:$0xff]
    %v2548 = vld [vmem:[%s1088 + $0x148] sm:$0xff]
    %v2549 = vld [vmem:[%s1088 + $0x150] sm:$0xff]
    %v2550 = vld [vmem:[%s1088 + $0x158] sm:$0xff]
    %v2551 = vld [vmem:[%s1088 + $0x160] sm:$0xff]
    %v2552 = vld [vmem:[%s1088 + $0x168] sm:$0xff]
    %v2553 = vld [vmem:[%s1088 + $0x170] sm:$0xff]
    %v2554 = vld [vmem:[%s1088 + $0x178] sm:$0xff]
    %2555 = vmatprep.subr.mxu0 %v2508
    %2556 = vmatpush1.msra.mxu0 %v2507
    %2557 = vmatprep.subr.mxu0 %v2511
    %2558 = vmatpush1.msra.mxu0 %v2510
    %2559 = vmatprep.subr.mxu0 %v2514
    %2560 = vmatpush1.msra.mxu0 %v2513
    %2561 = vmatprep.subr.mxu0 %v2517
    %2562 = vmatpush1.msra.mxu0 %v2516
    %2563 = vmatprep.subr.mxu0 %v2520
    %2564 = vmatpush1.msra.mxu0 %v2519
    %2565 = vmatprep.subr.mxu0 %v2523
    %2566 = vmatpush1.msra.mxu0 %v2522
    %2567 = vmatprep.subr.mxu0 %v2526
    %2568 = vmatpush1.msra.mxu0 %v2525
    %2569 = vmatprep.subr.mxu0 %v2529
    %2570 = vmatpush1.msra.mxu0 %v2528
    %2571 = vmatprep.subr.mxu0 %v2532
    %2572 = vmatpush1.msra.mxu0 %v2531
    %2573 = vmatprep.subr.mxu0 %v2535
    %2574 = vmatpush1.msra.mxu0 %v2534
    %2575 = vmatprep.subr.mxu0 %v2538
    %2576 = vmatpush1.msra.mxu0 %v2537
    %2577 = vmatprep.subr.mxu0 %v2541
    %2578 = vmatpush1.msra.mxu0 %v2540
    %2579 = vmatprep.subr.mxu0 %v2544
    %2580 = vmatpush1.msra.mxu0 %v2543
    %2581 = vmatprep.subr.mxu0 %v2547
    %2582 = vmatpush1.msra.mxu0 %v2546
    %2583 = vmatprep.subr.mxu0 %v2550
    %2584 = vmatpush1.msra.mxu0 %v2549
    %2585 = vmatprep.subr.mxu0 %v2553
    %2586 = vmatpush1.msra.mxu0 %v2552
    %2587 = vmatprep.subr.mxu0 0.0
    %2588 = vmatpush1.msra.mxu0 0.0
    %2589 = vmatprep.subr.mxu0 0.0
    %2590 = vmatpush1.msra.mxu0 0.0
    %2591 = vmatprep.subr.mxu0 0.0
    %2592 = vmatpush1.msra.mxu0 0.0
    %2593 = vmatprep.subr.mxu0 0.0
    %2594 = vmatpush1.msra.mxu0 0.0
    %2595 = vmatprep.subr.mxu0 0.0
    %2596 = vmatpush1.msra.mxu0 0.0
    %2597 = vmatprep.subr.mxu0 0.0
    %2598 = vmatpush1.msra.mxu0 0.0
    %2599 = vmatprep.subr.mxu0 0.0
    %2600 = vmatpush1.msra.mxu0 0.0
    %2601 = vmatprep.subr.mxu0 0.0
    %2602 = vmatpush1.msra.mxu0 0.0
    %2603 = vmatprep.subr.mxu0 0.0
    %2604 = vmatpush1.msra.mxu0 0.0
    %2605 = vmatprep.subr.mxu0 0.0
    %2606 = vmatpush1.msra.mxu0 0.0
    %2607 = vmatprep.subr.mxu0 0.0
    %2608 = vmatpush1.msra.mxu0 0.0
    %2609 = vmatprep.subr.mxu0 0.0
    %2610 = vmatpush1.msra.mxu0 0.0
    %2611 = vmatprep.subr.mxu0 0.0
    %2612 = vmatpush1.msra.mxu0 0.0
    %2613 = vmatprep.subr.mxu0 0.0
    %2614 = vmatpush1.msra.mxu0 0.0
    %2615 = vmatprep.subr.mxu0 0.0
    %2616 = vmatpush1.msra.mxu0 0.0
    %2617 = vmatprep.subr.mxu0 0.0
    %2618 = vmatpush1.msra.mxu0 0.0
    %2619 = vmatprep.mubr.f32.mxu0 0.0
    %2620 = vmatmul.mubr.f32.gmra.mrb[0].mxu0 %v2505
    %v2621 = vpop.f32.mrb[0].mxu0
    %v2622 = vadd.f32 0.0, %v2621
    %v2623 = vpop.f32.mrb[0].mxu0
    %v2624 = vadd.f32 0.0, %v2623
    %2625 = vmatprep.mubr.f32.mxu0 0.0
    %2626 = vmatmul.mubr.f32.gmra.mrb[0].mxu0 %v2506
    %v2627 = vpop.f32.mrb[0].mxu0
    %v2628 = vadd.f32 0.0, %v2627
    %v2629 = vpop.f32.mrb[0].mxu0
    %v2630 = vadd.f32 0.0, %v2629
    %2631 = vdwg.mxu0
    %2632 = vmatprep.subr.mxu0 0.0
    %2633 = vmatpush1.msra.mxu0 %v2509
    %2634 = vmatprep.subr.mxu0 0.0
    %2635 = vmatpush1.msra.mxu0 %v2512
    %2636 = vmatprep.subr.mxu0 0.0
    %2637 = vmatpush1.msra.mxu0 %v2515
    %2638 = vmatprep.subr.mxu0 0.0
    %2639 = vmatpush1.msra.mxu0 %v2518
    %2640 = vmatprep.subr.mxu0 0.0
    %2641 = vmatpush1.msra.mxu0 %v2521
    %2642 = vmatprep.subr.mxu0 0.0
    %2643 = vmatpush1.msra.mxu0 %v2524
    %2644 = vmatprep.subr.mxu0 0.0
    %2645 = vmatpush1.msra.mxu0 %v2527
    %2646 = vmatprep.subr.mxu0 0.0
    %2647 = vmatpush1.msra.mxu0 %v2530
    %2648 = vmatprep.subr.mxu0 0.0
    %2649 = vmatpush1.msra.mxu0 %v2533
    %2650 = vmatprep.subr.mxu0 0.0
    %2651 = vmatpush1.msra.mxu0 %v2536
    %2652 = vmatprep.subr.mxu0 0.0
    %2653 = vmatpush1.msra.mxu0 %v2539
    %2654 = vmatprep.subr.mxu0 0.0
    %2655 = vmatpush1.msra.mxu0 %v2542
    %2656 = vmatprep.subr.mxu0 0.0
    %2657 = vmatpush1.msra.mxu0 %v2545
    %2658 = vmatprep.subr.mxu0 0.0
    %2659 = vmatpush1.msra.mxu0 %v2548
    %2660 = vmatprep.subr.mxu0 0.0
    %2661 = vmatpush1.msra.mxu0 %v2551
    %2662 = vmatprep.subr.mxu0 0.0
    %2663 = vmatpush1.msra.mxu0 %v2554
    %2664 = vmatprep.subr.mxu0 0.0
    %2665 = vmatpush1.msra.mxu0 0.0
    %2666 = vmatprep.subr.mxu0 0.0
    %2667 = vmatpush1.msra.mxu0 0.0
    %2668 = vmatprep.subr.mxu0 0.0
    %2669 = vmatpush1.msra.mxu0 0.0
    %2670 = vmatprep.subr.mxu0 0.0
    %2671 = vmatpush1.msra.mxu0 0.0
    %2672 = vmatprep.subr.mxu0 0.0
    %2673 = vmatpush1.msra.mxu0 0.0
    %2674 = vmatprep.subr.mxu0 0.0
    %2675 = vmatpush1.msra.mxu0 0.0
    %2676 = vmatprep.subr.mxu0 0.0
    %2677 = vmatpush1.msra.mxu0 0.0
    %2678 = vmatprep.subr.mxu0 0.0
    %2679 = vmatpush1.msra.mxu0 0.0
    %2680 = vmatprep.subr.mxu0 0.0
    %2681 = vmatpush1.msra.mxu0 0.0
    %2682 = vmatprep.subr.mxu0 0.0
    %2683 = vmatpush1.msra.mxu0 0.0
    %2684 = vmatprep.subr.mxu0 0.0
    %2685 = vmatpush1.msra.mxu0 0.0
    %2686 = vmatprep.subr.mxu0 0.0
    %2687 = vmatpush1.msra.mxu0 0.0
    %2688 = vmatprep.subr.mxu0 0.0
    %2689 = vmatpush1.msra.mxu0 0.0
    %2690 = vmatprep.subr.mxu0 0.0
    %2691 = vmatpush1.msra.mxu0 0.0
    %2692 = vmatprep.subr.mxu0 0.0
    %2693 = vmatpush1.msra.mxu0 0.0
    %2694 = vmatprep.subr.mxu0 0.0
    %2695 = vmatpush1.msra.mxu0 0.0
    %2696 = vmatprep.mubr.f32.mxu0 0.0
    %2697 = vmatmul.mubr.f32.gmra.mrb[0].mxu0 %v2505
    %v2698 = vpop.f32.mrb[0].mxu0
    %v2699 = vadd.f32 0.0, %v2698
    %v2700 = vpop.f32.mrb[0].mxu0
    %2701 = vmatprep.mubr.f32.mxu0 0.0
    %2702 = vmatmul.mubr.f32.gmra.mrb[0].mxu0 %v2506
    %v2703 = vpop.f32.mrb[0].mxu0
    %v2704 = vadd.f32 0.0, %v2703
    %v2705 = vpop.f32.mrb[0].mxu0
    %2706 = vdwg.mxu0
    %v2707 = vadd.f32 %v2499, %v2622
    %v2708 = vadd.f32 %v2500, %v2624
    %v2709 = vadd.f32 %v2501, %v2699
    %v2710 = vadd.f32 %v2502, %v2628
    %v2711 = vadd.f32 %v2503, %v2630
    %v2712 = vadd.f32 %v2504, %v2704
    %v2713 = vld [vmem:[#allocation2 + $0x2] sm:$0xff]
    %v2714 = vld [vmem:[#allocation2 + $0xa] sm:$0xf]
    %v2715 = vld [vmem:[%s1297] sm:$0xff]
    %v2716 = vld [vmem:[%s1297 + $0x8] sm:$0xff]
    %v2717 = vld [vmem:[%s1297 + $0x10] sm:$0xff]
    %v2718 = vld [vmem:[%s1297 + $0x18] sm:$0xff]
    %v2719 = vld [vmem:[%s1297 + $0x20] sm:$0xff]
    %v2720 = vld [vmem:[%s1297 + $0x28] sm:$0xff]
    %v2721 = vld [vmem:[%s1297 + $0x30] sm:$0xff]
    %v2722 = vld [vmem:[%s1297 + $0x38] sm:$0xff]
    %v2723 = vld [vmem:[%s1297 + $0x40] sm:$0xff]
    %v2724 = vld [vmem:[%s1297 + $0x48] sm:$0xff]
    %v2725 = vld [vmem:[%s1297 + $0x50] sm:$0xff]
    %v2726 = vld [vmem:[%s1297 + $0x58] sm:$0xff]
    %v2727 = vld [vmem:[%s1297 + $0x60] sm:$0xff]
    %v2728 = vld [vmem:[%s1297 + $0x68] sm:$0xff]
    %v2729 = vld [vmem:[%s1297 + $0x70] sm:$0xff]
    %v2730 = vld [vmem:[%s1297 + $0x78] sm:$0xff]
    %v2731 = vld [vmem:[%s1297 + $0x80] sm:$0xff]
    %v2732 = vld [vmem:[%s1297 + $0x88] sm:$0xff]
    %v2733 = vld [vmem:[%s1297 + $0x90] sm:$0xff]
    %v2734 = vld [vmem:[%s1297 + $0x98] sm:$0xff]
    %v2735 = vld [vmem:[%s1297 + $0xa0] sm:$0xff]
    %v2736 = vld [vmem:[%s1297 + $0xa8] sm:$0xff]
    %v2737 = vld [vmem:[%s1297 + $0xb0] sm:$0xff]
    %v2738 = vld [vmem:[%s1297 + $0xb8] sm:$0xff]
    %v2739 = vld [vmem:[%s1297 + $0xc0] sm:$0xff]
    %v2740 = vld [vmem:[%s1297 + $0xc8] sm:$0xff]
    %v2741 = vld [vmem:[%s1297 + $0xd0] sm:$0xff]
    %v2742 = vld [vmem:[%s1297 + $0xd8] sm:$0xff]
    %v2743 = vld [vmem:[%s1297 + $0xe0] sm:$0xff]
    %v2744 = vld [vmem:[%s1297 + $0xe8] sm:$0xff]
    %v2745 = vld [vmem:[%s1297 + $0xf0] sm:$0xff]
    %v2746 = vld [vmem:[%s1297 + $0xf8] sm:$0xff]
    %v2747 = vld [vmem:[%s1297 + $0x100] sm:$0xff]
    %v2748 = vld [vmem:[%s1297 + $0x108] sm:$0xff]
    %v2749 = vld [vmem:[%s1297 + $0x110] sm:$0xff]
    %v2750 = vld [vmem:[%s1297 + $0x118] sm:$0xff]
    %v2751 = vld [vmem:[%s1297 + $0x120] sm:$0xff]
    %v2752 = vld [vmem:[%s1297 + $0x128] sm:$0xff]
    %v2753 = vld [vmem:[%s1297 + $0x130] sm:$0xff]
    %v2754 = vld [vmem:[%s1297 + $0x138] sm:$0xff]
    %v2755 = vld [vmem:[%s1297 + $0x140] sm:$0xff]
    %v2756 = vld [vmem:[%s1297 + $0x148] sm:$0xff]
    %v2757 = vld [vmem:[%s1297 + $0x150] sm:$0xff]
    %v2758 = vld [vmem:[%s1297 + $0x158] sm:$0xff]
    %v2759 = vld [vmem:[%s1297 + $0x160] sm:$0xff]
    %v2760 = vld [vmem:[%s1297 + $0x168] sm:$0xff]
    %v2761 = vld [vmem:[%s1297 + $0x170] sm:$0xff]
    %v2762 = vld [vmem:[%s1297 + $0x178] sm:$0xff]
    %2763 = vmatprep.subr.mxu0 %v2716
    %2764 = vmatpush1.msra.mxu0 %v2715
    %2765 = vmatprep.subr.mxu0 %v2719
    %2766 = vmatpush1.msra.mxu0 %v2718
    %2767 = vmatprep.subr.mxu0 %v2722
    %2768 = vmatpush1.msra.mxu0 %v2721
    %2769 = vmatprep.subr.mxu0 %v2725
    %2770 = vmatpush1.msra.mxu0 %v2724
    %2771 = vmatprep.subr.mxu0 %v2728
    %2772 = vmatpush1.msra.mxu0 %v2727
    %2773 = vmatprep.subr.mxu0 %v2731
    %2774 = vmatpush1.msra.mxu0 %v2730
    %2775 = vmatprep.subr.mxu0 %v2734
    %2776 = vmatpush1.msra.mxu0 %v2733
    %2777 = vmatprep.subr.mxu0 %v2737
    %2778 = vmatpush1.msra.mxu0 %v2736
    %2779 = vmatprep.subr.mxu0 %v2740
    %2780 = vmatpush1.msra.mxu0 %v2739
    %2781 = vmatprep.subr.mxu0 %v2743
    %2782 = vmatpush1.msra.mxu0 %v2742
    %2783 = vmatprep.subr.mxu0 %v2746
    %2784 = vmatpush1.msra.mxu0 %v2745
    %2785 = vmatprep.subr.mxu0 %v2749
    %2786 = vmatpush1.msra.mxu0 %v2748
    %2787 = vmatprep.subr.mxu0 %v2752
    %2788 = vmatpush1.msra.mxu0 %v2751
    %2789 = vmatprep.subr.mxu0 %v2755
    %2790 = vmatpush1.msra.mxu0 %v2754
    %2791 = vmatprep.subr.mxu0 %v2758
    %2792 = vmatpush1.msra.mxu0 %v2757
    %2793 = vmatprep.subr.mxu0 %v2761
    %2794 = vmatpush1.msra.mxu0 %v2760
    %2795 = vmatprep.subr.mxu0 0.0
    %2796 = vmatpush1.msra.mxu0 0.0
    %2797 = vmatprep.subr.mxu0 0.0
    %2798 = vmatpush1.msra.mxu0 0.0
    %2799 = vmatprep.subr.mxu0 0.0
    %2800 = vmatpush1.msra.mxu0 0.0
    %2801 = vmatprep.subr.mxu0 0.0
    %2802 = vmatpush1.msra.mxu0 0.0
    %2803 = vmatprep.subr.mxu0 0.0
    %2804 = vmatpush1.msra.mxu0 0.0
    %2805 = vmatprep.subr.mxu0 0.0
    %2806 = vmatpush1.msra.mxu0 0.0
    %2807 = vmatprep.subr.mxu0 0.0
    %2808 = vmatpush1.msra.mxu0 0.0
    %2809 = vmatprep.subr.mxu0 0.0
    %2810 = vmatpush1.msra.mxu0 0.0
    %2811 = vmatprep.subr.mxu0 0.0
    %2812 = vmatpush1.msra.mxu0 0.0
    %2813 = vmatprep.subr.mxu0 0.0
    %2814 = vmatpush1.msra.mxu0 0.0
    %2815 = vmatprep.subr.mxu0 0.0
    %2816 = vmatpush1.msra.mxu0 0.0
    %2817 = vmatprep.subr.mxu0 0.0
    %2818 = vmatpush1.msra.mxu0 0.0
    %2819 = vmatprep.subr.mxu0 0.0
    %2820 = vmatpush1.msra.mxu0 0.0
    %2821 = vmatprep.subr.mxu0 0.0
    %2822 = vmatpush1.msra.mxu0 0.0
    %2823 = vmatprep.subr.mxu0 0.0
    %2824 = vmatpush1.msra.mxu0 0.0
    %2825 = vmatprep.subr.mxu0 0.0
    %2826 = vmatpush1.msra.mxu0 0.0
    %2827 = vmatprep.mubr.f32.mxu0 0.0
    %2828 = vmatmul.mubr.f32.gmra.mrb[0].mxu0 %v2713
    %v2829 = vpop.f32.mrb[0].mxu0
    %v2830 = vadd.f32 0.0, %v2829
    %v2831 = vpop.f32.mrb[0].mxu0
    %v2832 = vadd.f32 0.0, %v2831
    %2833 = vmatprep.mubr.f32.mxu0 0.0
    %2834 = vmatmul.mubr.f32.gmra.mrb[0].mxu0 %v2714
    %v2835 = vpop.f32.mrb[0].mxu0
    %v2836 = vadd.f32 0.0, %v2835
    %v2837 = vpop.f32.mrb[0].mxu0
    %v2838 = vadd.f32 0.0, %v2837
    %2839 = vdwg.mxu0
    %2840 = vmatprep.subr.mxu0 0.0
    %2841 = vmatpush1.msra.mxu0 %v2717
    %2842 = vmatprep.subr.mxu0 0.0
    %2843 = vmatpush1.msra.mxu0 %v2720
    %2844 = vmatprep.subr.mxu0 0.0
    %2845 = vmatpush1.msra.mxu0 %v2723
    %2846 = vmatprep.subr.mxu0 0.0
    %2847 = vmatpush1.msra.mxu0 %v2726
    %2848 = vmatprep.subr.mxu0 0.0
    %2849 = vmatpush1.msra.mxu0 %v2729
    %2850 = vmatprep.subr.mxu0 0.0
    %2851 = vmatpush1.msra.mxu0 %v2732
    %2852 = vmatprep.subr.mxu0 0.0
    %2853 = vmatpush1.msra.mxu0 %v2735
    %2854 = vmatprep.subr.mxu0 0.0
    %2855 = vmatpush1.msra.mxu0 %v2738
    %2856 = vmatprep.subr.mxu0 0.0
    %2857 = vmatpush1.msra.mxu0 %v2741
    %2858 = vmatprep.subr.mxu0 0.0
    %2859 = vmatpush1.msra.mxu0 %v2744
    %2860 = vmatprep.subr.mxu0 0.0
    %2861 = vmatpush1.msra.mxu0 %v2747
    %2862 = vmatprep.subr.mxu0 0.0
    %2863 = vmatpush1.msra.mxu0 %v2750
    %2864 = vmatprep.subr.mxu0 0.0
    %2865 = vmatpush1.msra.mxu0 %v2753
    %2866 = vmatprep.subr.mxu0 0.0
    %2867 = vmatpush1.msra.mxu0 %v2756
    %2868 = vmatprep.subr.mxu0 0.0
    %2869 = vmatpush1.msra.mxu0 %v2759
    %2870 = vmatprep.subr.mxu0 0.0
    %2871 = vmatpush1.msra.mxu0 %v2762
    %2872 = vmatprep.subr.mxu0 0.0
    %2873 = vmatpush1.msra.mxu0 0.0
    %2874 = vmatprep.subr.mxu0 0.0
    %2875 = vmatpush1.msra.mxu0 0.0
    %2876 = vmatprep.subr.mxu0 0.0
    %2877 = vmatpush1.msra.mxu0 0.0
    %2878 = vmatprep.subr.mxu0 0.0
    %2879 = vmatpush1.msra.mxu0 0.0
    %2880 = vmatprep.subr.mxu0 0.0
    %2881 = vmatpush1.msra.mxu0 0.0
    %2882 = vmatprep.subr.mxu0 0.0
    %2883 = vmatpush1.msra.mxu0 0.0
    %2884 = vmatprep.subr.mxu0 0.0
    %2885 = vmatpush1.msra.mxu0 0.0
    %2886 = vmatprep.subr.mxu0 0.0
    %2887 = vmatpush1.msra.mxu0 0.0
    %2888 = vmatprep.subr.mxu0 0.0
    %2889 = vmatpush1.msra.mxu0 0.0
    %2890 = vmatprep.subr.mxu0 0.0
    %2891 = vmatpush1.msra.mxu0 0.0
    %2892 = vmatprep.subr.mxu0 0.0
    %2893 = vmatpush1.msra.mxu0 0.0
    %2894 = vmatprep.subr.mxu0 0.0
    %2895 = vmatpush1.msra.mxu0 0.0
    %2896 = vmatprep.subr.mxu0 0.0
    %2897 = vmatpush1.msra.mxu0 0.0
    %2898 = vmatprep.subr.mxu0 0.0
    %2899 = vmatpush1.msra.mxu0 0.0
    %2900 = vmatprep.subr.mxu0 0.0
    %2901 = vmatpush1.msra.mxu0 0.0
    %2902 = vmatprep.subr.mxu0 0.0
    %2903 = vmatpush1.msra.mxu0 0.0
    %2904 = vmatprep.mubr.f32.mxu0 0.0
    %2905 = vmatmul.mubr.f32.gmra.mrb[0].mxu0 %v2713
    %v2906 = vpop.f32.mrb[0].mxu0
    %v2907 = vadd.f32 0.0, %v2906
    %v2908 = vpop.f32.mrb[0].mxu0
    %2909 = vmatprep.mubr.f32.mxu0 0.0
    %2910 = vmatmul.mubr.f32.gmra.mrb[0].mxu0 %v2714
    %v2911 = vpop.f32.mrb[0].mxu0
    %v2912 = vadd.f32 0.0, %v2911
    %v2913 = vpop.f32.mrb[0].mxu0
    %2914 = vdwg.mxu0
    %v2915 = vadd.f32 %v2707, %v2830
    %v2916 = vadd.f32 %v2708, %v2832
    %v2917 = vadd.f32 %v2709, %v2907
    %v2918 = vadd.f32 %v2710, %v2836
    %v2919 = vadd.f32 %v2711, %v2838
    %v2920 = vadd.f32 %v2712, %v2912
    %v2921 = vxor.u32 %v2916, 2147483648
    %v2922 = vxor.u32 %v2919, 2147483648
    %v2923 = vmul.f32 %v2921, 1.442695
    %v2924 = vpow.pop %v2923
    %v2925 = vmul.f32 %v2922, 1.442695
    %v2926 = vpow.pop %v2925
    %v2927 = vadd.f32 %v2924, 1.0
    %v2928 = vadd.f32 %v2926, 1.0
    %v2929 = vrcp.pop %v2927
    %v2930 = vmul.f32 1.0, %v2929
    %v2931 = vrcp.pop %v2928
    %v2932 = vmul.f32 1.0, %v2931
    %v2933 = vadd.f32 %v2915, %v2930
    %v2934 = vadd.f32 %v2918, %v2932
    %v2935 = vadd.f32 %v2933, %v2917
    %v2936 = vadd.f32 %v2934, %v2920
    %v2937 = vmax.f32 %v2935, 0.0
    %v2938 = vmax.f32 %v2936, 0.0
    %s2939 = scalar_lea.vmem [#allocation3], 16
    %2940 = vst [vmem:[%s2939] sm:$0xff] %v2937
    %2941 = vst [vmem:[%s2939 + $0x8] sm:$0xf] %v2938
    %v2942 = vld [vmem:[#allocation3] sm:$0xff]
    %v2943 = vld [vmem:[#allocation3 + $0x8] sm:$0xf]
    %v2944 = vld [vmem:[#allocation3 + $0x10] sm:$0xff]
    %v2945 = vld [vmem:[#allocation3 + $0x18] sm:$0xf]
    %v2946 = vadd.f32 %v2942, %v2944
    %vm2947 = vcmask 1043456
    %v2948 = vsel %vm2947, %v2943, 0.0
    %v2949 = vsel %vm2947, %v2945, 0.0
    %v2950 = vadd.f32 %v2948, %v2949
    %v2951 = vsel %vm2947, %v2950, 0.0
    %v2952 = vadd.f32 %v2946, %v2951
    %v2953 = vrot.slane %v2952, 4
    %v2954 = vadd.f32 %v2952, %v2953
    %v2955 = vrot.slane %v2954, 2
    %v2956 = vadd.f32 %v2954, %v2955
    %v2957 = vrot.slane %v2956, 1
    %v2958 = vadd.f32 %v2956, %v2957
    %v2959 = vld [vmem:[#allocation11] sm:$0xff]
    %v2960 = vld [vmem:[#allocation11 + $0x8] sm:$0xff]
    %v2961 = vld [vmem:[#allocation11 + $0x10] sm:$0xff]
    %v2962 = vld [vmem:[#allocation11 + $0x18] sm:$0xff]
    %v2963 = vld [vmem:[#allocation11 + $0x20] sm:$0xff]
    %v2964 = vld [vmem:[#allocation11 + $0x28] sm:$0xff]
    %v2965 = vld [vmem:[#allocation11 + $0x30] sm:$0xff]
    %v2966 = vld [vmem:[#allocation11 + $0x38] sm:$0xff]
    %v2967 = vld [vmem:[#allocation11 + $0x40] sm:$0xff]
    %v2968 = vld [vmem:[#allocation11 + $0x48] sm:$0xff]
    %v2969 = vld [vmem:[#allocation11 + $0x50] sm:$0xff]
    %v2970 = vld [vmem:[#allocation11 + $0x58] sm:$0xff]
    %v2971 = vld [vmem:[#allocation11 + $0x60] sm:$0xff]
    %v2972 = vld [vmem:[#allocation11 + $0x68] sm:$0xff]
    %v2973 = vld [vmem:[#allocation11 + $0x70] sm:$0xff]
    %v2974 = vld [vmem:[#allocation11 + $0x78] sm:$0xff]
    %2975 = vmatprep.subr.mxu0 0.0
    %2976 = vmatpush1.msra.mxu0 %v2959
    %2977 = vmatprep.subr.mxu0 0.0
    %2978 = vmatpush1.msra.mxu0 %v2960
    %2979 = vmatprep.subr.mxu0 0.0
    %2980 = vmatpush1.msra.mxu0 %v2961
    %2981 = vmatprep.subr.mxu0 0.0
    %2982 = vmatpush1.msra.mxu0 %v2962
    %2983 = vmatprep.subr.mxu0 0.0
    %2984 = vmatpush1.msra.mxu0 %v2963
    %2985 = vmatprep.subr.mxu0 0.0
    %2986 = vmatpush1.msra.mxu0 %v2964
    %2987 = vmatprep.subr.mxu0 0.0
    %2988 = vmatpush1.msra.mxu0 %v2965
    %2989 = vmatprep.subr.mxu0 0.0
    %2990 = vmatpush1.msra.mxu0 %v2966
    %2991 = vmatprep.subr.mxu0 0.0
    %2992 = vmatpush1.msra.mxu0 %v2967
    %2993 = vmatprep.subr.mxu0 0.0
    %2994 = vmatpush1.msra.mxu0 %v2968
    %2995 = vmatprep.subr.mxu0 0.0
    %2996 = vmatpush1.msra.mxu0 %v2969
    %2997 = vmatprep.subr.mxu0 0.0
    %2998 = vmatpush1.msra.mxu0 %v2970
    %2999 = vmatprep.subr.mxu0 0.0
    %3000 = vmatpush1.msra.mxu0 %v2971
    %3001 = vmatprep.subr.mxu0 0.0
    %3002 = vmatpush1.msra.mxu0 %v2972
    %3003 = vmatprep.subr.mxu0 0.0
    %3004 = vmatpush1.msra.mxu0 %v2973
    %3005 = vmatprep.subr.mxu0 0.0
    %3006 = vmatpush1.msra.mxu0 %v2974
    %3007 = vmatprep.subr.mxu0 0.0
    %3008 = vmatpush1.msra.mxu0 0.0
    %3009 = vmatprep.subr.mxu0 0.0
    %3010 = vmatpush1.msra.mxu0 0.0
    %3011 = vmatprep.subr.mxu0 0.0
    %3012 = vmatpush1.msra.mxu0 0.0
    %3013 = vmatprep.subr.mxu0 0.0
    %3014 = vmatpush1.msra.mxu0 0.0
    %3015 = vmatprep.subr.mxu0 0.0
    %3016 = vmatpush1.msra.mxu0 0.0
    %3017 = vmatprep.subr.mxu0 0.0
    %3018 = vmatpush1.msra.mxu0 0.0
    %3019 = vmatprep.subr.mxu0 0.0
    %3020 = vmatpush1.msra.mxu0 0.0
    %3021 = vmatprep.subr.mxu0 0.0
    %3022 = vmatpush1.msra.mxu0 0.0
    %3023 = vmatprep.subr.mxu0 0.0
    %3024 = vmatpush1.msra.mxu0 0.0
    %3025 = vmatprep.subr.mxu0 0.0
    %3026 = vmatpush1.msra.mxu0 0.0
    %3027 = vmatprep.subr.mxu0 0.0
    %3028 = vmatpush1.msra.mxu0 0.0
    %3029 = vmatprep.subr.mxu0 0.0
    %3030 = vmatpush1.msra.mxu0 0.0
    %3031 = vmatprep.subr.mxu0 0.0
    %3032 = vmatpush1.msra.mxu0 0.0
    %3033 = vmatprep.subr.mxu0 0.0
    %3034 = vmatpush1.msra.mxu0 0.0
    %3035 = vmatprep.subr.mxu0 0.0
    %3036 = vmatpush1.msra.mxu0 0.0
    %3037 = vmatprep.subr.mxu0 0.0
    %3038 = vmatpush1.msra.mxu0 0.0
    %3039 = vmatprep.mubr.f32.mxu0 0.0
    %3040 = vmatmul.mubr.f32.gmra.mrb[0].mxu0 %v2958
    %v3041 = vpop.f32.mrb[0].mxu0
    %v3042 = vadd.f32 0.0, %v3041
    %v3043 = vpop.f32.mrb[0].mxu0
    %3044 = vdwg.mxu0
    %v3045 = vrcp.pop 192.0
    %v3046 = vmul.f32 %v3042, %v3045
    %v3047 = vlaneseq
    %v3048 = vshrl.u32 %v3047, 7
    %v3049 = vsub.s32 0, %v3048
    %v3050 = vrot.slane %v3046, %v3049
    %v3051 = vsub.f32 %v2942, %v3050
    %v3052 = vsub.f32 %v2943, %v3050
    %v3053 = vsub.f32 %v2944, %v3050
    %v3054 = vsub.f32 %v2945, %v3050
    %v3055 = vmul.f32 %v3051, %v3051
    %v3056 = vmul.f32 %v3052, %v3052
    %v3057 = vmul.f32 %v3053, %v3053
    %v3058 = vmul.f32 %v3054, %v3054
    %v3059 = vadd.f32 %v3055, %v3057
    %v3060 = vsel %vm2947, %v3056, 0.0
    %v3061 = vsel %vm2947, %v3058, 0.0
    %v3062 = vadd.f32 %v3060, %v3061
    %v3063 = vsel %vm2947, %v3062, 0.0
    %v3064 = vadd.f32 %v3059, %v3063
    %v3065 = vrot.slane %v3064, 4
    %v3066 = vadd.f32 %v3064, %v3065
    %v3067 = vrot.slane %v3066, 2
    %v3068 = vadd.f32 %v3066, %v3067
    %v3069 = vrot.slane %v3068, 1
    %v3070 = vadd.f32 %v3068, %v3069
    %3071 = vmatprep.subr.mxu0 0.0
    %3072 = vmatpush1.msra.mxu0 %v2959
    %3073 = vmatprep.subr.mxu0 0.0
    %3074 = vmatpush1.msra.mxu0 %v2960
    %3075 = vmatprep.subr.mxu0 0.0
    %3076 = vmatpush1.msra.mxu0 %v2961
    %3077 = vmatprep.subr.mxu0 0.0
    %3078 = vmatpush1.msra.mxu0 %v2962
    %3079 = vmatprep.subr.mxu0 0.0
    %3080 = vmatpush1.msra.mxu0 %v2963
    %3081 = vmatprep.subr.mxu0 0.0
    %3082 = vmatpush1.msra.mxu0 %v2964
    %3083 = vmatprep.subr.mxu0 0.0
    %3084 = vmatpush1.msra.mxu0 %v2965
    %3085 = vmatprep.subr.mxu0 0.0
    %3086 = vmatpush1.msra.mxu0 %v2966
    %3087 = vmatprep.subr.mxu0 0.0
    %3088 = vmatpush1.msra.mxu0 %v2967
    %3089 = vmatprep.subr.mxu0 0.0
    %3090 = vmatpush1.msra.mxu0 %v2968
    %3091 = vmatprep.subr.mxu0 0.0
    %3092 = vmatpush1.msra.mxu0 %v2969
    %3093 = vmatprep.subr.mxu0 0.0
    %3094 = vmatpush1.msra.mxu0 %v2970
    %3095 = vmatprep.subr.mxu0 0.0
    %3096 = vmatpush1.msra.mxu0 %v2971
    %3097 = vmatprep.subr.mxu0 0.0
    %3098 = vmatpush1.msra.mxu0 %v2972
    %3099 = vmatprep.subr.mxu0 0.0
    %3100 = vmatpush1.msra.mxu0 %v2973
    %3101 = vmatprep.subr.mxu0 0.0
    %3102 = vmatpush1.msra.mxu0 %v2974
    %3103 = vmatprep.subr.mxu0 0.0
    %3104 = vmatpush1.msra.mxu0 0.0
    %3105 = vmatprep.subr.mxu0 0.0
    %3106 = vmatpush1.msra.mxu0 0.0
    %3107 = vmatprep.subr.mxu0 0.0
    %3108 = vmatpush1.msra.mxu0 0.0
    %3109 = vmatprep.subr.mxu0 0.0
    %3110 = vmatpush1.msra.mxu0 0.0
    %3111 = vmatprep.subr.mxu0 0.0
    %3112 = vmatpush1.msra.mxu0 0.0
    %3113 = vmatprep.subr.mxu0 0.0
    %3114 = vmatpush1.msra.mxu0 0.0
    %3115 = vmatprep.subr.mxu0 0.0
    %3116 = vmatpush1.msra.mxu0 0.0
    %3117 = vmatprep.subr.mxu0 0.0
    %3118 = vmatpush1.msra.mxu0 0.0
    %3119 = vmatprep.subr.mxu0 0.0
    %3120 = vmatpush1.msra.mxu0 0.0
    %3121 = vmatprep.subr.mxu0 0.0
    %3122 = vmatpush1.msra.mxu0 0.0
    %3123 = vmatprep.subr.mxu0 0.0
    %3124 = vmatpush1.msra.mxu0 0.0
    %3125 = vmatprep.subr.mxu0 0.0
    %3126 = vmatpush1.msra.mxu0 0.0
    %3127 = vmatprep.subr.mxu0 0.0
    %3128 = vmatpush1.msra.mxu0 0.0
    %3129 = vmatprep.subr.mxu0 0.0
    %3130 = vmatpush1.msra.mxu0 0.0
    %3131 = vmatprep.subr.mxu0 0.0
    %3132 = vmatpush1.msra.mxu0 0.0
    %3133 = vmatprep.subr.mxu0 0.0
    %3134 = vmatpush1.msra.mxu0 0.0
    %3135 = vmatprep.mubr.f32.mxu0 0.0
    %3136 = vmatmul.mubr.f32.gmra.mrb[0].mxu0 %v3070
    %v3137 = vpop.f32.mrb[0].mxu0
    %v3138 = vadd.f32 0.0, %v3137
    %v3139 = vpop.f32.mrb[0].mxu0
    %3140 = vdwg.mxu0
    %v3141 = vmul.f32 %v3138, %v3045
    %v3142 = vadd.f32 %v3141, 1e-05
    %v3143 = vrsqrt.pop %v3142
    %v3144 = vld [vmem:[%s7] sm:$0x1]
    %v3146 = vlaneseq
    %v3147 = vshrl.u32 %v3146, 7
    %v3148 = vsub.s32 0, %v3147
    %v3149 = vrot.slane %v3144, %v3148
    %v3151 = vmul.f32 %v3149, %v3051
    %v3152 = vmul.f32 %v3149, %v3052
    %v3153 = vmul.f32 %v3149, %v3053
    %v3154 = vmul.f32 %v3149, %v3054
    %v3155 = vlaneseq
    %v3156 = vshrl.u32 %v3155, 7
    %v3157 = vsub.s32 0, %v3156
    %v3158 = vrot.slane %v3143, %v3157
    %v3159 = vmul.f32 %v3151, %v3158
    %v3160 = vmul.f32 %v3152, %v3158
    %v3161 = vmul.f32 %v3153, %v3158
    %v3162 = vmul.f32 %v3154, %v3158
    %v3163 = vld [vmem:[%s8] sm:$0x1]
    %v3165 = vlaneseq
    %v3166 = vshrl.u32 %v3165, 7
    %v3167 = vsub.s32 0, %v3166
    %v3168 = vrot.slane %v3163, %v3167
    %v3170 = vadd.f32 %v3159, %v3168
    %v3171 = vadd.f32 %v3160, %v3168
    %v3172 = vadd.f32 %v3161, %v3168
    %v3173 = vadd.f32 %v3162, %v3168
    %3174 = vst [vmem:[%s10] sm:$0xff] %v3170
    %3175 = vst [vmem:[%s10 + $0x8] sm:$0xf] %v3171
    %3176 = vst [vmem:[%s10 + $0x10] sm:$0xff] %v3172
    %3177 = vst [vmem:[%s10 + $0x18] sm:$0xf] %v3173
    // Predicated region
    $region62: #{stgcn_block_forward.1} parent=1 // pred_check
      _
    $region63: #{stgcn_block_forward.1} parent=1 // pred_check_branch
      %3179 = sbr.rel (0) target = $region65
    $region64: #{stgcn_block_forward.1} parent=1 // pred_region
      _
    $region65: #{stgcn_block_forward.1} parent=1 // pred_fallthru
      _
    // Predicated region
    $region66: #{stgcn_block_forward.1} parent=1 // pred_check
      _
    $region67: #{stgcn_block_forward.1} parent=1 // pred_check_branch
      %3181 = sbr.rel (0) target = $region69
    $region68: #{stgcn_block_forward.1} parent=1 // pred_region
      _
    $region69: #{stgcn_block_forward.1} parent=1 // pred_fallthru
      _
    %3182 = vsyncpa [#allocation5], 1
    %3183 = vsyncpa [#allocation7], 1
    %3184 = vsyncpa [#allocation10], 1

</llo_original>
